<compile_context>
chip_gen: v6e
topology: v6e:2x2x1
jax: 0.10.0
libtpu: 0.0.40
codegen_flags: <defaults>
</compile_context>

<pallas_src>
import math
from functools import partial

import jax
import jax.numpy as jnp
from jax.experimental import pallas as pl
from jax.experimental.pallas import tpu as pltpu

EPS = 1e-5

# For large configs on v6e/v7x set to jnp.bfloat16 (2x MXU throughput, half the
# weight DMA bytes); kept f32 here so the tiny test tracks the f32 PyTorch
# reference closely.  LayerNorm stats / softmax always stay f32.
MATMUL_DTYPE = jnp.float32


# ----------------------------- in-kernel helpers -----------------------------

def _mm(a, b):
    """MXU matmul with f32 accumulation; operands optionally cast down."""
    return jnp.dot(a.astype(MATMUL_DTYPE), b.astype(MATMUL_DTYPE),
                   preferred_element_type=jnp.float32)


def _layernorm(x, w, b):
    mu = jnp.mean(x, axis=-1, keepdims=True)
    var = jnp.mean(jnp.square(x - mu), axis=-1, keepdims=True)
    return (x - mu) * jax.lax.rsqrt(var + EPS) * w + b


def _gelu(x):
    # TODO(synk): PyTorch nn.GELU defaults to exact (erf) GELU; tanh approx used.
    return 0.5 * x * (1.0 + jnp.tanh(0.7978845608028654 *
                                     (x + 0.044715 * x * x * x)))


# --------------------------------- fused kernel -------------------------------

def encoder_kernel(patches_ref, w_pe_ref, pe_add_ref,
                   ln1w_ref, ln1b_ref, wqkv_ref, bqkv_ref, wo_ref, bo_ref,
                   ln2w_ref, ln2b_ref, w1_ref, b1_ref, w2_ref, b2_ref,
                   lnf_w_ref, lnf_b_ref,
                   o_ref, *, num_heads, batch_tile, seq_len):
    d = pl.program_id(1)

    # ---- depth step 0: patch embedding + (pos + bias) add ----
    @pl.when(d == 0)
    def _():
        emb = _mm(patches_ref[...], w_pe_ref[...])
        o_ref[...] = emb + pe_add_ref[...]

    x = o_ref[...]                                  # (R, C) resident activation
    R, C = x.shape
    dh = C // num_heads
    scale = 1.0 / math.sqrt(dh)

    # ---- multi-head self-attention (pre-LN) ----
    xn = _layernorm(x, ln1w_ref[...], ln1b_ref[...])
    qkv = _mm(xn, wqkv_ref[...]) + bqkv_ref[...]    # (R, 3C) — one big MXU matmul

    attn = jnp.zeros((R, C), jnp.float32)
    for h in range(num_heads):                      # static; batched over rows below
        q = qkv[:, h * dh:(h + 1) * dh].reshape(batch_tile, seq_len, dh)
        k = qkv[:, C + h * dh:C + (h + 1) * dh].reshape(batch_tile, seq_len, dh)
        v = qkv[:, 2 * C + h * dh:2 * C + (h + 1) * dh].reshape(batch_tile, seq_len, dh)
        s = jnp.einsum('bqd,bkd->bqk', q, k,
                       preferred_element_type=jnp.float32) * scale      # (b, N, N)
        s = s - jnp.max(s, axis=-1, keepdims=True)
        p = jnp.exp(s)
        p = p * pl.reciprocal(jnp.sum(p, axis=-1, keepdims=True), approx=True)
        o_h = jnp.einsum('bqk,bkd->bqd', p, v,
                         preferred_element_type=jnp.float32)            # (b, N, dh)
        # concat(heads) @ W_o  ==  sum_h head_h @ W_o[h*dh:(h+1)*dh, :]
        attn = attn + _mm(o_h.reshape(R, dh), wo_ref[h * dh:(h + 1) * dh, :])
    x = x + attn + bo_ref[...]

    # ---- MLP (pre-LN) ----
    xn2 = _layernorm(x, ln2w_ref[...], ln2b_ref[...])
    h1 = _gelu(_mm(xn2, w1_ref[...]) + b1_ref[...])
    x = x + _mm(h1, w2_ref[...]) + b2_ref[...]

    o_ref[...] = x

    # ---- final LayerNorm fused into the last depth step ----
    @pl.when(d == pl.num_programs(1) - 1)
    def _():
        o_ref[...] = _layernorm(x, lnf_w_ref[...], lnf_b_ref[...])


# ------------------------------ pallas wrapper --------------------------------

def encoder_forward(x_nchw, params, num_heads, *, batch_tile=1):
    patches = patchify(x_nchw, params["patch_sizes"])             # (B, N, P)
    B, N, P = patches.shape
    C = params["pe_w"].shape[1]
    depth = params["w_qkv"].shape[0]
    assert B % batch_tile == 0

    patches2d = patches.reshape(B * N, P)
    # Fold conv bias into the positional-embedding add, tiled to (B*N, C).
    pe_add = jnp.tile(params["pos"] + params["pe_b"], (B, 1))

    R = batch_tile * N                                            # rows per tile
    grid = (B // batch_tile, depth)

    def row_spec(width):
        return pl.BlockSpec((R, width), lambda r, d: (r, 0))

    def const2(a):
        return pl.BlockSpec(a.shape, lambda r, d: (0, 0))

    def stacked(a):
        # drop the (squeezed) depth axis; stream layer d's weights per step
        return pl.BlockSpec((None,) + a.shape[1:],
                            lambda r, d, _nd=a.ndim: (d,) + (0,) * (_nd - 1))

    kernel = partial(encoder_kernel, num_heads=num_heads,
                     batch_tile=batch_tile, seq_len=N)

    out = pl.pallas_call(
        kernel,
        out_shape=jax.ShapeDtypeStruct((B * N, C), jnp.float32),
        grid=grid,
        in_specs=[
            row_spec(P),                      # patches (B*N, P)
            const2(params["pe_w"]),           # (P, C)
            row_spec(C),                      # pos + bias (B*N, C)
            stacked(params["ln1_w"]), stacked(params["ln1_b"]),
            stacked(params["w_qkv"]), stacked(params["b_qkv"]),
            stacked(params["w_o"]), stacked(params["b_o"]),
            stacked(params["ln2_w"]), stacked(params["ln2_b"]),
            stacked(params["w_fc1"]), stacked(params["b_fc1"]),
            stacked(params["w_fc2"]), stacked(params["b_fc2"]),
            const2(params["ln_w"]), const2(params["ln_b"]),
        ],
        out_specs=pl.BlockSpec((R, C), lambda r, d: (r, 0)),
        compiler_params=pltpu.CompilerParams(
            dimension_semantics=("parallel", "arbitrary"),
            vmem_limit_bytes=64 * 1024 * 1024),
    )(patches2d, params["pe_w"], pe_add,
      params["ln1_w"], params["ln1_b"], params["w_qkv"], params["b_qkv"],
      params["w_o"], params["b_o"], params["ln2_w"], params["ln2_b"],
      params["w_fc1"], params["b_fc1"], params["w_fc2"], params["b_fc2"],
      params["ln_w"], params["ln_b"])

    return out.reshape(B, N, C)


# --------------------------------- JAX glue -----------------------------------

def sincos_position_embed(spatial_dims, embed_dim):
    """2D sin-cos positional embedding (MAE convention), shape (N, embed_dim)."""
    gh, gw = spatial_dims
    assert embed_dim % 4 == 0

    def embed_1d(pos, dim):
        omega = jnp.arange(dim // 2, dtype=jnp.float32) / (dim / 2.0)
        omega = 1.0 / (10000.0 ** omega)
        out = pos[:, None] * omega[None, :]
        return jnp.concatenate([jnp.sin(out), jnp.cos(out)], axis=1)

    yy, xx = jnp.meshgrid(jnp.arange(gh, dtype=jnp.float32),
                          jnp.arange(gw, dtype=jnp.float32), indexing="ij")
    emb_h = embed_1d(yy.reshape(-1), embed_dim // 2)
    emb_w = embed_1d(xx.reshape(-1), embed_dim // 2)
    return jnp.concatenate([emb_h, emb_w], axis=1).astype(jnp.float32)


def patchify(x, patch_sizes):
    """NCHW (B, Cin, H, W) -> (B, N, Cin*ph*pw); matches Conv2d(k=p, s=p) flatten."""
    B, Cin, H, W = x.shape
    ph, pw = patch_sizes
    gh, gw = H // ph, W // pw
    x = x.reshape(B, Cin, gh, ph, gw, pw)
    x = x.transpose(0, 2, 4, 1, 3, 5)           # (B, gh, gw, Cin, ph, pw)
    return x.reshape(B, gh * gw, Cin * ph * pw)


def init_params(key, *, input_channel, patch_sizes, patchified_dims,
                num_channel, num_heads, depth, mlp_ratio):
    C = num_channel
    assert C % num_heads == 0
    P = input_channel * math.prod(patch_sizes)
    hidden = mlp_ratio * C
    keys = jax.random.split(key, 1 + depth)

    def dense(k, fan_in, fan_out):
        return jax.random.normal(k, (fan_in, fan_out), jnp.float32) * 0.02

    w_qkv, w_o, w_fc1, w_fc2 = [], [], [], []
    for di in range(depth):
        bk = jax.random.split(keys[1 + di], 4)
        w_qkv.append(dense(bk[0], C, 3 * C))
        w_o.append(dense(bk[1], C, C))
        w_fc1.append(dense(bk[2], C, hidden))
        w_fc2.append(dense(bk[3], hidden, C))

    return {
        "patch_sizes": tuple(patch_sizes),
        "pe_w": dense(keys[0], P, C),
        "pe_b": jnp.zeros((1, C), jnp.float32),
        "pos": sincos_position_embed(patchified_dims, C),
        "ln_w": jnp.ones((1, C), jnp.float32),
        "ln_b": jnp.zeros((1, C), jnp.float32),
        # per-block params stacked along depth for the fused kernel
        "ln1_w": jnp.ones((depth, 1, C), jnp.float32),
        "ln1_b": jnp.zeros((depth, 1, C), jnp.float32),
        "w_qkv": jnp.stack(w_qkv),
        "b_qkv": jnp.zeros((depth, 1, 3 * C), jnp.float32),
        "w_o": jnp.stack(w_o),
        "b_o": jnp.zeros((depth, 1, C), jnp.float32),
        "ln2_w": jnp.ones((depth, 1, C), jnp.float32),
        "ln2_b": jnp.zeros((depth, 1, C), jnp.float32),
        "w_fc1": jnp.stack(w_fc1),
        "b_fc1": jnp.zeros((depth, 1, hidden), jnp.float32),
        "w_fc2": jnp.stack(w_fc2),
        "b_fc2": jnp.zeros((depth, 1, C), jnp.float32),
    }


# ----------------------------------- main -------------------------------------

if __name__ == "__main__":
    # Encoder.Options equivalent (small synthetic sizes, lane-dense embed dim)
    spatial_dims = [16, 16]
    patch_sizes = [4, 4]
    input_channel = 4
    num_channel = 128          # embed dim: multiple of 128 -> lane-dense stores
    num_heads = 4
    depth = 2
    mlp_ratio = 4
    patchified_dims = [d // p for d, p in zip(spatial_dims, patch_sizes)]  # N=16

    key = jax.random.PRNGKey(0)
    k_x, k_p = jax.random.split(key)
    x = jax.random.normal(k_x, (2, input_channel, *spatial_dims), jnp.float32)  # NCHW

    params = init_params(k_p,
                         input_channel=input_channel,
                         patch_sizes=patch_sizes,
                         patchified_dims=patchified_dims,
                         num_channel=num_channel,
                         num_heads=num_heads,
                         depth=depth,
                         mlp_ratio=mlp_ratio)

    # batch_tile=1 -> 2 parallel row-tiles (keeps both v7x TensorCores busy);
    # for large batches raise batch_tile so each tile has >=128 matmul rows.
    out = encoder_forward(x, params, num_heads, batch_tile=1)
    jax.block_until_ready(out)
    assert out.shape == (2, math.prod(patchified_dims), num_channel)
    assert bool(jnp.all(jnp.isfinite(out)))
    print("KERNEL_OK")
</pallas_src>

<mosaic_0001>
module attributes {stable_mosaic.version = 11 : i64} {
  func.func @encoder_kernel(%arg0: i32, %arg1: i32, %arg2: memref<16x64xf32, #tpu.memory_space<vmem>>, %arg3: memref<64x128xf32, #tpu.memory_space<vmem>>, %arg4: memref<16x128xf32, #tpu.memory_space<vmem>>, %arg5: memref<1x1x128xf32, #tpu.memory_space<vmem>>, %arg6: memref<1x1x128xf32, #tpu.memory_space<vmem>>, %arg7: memref<1x128x384xf32, #tpu.memory_space<vmem>>, %arg8: memref<1x1x384xf32, #tpu.memory_space<vmem>>, %arg9: memref<1x128x128xf32, #tpu.memory_space<vmem>>, %arg10: memref<1x1x128xf32, #tpu.memory_space<vmem>>, %arg11: memref<1x1x128xf32, #tpu.memory_space<vmem>>, %arg12: memref<1x1x128xf32, #tpu.memory_space<vmem>>, %arg13: memref<1x128x512xf32, #tpu.memory_space<vmem>>, %arg14: memref<1x1x512xf32, #tpu.memory_space<vmem>>, %arg15: memref<1x512x128xf32, #tpu.memory_space<vmem>>, %arg16: memref<1x1x128xf32, #tpu.memory_space<vmem>>, %arg17: memref<1x128xf32, #tpu.memory_space<vmem>>, %arg18: memref<1x128xf32, #tpu.memory_space<vmem>>, %arg19: memref<16x128xf32, #tpu.memory_space<vmem>>) attributes {dimension_semantics = [#tpu.dimension_semantics<parallel>, #tpu.dimension_semantics<arbitrary>], iteration_bounds = array<i64: 2, 2>, scalar_prefetch = 0 : i64, scratch_operands = 0 : i64, tpu.core_type = #tpu.core_type<tc>, window_params = [{transform_indices = @transform_0, window_bounds = array<i64: 16, 64>}, {pipeline_mode = #tpu.pipeline_mode<synchronous>, transform_indices = @transform_1, window_bounds = array<i64: 64, 128>}, {transform_indices = @transform_2, window_bounds = array<i64: 16, 128>}, {transform_indices = @transform_3, window_bounds = array<i64: 1, 1, 128>}, {transform_indices = @transform_4, window_bounds = array<i64: 1, 1, 128>}, {transform_indices = @transform_5, window_bounds = array<i64: 1, 128, 384>}, {transform_indices = @transform_6, window_bounds = array<i64: 1, 1, 384>}, {transform_indices = @transform_7, window_bounds = array<i64: 1, 128, 128>}, {transform_indices = @transform_8, window_bounds = array<i64: 1, 1, 128>}, {transform_indices = @transform_9, window_bounds = array<i64: 1, 1, 128>}, {transform_indices = @transform_10, window_bounds = array<i64: 1, 1, 128>}, {transform_indices = @transform_11, window_bounds = array<i64: 1, 128, 512>}, {transform_indices = @transform_12, window_bounds = array<i64: 1, 1, 512>}, {transform_indices = @transform_13, window_bounds = array<i64: 1, 512, 128>}, {transform_indices = @transform_14, window_bounds = array<i64: 1, 1, 128>}, {pipeline_mode = #tpu.pipeline_mode<synchronous>, transform_indices = @transform_15, window_bounds = array<i64: 1, 128>}, {pipeline_mode = #tpu.pipeline_mode<synchronous>, transform_indices = @transform_16, window_bounds = array<i64: 1, 128>}, {transform_indices = @transform_17, window_bounds = array<i64: 16, 128>}]} {
    %c0_i32 = arith.constant 0 : i32
    %0 = arith.cmpi eq, %arg1, %c0_i32 : i32
    %1 = arith.extui %0 : i1 to i32
    %c0_i32_0 = arith.constant 0 : i32
    %2 = arith.cmpi ne, %1, %c0_i32_0 : i32
    scf.if %2 {
      %c0_88 = arith.constant 0 : index
      %c0_89 = arith.constant 0 : index
      %201 = vector.load %arg2[%c0_88, %c0_89] : memref<16x64xf32, #tpu.memory_space<vmem>>, vector<16x64xf32>
      %c0_90 = arith.constant 0 : index
      %c0_91 = arith.constant 0 : index
      %202 = vector.load %arg3[%c0_90, %c0_91] : memref<64x128xf32, #tpu.memory_space<vmem>>, vector<64x128xf32>
      %cst_92 = arith.constant dense<0.000000e+00> : vector<16x128xf32>
      %203 = tpu.matmul %201, %202, %cst_92 {dimension_numbers = #tpu.dot_dimension_numbers<[1], [0], [0], [1], [0, 0, 1, 1], [], []>} : vector<16x64xf32>, vector<64x128xf32>, vector<16x128xf32> -> vector<16x128xf32>
      %c0_93 = arith.constant 0 : index
      %c0_94 = arith.constant 0 : index
      %204 = vector.load %arg4[%c0_93, %c0_94] : memref<16x128xf32, #tpu.memory_space<vmem>>, vector<16x128xf32>
      %205 = arith.addf %203, %204 : vector<16x128xf32>
      %c0_95 = arith.constant 0 : index
      %c0_96 = arith.constant 0 : index
      %206 = vector.load %arg19[%c0_95, %c0_96] : memref<16x128xf32, #tpu.memory_space<vmem>>, vector<16x128xf32>
      tpu.vector_store %arg19[%c0_95, %c0_96], %205 {strides = array<i32>} : memref<16x128xf32, #tpu.memory_space<vmem>>, vector<16x128xf32>,
    } else {
    }
    %c0 = arith.constant 0 : index
    %c0_1 = arith.constant 0 : index
    %3 = vector.load %arg19[%c0, %c0_1] : memref<16x128xf32, #tpu.memory_space<vmem>>, vector<16x128xf32>
    %c0_2 = arith.constant 0 : index
    %c0_3 = arith.constant 0 : index
    %c0_4 = arith.constant 0 : index
    %4 = vector.load %arg5[%c0_2, %c0_3, %c0_4] : memref<1x1x128xf32, #tpu.memory_space<vmem>>, vector<1x1x128xf32>
    %5 = vector.shape_cast %4 : vector<1x1x128xf32> to vector<1x128xf32>
    %c0_5 = arith.constant 0 : index
    %c0_6 = arith.constant 0 : index
    %c0_7 = arith.constant 0 : index
    %6 = vector.load %arg6[%c0_5, %c0_6, %c0_7] : memref<1x1x128xf32, #tpu.memory_space<vmem>>, vector<1x1x128xf32>
    %7 = vector.shape_cast %6 : vector<1x1x128xf32> to vector<1x128xf32>
    %cst = arith.constant dense<0.000000e+00> : vector<16xf32>
    %8 = vector.multi_reduction <add>, %3, %cst [1] : vector<16x128xf32> to vector<16xf32>
    %9 = vector.shape_cast %8 : vector<16xf32> to vector<16x1xf32>
    %cst_8 = arith.constant 1.280000e+02 : f32
    %10 = vector.broadcast %cst_8 : f32 to vector<16x1xf32>
    %11 = arith.divf %9, %10 : vector<16x1xf32>
    %12 = vector.broadcast %11 : vector<16x1xf32> to vector<16x128xf32>
    %13 = arith.subf %3, %12 : vector<16x128xf32>
    %14 = arith.mulf %13, %13 : vector<16x128xf32>
    %cst_9 = arith.constant dense<0.000000e+00> : vector<16xf32>
    %15 = vector.multi_reduction <add>, %14, %cst_9 [1] : vector<16x128xf32> to vector<16xf32>
    %16 = vector.shape_cast %15 : vector<16xf32> to vector<16x1xf32>
    %cst_10 = arith.constant 1.280000e+02 : f32
    %17 = vector.broadcast %cst_10 : f32 to vector<16x1xf32>
    %18 = arith.divf %16, %17 : vector<16x1xf32>
    %19 = vector.broadcast %11 : vector<16x1xf32> to vector<16x128xf32>
    %20 = arith.subf %3, %19 : vector<16x128xf32>
    %cst_11 = arith.constant 9.99999974E-6 : f32
    %21 = vector.broadcast %cst_11 : f32 to vector<16x1xf32>
    %22 = arith.addf %18, %21 : vector<16x1xf32>
    %23 = math.rsqrt %22 : vector<16x1xf32>
    %24 = vector.broadcast %23 : vector<16x1xf32> to vector<16x128xf32>
    %25 = arith.mulf %20, %24 : vector<16x128xf32>
    %26 = vector.broadcast %5 : vector<1x128xf32> to vector<16x128xf32>
    %27 = arith.mulf %25, %26 : vector<16x128xf32>
    %28 = vector.broadcast %7 : vector<1x128xf32> to vector<16x128xf32>
    %29 = arith.addf %27, %28 : vector<16x128xf32>
    %c0_12 = arith.constant 0 : index
    %c0_13 = arith.constant 0 : index
    %c0_14 = arith.constant 0 : index
    %30 = vector.load %arg7[%c0_12, %c0_13, %c0_14] : memref<1x128x384xf32, #tpu.memory_space<vmem>>, vector<1x128x384xf32>
    %31 = vector.shape_cast %30 : vector<1x128x384xf32> to vector<128x384xf32>
    %cst_15 = arith.constant dense<0.000000e+00> : vector<16x384xf32>
    %32 = tpu.matmul %29, %31, %cst_15 {dimension_numbers = #tpu.dot_dimension_numbers<[1], [0], [0], [1], [0, 0, 1, 1], [], []>} : vector<16x128xf32>, vector<128x384xf32>, vector<16x384xf32> -> vector<16x384xf32>
    %c0_16 = arith.constant 0 : index
    %c0_17 = arith.constant 0 : index
    %c0_18 = arith.constant 0 : index
    %33 = vector.load %arg8[%c0_16, %c0_17, %c0_18] : memref<1x1x384xf32, #tpu.memory_space<vmem>>, vector<1x1x384xf32>
    %34 = vector.shape_cast %33 : vector<1x1x384xf32> to vector<1x384xf32>
    %35 = vector.broadcast %34 : vector<1x384xf32> to vector<16x384xf32>
    %36 = arith.addf %32, %35 : vector<16x384xf32>
    %cst_19 = arith.constant 0.000000e+00 : f32
    %37 = vector.broadcast %cst_19 : f32 to vector<16x128xf32>
    %38 = vector.extract_strided_slice %36 {offsets = [0, 0], sizes = [16, 32], strides = [1, 1]} : vector<16x384xf32> to vector<16x32xf32>
    %39 = vector.shape_cast %38 : vector<16x32xf32> to vector<1x16x32xf32>
    %40 = vector.extract_strided_slice %36 {offsets = [0, 128], sizes = [16, 32], strides = [1, 1]} : vector<16x384xf32> to vector<16x32xf32>
    %41 = vector.shape_cast %40 : vector<16x32xf32> to vector<1x16x32xf32>
    %42 = vector.extract_strided_slice %36 {offsets = [0, 256], sizes = [16, 32], strides = [1, 1]} : vector<16x384xf32> to vector<16x32xf32>
    %43 = vector.shape_cast %42 : vector<16x32xf32> to vector<1x16x32xf32>
    "tpu.trace_start"() <{level = 10 : i32, message = "bqd,bkd->bqk"}> : () -> ()
    %cst_20 = arith.constant dense<0.000000e+00> : vector<1x16x16xf32>
    %44 = tpu.matmul %39, %41, %cst_20 {dimension_numbers = #tpu.dot_dimension_numbers<[2], [2], [1], [1], [0, 0, 0, 1, 1, 1], [0], [0]>} : vector<1x16x32xf32>, vector<1x16x32xf32>, vector<1x16x16xf32> -> vector<1x16x16xf32>
    "tpu.trace_stop"() : () -> ()
    %cst_21 = arith.constant 0.176776692 : f32
    %45 = vector.broadcast %cst_21 : f32 to vector<1x16x16xf32>
    %46 = arith.mulf %44, %45 : vector<1x16x16xf32>
    %cst_22 = arith.constant dense<0xFF800000> : vector<1x16xf32>
    %47 = vector.multi_reduction <maximumf>, %46, %cst_22 [2] : vector<1x16x16xf32> to vector<1x16xf32>
    %48 = vector.shape_cast %47 : vector<1x16xf32> to vector<1x16x1xf32>
    %49 = vector.broadcast %48 : vector<1x16x1xf32> to vector<1x16x16xf32>
    %50 = arith.subf %46, %49 : vector<1x16x16xf32>
    %51 = math.exp %50 : vector<1x16x16xf32>
    %cst_23 = arith.constant dense<0.000000e+00> : vector<1x16xf32>
    %52 = vector.multi_reduction <add>, %51, %cst_23 [2] : vector<1x16x16xf32> to vector<1x16xf32>
    %53 = vector.shape_cast %52 : vector<1x16xf32> to vector<1x16x1xf32>
    %54 = tpu.reciprocal %53 {approx = true} : vector<1x16x1xf32> -> vector<1x16x1xf32>
    %55 = vector.broadcast %54 : vector<1x16x1xf32> to vector<1x16x16xf32>
    %56 = arith.mulf %51, %55 : vector<1x16x16xf32>
    "tpu.trace_start"() <{level = 10 : i32, message = "bqk,bkd->bqd"}> : () -> ()
    %cst_24 = arith.constant dense<0.000000e+00> : vector<1x16x32xf32>
    %57 = tpu.matmul %56, %43, %cst_24 {dimension_numbers = #tpu.dot_dimension_numbers<[2], [1], [1], [2], [0, 0, 0, 1, 1, 2], [0], [0]>} : vector<1x16x16xf32>, vector<1x16x32xf32>, vector<1x16x32xf32> -> vector<1x16x32xf32>
    "tpu.trace_stop"() : () -> ()
    %58 = vector.shape_cast %57 : vector<1x16x32xf32> to vector<16x32xf32>
    %c0_25 = arith.constant 0 : index
    %c0_26 = arith.constant 0 : index
    %c0_27 = arith.constant 0 : index
    %59 = vector.load %arg9[%c0_25, %c0_26, %c0_27] : memref<1x128x128xf32, #tpu.memory_space<vmem>>, vector<1x32x128xf32>
    %60 = vector.shape_cast %59 : vector<1x32x128xf32> to vector<32x128xf32>
    %cst_28 = arith.constant dense<0.000000e+00> : vector<16x128xf32>
    %61 = tpu.matmul %58, %60, %cst_28 {dimension_numbers = #tpu.dot_dimension_numbers<[1], [0], [0], [1], [0, 0, 1, 1], [], []>} : vector<16x32xf32>, vector<32x128xf32>, vector<16x128xf32> -> vector<16x128xf32>
    %62 = arith.addf %37, %61 : vector<16x128xf32>
    %63 = vector.extract_strided_slice %36 {offsets = [0, 32], sizes = [16, 32], strides = [1, 1]} : vector<16x384xf32> to vector<16x32xf32>
    %64 = vector.shape_cast %63 : vector<16x32xf32> to vector<1x16x32xf32>
    %65 = vector.extract_strided_slice %36 {offsets = [0, 160], sizes = [16, 32], strides = [1, 1]} : vector<16x384xf32> to vector<16x32xf32>
    %66 = vector.shape_cast %65 : vector<16x32xf32> to vector<1x16x32xf32>
    %67 = vector.extract_strided_slice %36 {offsets = [0, 288], sizes = [16, 32], strides = [1, 1]} : vector<16x384xf32> to vector<16x32xf32>
    %68 = vector.shape_cast %67 : vector<16x32xf32> to vector<1x16x32xf32>
    "tpu.trace_start"() <{level = 10 : i32, message = "bqd,bkd->bqk"}> : () -> ()
    %cst_29 = arith.constant dense<0.000000e+00> : vector<1x16x16xf32>
    %69 = tpu.matmul %64, %66, %cst_29 {dimension_numbers = #tpu.dot_dimension_numbers<[2], [2], [1], [1], [0, 0, 0, 1, 1, 1], [0], [0]>} : vector<1x16x32xf32>, vector<1x16x32xf32>, vector<1x16x16xf32> -> vector<1x16x16xf32>
    "tpu.trace_stop"() : () -> ()
    %cst_30 = arith.constant 0.176776692 : f32
    %70 = vector.broadcast %cst_30 : f32 to vector<1x16x16xf32>
    %71 = arith.mulf %69, %70 : vector<1x16x16xf32>
    %cst_31 = arith.constant dense<0xFF800000> : vector<1x16xf32>
    %72 = vector.multi_reduction <maximumf>, %71, %cst_31 [2] : vector<1x16x16xf32> to vector<1x16xf32>
    %73 = vector.shape_cast %72 : vector<1x16xf32> to vector<1x16x1xf32>
    %74 = vector.broadcast %73 : vector<1x16x1xf32> to vector<1x16x16xf32>
    %75 = arith.subf %71, %74 : vector<1x16x16xf32>
    %76 = math.exp %75 : vector<1x16x16xf32>
    %cst_32 = arith.constant dense<0.000000e+00> : vector<1x16xf32>
    %77 = vector.multi_reduction <add>, %76, %cst_32 [2] : vector<1x16x16xf32> to vector<1x16xf32>
    %78 = vector.shape_cast %77 : vector<1x16xf32> to vector<1x16x1xf32>
    %79 = tpu.reciprocal %78 {approx = true} : vector<1x16x1xf32> -> vector<1x16x1xf32>
    %80 = vector.broadcast %79 : vector<1x16x1xf32> to vector<1x16x16xf32>
    %81 = arith.mulf %76, %80 : vector<1x16x16xf32>
    "tpu.trace_start"() <{level = 10 : i32, message = "bqk,bkd->bqd"}> : () -> ()
    %cst_33 = arith.constant dense<0.000000e+00> : vector<1x16x32xf32>
    %82 = tpu.matmul %81, %68, %cst_33 {dimension_numbers = #tpu.dot_dimension_numbers<[2], [1], [1], [2], [0, 0, 0, 1, 1, 2], [0], [0]>} : vector<1x16x16xf32>, vector<1x16x32xf32>, vector<1x16x32xf32> -> vector<1x16x32xf32>
    "tpu.trace_stop"() : () -> ()
    %83 = vector.shape_cast %82 : vector<1x16x32xf32> to vector<16x32xf32>
    %c0_34 = arith.constant 0 : index
    %c32 = arith.constant 32 : index
    %c0_35 = arith.constant 0 : index
    %84 = vector.load %arg9[%c0_34, %c32, %c0_35] : memref<1x128x128xf32, #tpu.memory_space<vmem>>, vector<1x32x128xf32>
    %85 = vector.shape_cast %84 : vector<1x32x128xf32> to vector<32x128xf32>
    %cst_36 = arith.constant dense<0.000000e+00> : vector<16x128xf32>
    %86 = tpu.matmul %83, %85, %cst_36 {dimension_numbers = #tpu.dot_dimension_numbers<[1], [0], [0], [1], [0, 0, 1, 1], [], []>} : vector<16x32xf32>, vector<32x128xf32>, vector<16x128xf32> -> vector<16x128xf32>
    %87 = arith.addf %62, %86 : vector<16x128xf32>
    %88 = vector.extract_strided_slice %36 {offsets = [0, 64], sizes = [16, 32], strides = [1, 1]} : vector<16x384xf32> to vector<16x32xf32>
    %89 = vector.shape_cast %88 : vector<16x32xf32> to vector<1x16x32xf32>
    %90 = vector.extract_strided_slice %36 {offsets = [0, 192], sizes = [16, 32], strides = [1, 1]} : vector<16x384xf32> to vector<16x32xf32>
    %91 = vector.shape_cast %90 : vector<16x32xf32> to vector<1x16x32xf32>
    %92 = vector.extract_strided_slice %36 {offsets = [0, 320], sizes = [16, 32], strides = [1, 1]} : vector<16x384xf32> to vector<16x32xf32>
    %93 = vector.shape_cast %92 : vector<16x32xf32> to vector<1x16x32xf32>
    "tpu.trace_start"() <{level = 10 : i32, message = "bqd,bkd->bqk"}> : () -> ()
    %cst_37 = arith.constant dense<0.000000e+00> : vector<1x16x16xf32>
    %94 = tpu.matmul %89, %91, %cst_37 {dimension_numbers = #tpu.dot_dimension_numbers<[2], [2], [1], [1], [0, 0, 0, 1, 1, 1], [0], [0]>} : vector<1x16x32xf32>, vector<1x16x32xf32>, vector<1x16x16xf32> -> vector<1x16x16xf32>
    "tpu.trace_stop"() : () -> ()
    %cst_38 = arith.constant 0.176776692 : f32
    %95 = vector.broadcast %cst_38 : f32 to vector<1x16x16xf32>
    %96 = arith.mulf %94, %95 : vector<1x16x16xf32>
    %cst_39 = arith.constant dense<0xFF800000> : vector<1x16xf32>
    %97 = vector.multi_reduction <maximumf>, %96, %cst_39 [2] : vector<1x16x16xf32> to vector<1x16xf32>
    %98 = vector.shape_cast %97 : vector<1x16xf32> to vector<1x16x1xf32>
    %99 = vector.broadcast %98 : vector<1x16x1xf32> to vector<1x16x16xf32>
    %100 = arith.subf %96, %99 : vector<1x16x16xf32>
    %101 = math.exp %100 : vector<1x16x16xf32>
    %cst_40 = arith.constant dense<0.000000e+00> : vector<1x16xf32>
    %102 = vector.multi_reduction <add>, %101, %cst_40 [2] : vector<1x16x16xf32> to vector<1x16xf32>
    %103 = vector.shape_cast %102 : vector<1x16xf32> to vector<1x16x1xf32>
    %104 = tpu.reciprocal %103 {approx = true} : vector<1x16x1xf32> -> vector<1x16x1xf32>
    %105 = vector.broadcast %104 : vector<1x16x1xf32> to vector<1x16x16xf32>
    %106 = arith.mulf %101, %105 : vector<1x16x16xf32>
    "tpu.trace_start"() <{level = 10 : i32, message = "bqk,bkd->bqd"}> : () -> ()
    %cst_41 = arith.constant dense<0.000000e+00> : vector<1x16x32xf32>
    %107 = tpu.matmul %106, %93, %cst_41 {dimension_numbers = #tpu.dot_dimension_numbers<[2], [1], [1], [2], [0, 0, 0, 1, 1, 2], [0], [0]>} : vector<1x16x16xf32>, vector<1x16x32xf32>, vector<1x16x32xf32> -> vector<1x16x32xf32>
    "tpu.trace_stop"() : () -> ()
    %108 = vector.shape_cast %107 : vector<1x16x32xf32> to vector<16x32xf32>
    %c0_42 = arith.constant 0 : index
    %c64 = arith.constant 64 : index
    %c0_43 = arith.constant 0 : index
    %109 = vector.load %arg9[%c0_42, %c64, %c0_43] : memref<1x128x128xf32, #tpu.memory_space<vmem>>, vector<1x32x128xf32>
    %110 = vector.shape_cast %109 : vector<1x32x128xf32> to vector<32x128xf32>
    %cst_44 = arith.constant dense<0.000000e+00> : vector<16x128xf32>
    %111 = tpu.matmul %108, %110, %cst_44 {dimension_numbers = #tpu.dot_dimension_numbers<[1], [0], [0], [1], [0, 0, 1, 1], [], []>} : vector<16x32xf32>, vector<32x128xf32>, vector<16x128xf32> -> vector<16x128xf32>
    %112 = arith.addf %87, %111 : vector<16x128xf32>
    %113 = vector.extract_strided_slice %36 {offsets = [0, 96], sizes = [16, 32], strides = [1, 1]} : vector<16x384xf32> to vector<16x32xf32>
    %114 = vector.shape_cast %113 : vector<16x32xf32> to vector<1x16x32xf32>
    %115 = vector.extract_strided_slice %36 {offsets = [0, 224], sizes = [16, 32], strides = [1, 1]} : vector<16x384xf32> to vector<16x32xf32>
    %116 = vector.shape_cast %115 : vector<16x32xf32> to vector<1x16x32xf32>
    %117 = vector.extract_strided_slice %36 {offsets = [0, 352], sizes = [16, 32], strides = [1, 1]} : vector<16x384xf32> to vector<16x32xf32>
    %118 = vector.shape_cast %117 : vector<16x32xf32> to vector<1x16x32xf32>
    "tpu.trace_start"() <{level = 10 : i32, message = "bqd,bkd->bqk"}> : () -> ()
    %cst_45 = arith.constant dense<0.000000e+00> : vector<1x16x16xf32>
    %119 = tpu.matmul %114, %116, %cst_45 {dimension_numbers = #tpu.dot_dimension_numbers<[2], [2], [1], [1], [0, 0, 0, 1, 1, 1], [0], [0]>} : vector<1x16x32xf32>, vector<1x16x32xf32>, vector<1x16x16xf32> -> vector<1x16x16xf32>
    "tpu.trace_stop"() : () -> ()
    %cst_46 = arith.constant 0.176776692 : f32
    %120 = vector.broadcast %cst_46 : f32 to vector<1x16x16xf32>
    %121 = arith.mulf %119, %120 : vector<1x16x16xf32>
    %cst_47 = arith.constant dense<0xFF800000> : vector<1x16xf32>
    %122 = vector.multi_reduction <maximumf>, %121, %cst_47 [2] : vector<1x16x16xf32> to vector<1x16xf32>
    %123 = vector.shape_cast %122 : vector<1x16xf32> to vector<1x16x1xf32>
    %124 = vector.broadcast %123 : vector<1x16x1xf32> to vector<1x16x16xf32>
    %125 = arith.subf %121, %124 : vector<1x16x16xf32>
    %126 = math.exp %125 : vector<1x16x16xf32>
    %cst_48 = arith.constant dense<0.000000e+00> : vector<1x16xf32>
    %127 = vector.multi_reduction <add>, %126, %cst_48 [2] : vector<1x16x16xf32> to vector<1x16xf32>
    %128 = vector.shape_cast %127 : vector<1x16xf32> to vector<1x16x1xf32>
    %129 = tpu.reciprocal %128 {approx = true} : vector<1x16x1xf32> -> vector<1x16x1xf32>
    %130 = vector.broadcast %129 : vector<1x16x1xf32> to vector<1x16x16xf32>
    %131 = arith.mulf %126, %130 : vector<1x16x16xf32>
    "tpu.trace_start"() <{level = 10 : i32, message = "bqk,bkd->bqd"}> : () -> ()
    %cst_49 = arith.constant dense<0.000000e+00> : vector<1x16x32xf32>
    %132 = tpu.matmul %131, %118, %cst_49 {dimension_numbers = #tpu.dot_dimension_numbers<[2], [1], [1], [2], [0, 0, 0, 1, 1, 2], [0], [0]>} : vector<1x16x16xf32>, vector<1x16x32xf32>, vector<1x16x32xf32> -> vector<1x16x32xf32>
    "tpu.trace_stop"() : () -> ()
    %133 = vector.shape_cast %132 : vector<1x16x32xf32> to vector<16x32xf32>
    %c0_50 = arith.constant 0 : index
    %c96 = arith.constant 96 : index
    %c0_51 = arith.constant 0 : index
    %134 = vector.load %arg9[%c0_50, %c96, %c0_51] : memref<1x128x128xf32, #tpu.memory_space<vmem>>, vector<1x32x128xf32>
    %135 = vector.shape_cast %134 : vector<1x32x128xf32> to vector<32x128xf32>
    %cst_52 = arith.constant dense<0.000000e+00> : vector<16x128xf32>
    %136 = tpu.matmul %133, %135, %cst_52 {dimension_numbers = #tpu.dot_dimension_numbers<[1], [0], [0], [1], [0, 0, 1, 1], [], []>} : vector<16x32xf32>, vector<32x128xf32>, vector<16x128xf32> -> vector<16x128xf32>
    %137 = arith.addf %112, %136 : vector<16x128xf32>
    %138 = arith.addf %3, %137 : vector<16x128xf32>
    %c0_53 = arith.constant 0 : index
    %c0_54 = arith.constant 0 : index
    %c0_55 = arith.constant 0 : index
    %139 = vector.load %arg10[%c0_53, %c0_54, %c0_55] : memref<1x1x128xf32, #tpu.memory_space<vmem>>, vector<1x1x128xf32>
    %140 = vector.shape_cast %139 : vector<1x1x128xf32> to vector<1x128xf32>
    %141 = vector.broadcast %140 : vector<1x128xf32> to vector<16x128xf32>
    %142 = arith.addf %138, %141 : vector<16x128xf32>
    %c0_56 = arith.constant 0 : index
    %c0_57 = arith.constant 0 : index
    %c0_58 = arith.constant 0 : index
    %143 = vector.load %arg11[%c0_56, %c0_57, %c0_58] : memref<1x1x128xf32, #tpu.memory_space<vmem>>, vector<1x1x128xf32>
    %144 = vector.shape_cast %143 : vector<1x1x128xf32> to vector<1x128xf32>
    %c0_59 = arith.constant 0 : index
    %c0_60 = arith.constant 0 : index
    %c0_61 = arith.constant 0 : index
    %145 = vector.load %arg12[%c0_59, %c0_60, %c0_61] : memref<1x1x128xf32, #tpu.memory_space<vmem>>, vector<1x1x128xf32>
    %146 = vector.shape_cast %145 : vector<1x1x128xf32> to vector<1x128xf32>
    %cst_62 = arith.constant dense<0.000000e+00> : vector<16xf32>
    %147 = vector.multi_reduction <add>, %142, %cst_62 [1] : vector<16x128xf32> to vector<16xf32>
    %148 = vector.shape_cast %147 : vector<16xf32> to vector<16x1xf32>
    %cst_63 = arith.constant 1.280000e+02 : f32
    %149 = vector.broadcast %cst_63 : f32 to vector<16x1xf32>
    %150 = arith.divf %148, %149 : vector<16x1xf32>
    %151 = vector.broadcast %150 : vector<16x1xf32> to vector<16x128xf32>
    %152 = arith.subf %142, %151 : vector<16x128xf32>
    %153 = arith.mulf %152, %152 : vector<16x128xf32>
    %cst_64 = arith.constant dense<0.000000e+00> : vector<16xf32>
    %154 = vector.multi_reduction <add>, %153, %cst_64 [1] : vector<16x128xf32> to vector<16xf32>
    %155 = vector.shape_cast %154 : vector<16xf32> to vector<16x1xf32>
    %cst_65 = arith.constant 1.280000e+02 : f32
    %156 = vector.broadcast %cst_65 : f32 to vector<16x1xf32>
    %157 = arith.divf %155, %156 : vector<16x1xf32>
    %158 = vector.broadcast %150 : vector<16x1xf32> to vector<16x128xf32>
    %159 = arith.subf %142, %158 : vector<16x128xf32>
    %cst_66 = arith.constant 9.99999974E-6 : f32
    %160 = vector.broadcast %cst_66 : f32 to vector<16x1xf32>
    %161 = arith.addf %157, %160 : vector<16x1xf32>
    %162 = math.rsqrt %161 : vector<16x1xf32>
    %163 = vector.broadcast %162 : vector<16x1xf32> to vector<16x128xf32>
    %164 = arith.mulf %159, %163 : vector<16x128xf32>
    %165 = vector.broadcast %144 : vector<1x128xf32> to vector<16x128xf32>
    %166 = arith.mulf %164, %165 : vector<16x128xf32>
    %167 = vector.broadcast %146 : vector<1x128xf32> to vector<16x128xf32>
    %168 = arith.addf %166, %167 : vector<16x128xf32>
    %c0_67 = arith.constant 0 : index
    %c0_68 = arith.constant 0 : index
    %c0_69 = arith.constant 0 : index
    %169 = vector.load %arg13[%c0_67, %c0_68, %c0_69] : memref<1x128x512xf32, #tpu.memory_space<vmem>>, vector<1x128x512xf32>
    %170 = vector.shape_cast %169 : vector<1x128x512xf32> to vector<128x512xf32>
    %cst_70 = arith.constant dense<0.000000e+00> : vector<16x512xf32>
    %171 = tpu.matmul %168, %170, %cst_70 {dimension_numbers = #tpu.dot_dimension_numbers<[1], [0], [0], [1], [0, 0, 1, 1], [], []>} : vector<16x128xf32>, vector<128x512xf32>, vector<16x512xf32> -> vector<16x512xf32>
    %c0_71 = arith.constant 0 : index
    %c0_72 = arith.constant 0 : index
    %c0_73 = arith.constant 0 : index
    %172 = vector.load %arg14[%c0_71, %c0_72, %c0_73] : memref<1x1x512xf32, #tpu.memory_space<vmem>>, vector<1x1x512xf32>
    %173 = vector.shape_cast %172 : vector<1x1x512xf32> to vector<1x512xf32>
    %174 = vector.broadcast %173 : vector<1x512xf32> to vector<16x512xf32>
    %175 = arith.addf %171, %174 : vector<16x512xf32>
    %cst_74 = arith.constant 5.000000e-01 : f32
    %176 = vector.broadcast %cst_74 : f32 to vector<16x512xf32>
    %177 = arith.mulf %176, %175 : vector<16x512xf32>
    %cst_75 = arith.constant 4.471500e-02 : f32
    %178 = vector.broadcast %cst_75 : f32 to vector<16x512xf32>
    %179 = arith.mulf %178, %175 : vector<16x512xf32>
    %180 = arith.mulf %179, %175 : vector<16x512xf32>
    %181 = arith.mulf %180, %175 : vector<16x512xf32>
    %182 = arith.addf %175, %181 : vector<16x512xf32>
    %cst_76 = arith.constant 0.797884583 : f32
    %183 = vector.broadcast %cst_76 : f32 to vector<16x512xf32>
    %184 = arith.mulf %183, %182 : vector<16x512xf32>
    %185 = math.tanh %184 : vector<16x512xf32>
    %cst_77 = arith.constant 1.000000e+00 : f32
    %186 = vector.broadcast %cst_77 : f32 to vector<16x512xf32>
    %187 = arith.addf %186, %185 : vector<16x512xf32>
    %188 = arith.mulf %177, %187 : vector<16x512xf32>
    %c0_78 = arith.constant 0 : index
    %c0_79 = arith.constant 0 : index
    %c0_80 = arith.constant 0 : index
    %189 = vector.load %arg15[%c0_78, %c0_79, %c0_80] : memref<1x512x128xf32, #tpu.memory_space<vmem>>, vector<1x512x128xf32>
    %190 = vector.shape_cast %189 : vector<1x512x128xf32> to vector<512x128xf32>
    %cst_81 = arith.constant dense<0.000000e+00> : vector<16x128xf32>
    %191 = tpu.matmul %188, %190, %cst_81 {dimension_numbers = #tpu.dot_dimension_numbers<[1], [0], [0], [1], [0, 0, 1, 1], [], []>} : vector<16x512xf32>, vector<512x128xf32>, vector<16x128xf32> -> vector<16x128xf32>
    %192 = arith.addf %142, %191 : vector<16x128xf32>
    %c0_82 = arith.constant 0 : index
    %c0_83 = arith.constant 0 : index
    %c0_84 = arith.constant 0 : index
    %193 = vector.load %arg16[%c0_82, %c0_83, %c0_84] : memref<1x1x128xf32, #tpu.memory_space<vmem>>, vector<1x1x128xf32>
    %194 = vector.shape_cast %193 : vector<1x1x128xf32> to vector<1x128xf32>
    %195 = vector.broadcast %194 : vector<1x128xf32> to vector<16x128xf32>
    %196 = arith.addf %192, %195 : vector<16x128xf32>
    %c0_85 = arith.constant 0 : index
    %c0_86 = arith.constant 0 : index
    %197 = vector.load %arg19[%c0_85, %c0_86] : memref<16x128xf32, #tpu.memory_space<vmem>>, vector<16x128xf32>
    tpu.vector_store %arg19[%c0_85, %c0_86], %196 {strides = array<i32>} : memref<16x128xf32, #tpu.memory_space<vmem>>, vector<16x128xf32>,
    %c1_i32 = arith.constant 1 : i32
    %198 = arith.cmpi eq, %arg1, %c1_i32 : i32
    %199 = arith.extui %198 : i1 to i32
    %c0_i32_87 = arith.constant 0 : i32
    %200 = arith.cmpi ne, %199, %c0_i32_87 : i32
    scf.if %200 {
      %c0_88 = arith.constant 0 : index
      %c0_89 = arith.constant 0 : index
      %201 = vector.load %arg17[%c0_88, %c0_89] : memref<1x128xf32, #tpu.memory_space<vmem>>, vector<1x128xf32>
      %c0_90 = arith.constant 0 : index
      %c0_91 = arith.constant 0 : index
      %202 = vector.load %arg18[%c0_90, %c0_91] : memref<1x128xf32, #tpu.memory_space<vmem>>, vector<1x128xf32>
      %cst_92 = arith.constant dense<0.000000e+00> : vector<16xf32>
      %203 = vector.multi_reduction <add>, %196, %cst_92 [1] : vector<16x128xf32> to vector<16xf32>
      %204 = vector.shape_cast %203 : vector<16xf32> to vector<16x1xf32>
      %cst_93 = arith.constant 1.280000e+02 : f32
      %205 = vector.broadcast %cst_93 : f32 to vector<16x1xf32>
      %206 = arith.divf %204, %205 : vector<16x1xf32>
      %207 = vector.broadcast %206 : vector<16x1xf32> to vector<16x128xf32>
      %208 = arith.subf %196, %207 : vector<16x128xf32>
      %209 = arith.mulf %208, %208 : vector<16x128xf32>
      %cst_94 = arith.constant dense<0.000000e+00> : vector<16xf32>
      %210 = vector.multi_reduction <add>, %209, %cst_94 [1] : vector<16x128xf32> to vector<16xf32>
      %211 = vector.shape_cast %210 : vector<16xf32> to vector<16x1xf32>
      %cst_95 = arith.constant 1.280000e+02 : f32
      %212 = vector.broadcast %cst_95 : f32 to vector<16x1xf32>
      %213 = arith.divf %211, %212 : vector<16x1xf32>
      %214 = vector.broadcast %206 : vector<16x1xf32> to vector<16x128xf32>
      %215 = arith.subf %196, %214 : vector<16x128xf32>
      %cst_96 = arith.constant 9.99999974E-6 : f32
      %216 = vector.broadcast %cst_96 : f32 to vector<16x1xf32>
      %217 = arith.addf %213, %216 : vector<16x1xf32>
      %218 = math.rsqrt %217 : vector<16x1xf32>
      %219 = vector.broadcast %218 : vector<16x1xf32> to vector<16x128xf32>
      %220 = arith.mulf %215, %219 : vector<16x128xf32>
      %221 = vector.broadcast %201 : vector<1x128xf32> to vector<16x128xf32>
      %222 = arith.mulf %220, %221 : vector<16x128xf32>
      %223 = vector.broadcast %202 : vector<1x128xf32> to vector<16x128xf32>
      %224 = arith.addf %222, %223 : vector<16x128xf32>
      %c0_97 = arith.constant 0 : index
      %c0_98 = arith.constant 0 : index
      %225 = vector.load %arg19[%c0_97, %c0_98] : memref<16x128xf32, #tpu.memory_space<vmem>>, vector<16x128xf32>
      tpu.vector_store %arg19[%c0_97, %c0_98], %224 {strides = array<i32>} : memref<16x128xf32, #tpu.memory_space<vmem>>, vector<16x128xf32>,
    } else {
    }
    return
  }
  func.func @transform_0(%arg0: i32, %arg1: i32) -> (i32, i32) {
    %c0_i32 = arith.constant 0 : i32
    %c0_i32_0 = arith.constant 0 : i32
    return %arg0, %c0_i32 : i32, i32
  }
  func.func @transform_1(%arg0: i32, %arg1: i32) -> (i32, i32) {
    %c0_i32 = arith.constant 0 : i32
    %c0_i32_0 = arith.constant 0 : i32
    %c0_i32_1 = arith.constant 0 : i32
    return %c0_i32, %c0_i32_0 : i32, i32
  }
  func.func @transform_2(%arg0: i32, %arg1: i32) -> (i32, i32) {
    %c0_i32 = arith.constant 0 : i32
    %c0_i32_0 = arith.constant 0 : i32
    return %arg0, %c0_i32 : i32, i32
  }
  func.func @transform_3(%arg0: i32, %arg1: i32) -> (i32, i32, i32) {
    %c0_i32 = arith.constant 0 : i32
    %c0_i32_0 = arith.constant 0 : i32
    %c0_i32_1 = arith.constant 0 : i32
    return %arg1, %c0_i32, %c0_i32_0 : i32, i32, i32
  }
  func.func @transform_4(%arg0: i32, %arg1: i32) -> (i32, i32, i32) {
    %c0_i32 = arith.constant 0 : i32
    %c0_i32_0 = arith.constant 0 : i32
    %c0_i32_1 = arith.constant 0 : i32
    return %arg1, %c0_i32, %c0_i32_0 : i32, i32, i32
  }
  func.func @transform_5(%arg0: i32, %arg1: i32) -> (i32, i32, i32) {
    %c0_i32 = arith.constant 0 : i32
    %c0_i32_0 = arith.constant 0 : i32
    %c0_i32_1 = arith.constant 0 : i32
    return %arg1, %c0_i32, %c0_i32_0 : i32, i32, i32
  }
  func.func @transform_6(%arg0: i32, %arg1: i32) -> (i32, i32, i32) {
    %c0_i32 = arith.constant 0 : i32
    %c0_i32_0 = arith.constant 0 : i32
    %c0_i32_1 = arith.constant 0 : i32
    return %arg1, %c0_i32, %c0_i32_0 : i32, i32, i32
  }
  func.func @transform_7(%arg0: i32, %arg1: i32) -> (i32, i32, i32) {
    %c0_i32 = arith.constant 0 : i32
    %c0_i32_0 = arith.constant 0 : i32
    %c0_i32_1 = arith.constant 0 : i32
    return %arg1, %c0_i32, %c0_i32_0 : i32, i32, i32
  }
  func.func @transform_8(%arg0: i32, %arg1: i32) -> (i32, i32, i32) {
    %c0_i32 = arith.constant 0 : i32
    %c0_i32_0 = arith.constant 0 : i32
    %c0_i32_1 = arith.constant 0 : i32
    return %arg1, %c0_i32, %c0_i32_0 : i32, i32, i32
  }
  func.func @transform_9(%arg0: i32, %arg1: i32) -> (i32, i32, i32) {
    %c0_i32 = arith.constant 0 : i32
    %c0_i32_0 = arith.constant 0 : i32
    %c0_i32_1 = arith.constant 0 : i32
    return %arg1, %c0_i32, %c0_i32_0 : i32, i32, i32
  }
  func.func @transform_10(%arg0: i32, %arg1: i32) -> (i32, i32, i32) {
    %c0_i32 = arith.constant 0 : i32
    %c0_i32_0 = arith.constant 0 : i32
    %c0_i32_1 = arith.constant 0 : i32
    return %arg1, %c0_i32, %c0_i32_0 : i32, i32, i32
  }
  func.func @transform_11(%arg0: i32, %arg1: i32) -> (i32, i32, i32) {
    %c0_i32 = arith.constant 0 : i32
    %c0_i32_0 = arith.constant 0 : i32
    %c0_i32_1 = arith.constant 0 : i32
    return %arg1, %c0_i32, %c0_i32_0 : i32, i32, i32
  }
  func.func @transform_12(%arg0: i32, %arg1: i32) -> (i32, i32, i32) {
    %c0_i32 = arith.constant 0 : i32
    %c0_i32_0 = arith.constant 0 : i32
    %c0_i32_1 = arith.constant 0 : i32
    return %arg1, %c0_i32, %c0_i32_0 : i32, i32, i32
  }
  func.func @transform_13(%arg0: i32, %arg1: i32) -> (i32, i32, i32) {
    %c0_i32 = arith.constant 0 : i32
    %c0_i32_0 = arith.constant 0 : i32
    %c0_i32_1 = arith.constant 0 : i32
    return %arg1, %c0_i32, %c0_i32_0 : i32, i32, i32
  }
  func.func @transform_14(%arg0: i32, %arg1: i32) -> (i32, i32, i32) {
    %c0_i32 = arith.constant 0 : i32
    %c0_i32_0 = arith.constant 0 : i32
    %c0_i32_1 = arith.constant 0 : i32
    return %arg1, %c0_i32, %c0_i32_0 : i32, i32, i32
  }
  func.func @transform_15(%arg0: i32, %arg1: i32) -> (i32, i32) {
    %c0_i32 = arith.constant 0 : i32
    %c0_i32_0 = arith.constant 0 : i32
    %c0_i32_1 = arith.constant 0 : i32
    return %c0_i32, %c0_i32_0 : i32, i32
  }
  func.func @transform_16(%arg0: i32, %arg1: i32) -> (i32, i32) {
    %c0_i32 = arith.constant 0 : i32
    %c0_i32_0 = arith.constant 0 : i32
    %c0_i32_1 = arith.constant 0 : i32
    return %c0_i32, %c0_i32_0 : i32, i32
  }
  func.func @transform_17(%arg0: i32, %arg1: i32) -> (i32, i32) {
    %c0_i32 = arith.constant 0 : i32
    %c0_i32_0 = arith.constant 0 : i32
    return %arg0, %c0_i32 : i32, i32
  }
}

</mosaic_0001>

<llo_original>
// kernel: tpu_custom_call.1
$region0: #{tpu_custom_call.1}
  #allocation0 [shape = 'u32[]', space=smem, size = 0x4, offset = 0x4, fixed_abs, tag = 'smem constant byte address 0x4 - core index']
  #allocation1 [shape = 'u32[144,128]{1,0:T(1,128)}', space=vmem, size = 0x12000, scoped, tag = 'internal scratch']
  %s0 = inlined_call_operand.hbm [shape: f32[32,64], index: 0, kind: input, shape index: {}]
  %s1 = inlined_call_operand.hbm [shape: f32[64,128], index: 1, kind: input, shape index: {}]
  %s2 = inlined_call_operand.hbm [shape: f32[32,128], index: 2, kind: input, shape index: {}]
  %s3 = inlined_call_operand.vmem [shape: f32[2,1,128], index: 3, kind: input, shape index: {}]
  %s4 = inlined_call_operand.hbm [shape: f32[2,1,128], index: 4, kind: input, shape index: {}]
  %s5 = inlined_call_operand.hbm [shape: f32[2,128,384], index: 5, kind: input, shape index: {}]
  %s6 = inlined_call_operand.vmem [shape: f32[2,1,384], index: 6, kind: input, shape index: {}]
  %s7 = inlined_call_operand.hbm [shape: f32[2,128,128], index: 7, kind: input, shape index: {}]
  %s8 = inlined_call_operand.hbm [shape: f32[2,1,128], index: 8, kind: input, shape index: {}]
  %s9 = inlined_call_operand.hbm [shape: f32[2,1,128], index: 9, kind: input, shape index: {}]
  %s10 = inlined_call_operand.vmem [shape: f32[2,1,128], index: 10, kind: input, shape index: {}]
  %s11 = inlined_call_operand.hbm [shape: f32[2,128,512], index: 11, kind: input, shape index: {}]
  %s12 = inlined_call_operand.vmem [shape: f32[2,1,512], index: 12, kind: input, shape index: {}]
  %s13 = inlined_call_operand.hbm [shape: f32[2,512,128], index: 13, kind: input, shape index: {}]
  %s14 = inlined_call_operand.vmem [shape: f32[2,1,128], index: 14, kind: input, shape index: {}]
  %s15 = inlined_call_operand.vmem [shape: f32[1,128], index: 15, kind: input, shape index: {}]
  %s16 = inlined_call_operand.vmem [shape: f32[1,128], index: 16, kind: input, shape index: {}]
  %s17 = inlined_call_operand.hbm [shape: f32[32,128], index: 17, kind: output, shape index: {}]
  %s18 = sld [smem:[#allocation0]]
  $region149: #{tpu_custom_call.1} parent=0
    _
  %s20 = ssub.s32 1, %s18
  %s21 = scalar_select 0, %s20, %s18
  $region1: #{tpu_custom_call.1} parent=0
    #allocation2 [shape = 'u8[16384]{0}', space=vmem, size = 0x4000, scoped, tag = 'input window, operand 0']
    #allocation3 [shape = 's32[2]{0}', space=sflag, size = 0x8, scoped, tag = 'scoped memory for tpu_custom_call.1']
    #allocation4 [shape = 's32[2]{0}', space=sflag, size = 0x8, scoped, tag = 'scoped memory for tpu_custom_call.1']
    #allocation5 [shape = 'u8[32768]{0}', space=vmem, size = 0x8000, scoped, tag = 'input window, operand 1, single buffered']
    #allocation6 [shape = 's32[1]{0}', space=sflag, size = 0x4, scoped, tag = 'scoped memory for tpu_custom_call.1']
    #allocation7 [shape = 'u8[16384]{0}', space=vmem, size = 0x4000, scoped, tag = 'input window, operand 2']
    #allocation8 [shape = 'u8[1024]{0}', space=vmem, size = 0x400, scoped, tag = 'input window, operand 4']
    #allocation9 [shape = 'u8[393216]{0}', space=vmem, size = 0x60000, scoped, tag = 'input window, operand 5']
    #allocation10 [shape = 'u8[131072]{0}', space=vmem, size = 0x20000, scoped, tag = 'input window, operand 7']
    #allocation11 [shape = 'u8[1024]{0}', space=vmem, size = 0x400, scoped, tag = 'input window, operand 8']
    #allocation12 [shape = 'u8[1024]{0}', space=vmem, size = 0x400, scoped, tag = 'input window, operand 9']
    #allocation13 [shape = 'u8[524288]{0}', space=vmem, size = 0x80000, scoped, tag = 'input window, operand 11']
    #allocation14 [shape = 'u8[524288]{0}', space=vmem, size = 0x80000, scoped, tag = 'input window, operand 13']
    #allocation15 [shape = 'u8[16384]{0}', space=vmem, size = 0x4000, scoped, tag = 'output window, operand 0']
    %22 = vsyncpa [#allocation3], 0
    %s23 = scalar_lea.sflag [#allocation3], 1
    %24 = vsyncpa %s23, 0
    %25 = vsyncpa [#allocation6], 0
    %26 = vsyncpa [#allocation4], 0
    %s27 = scalar_lea.sflag [#allocation4], 1
    %28 = vsyncpa %s27, 0
    loop: start=0, step=1, limit=6
    $region2: #{tpu_custom_call.1} parent=1 // loop_pre_header
      _
    $region3: #{tpu_custom_call.1} parent=1 // loop_header
      %s30 = sphi 0, %s34
      %p31 = scmp.ge.s32.totalorder %s30, 6
      %s37 = sphi 0, %s49
      %s38 = sphi 0, %s45
      %s39 = sphi 0, %s37
      %s40 = sphi 0, %s38
      %s41 = sphi 0, %s39
      %s42 = sphi 0, %s40
      %s52 = sphi 0, %s54
      %s55 = sphi 0, %s52
      %s56 = sphi 0, %s55
      %s72 = sphi 0, %s56
      %s76 = sphi 0, %s76
      %s78 = sphi 0, %s76
      %s79 = sphi 0, %s78
      %s93 = sphi 0, %s79
      %s99 = sphi 0, %s101
      %s102 = sphi 0, %s99
      %s103 = sphi 0, %s102
      %s119 = sphi 0, %s103
      %s125 = sphi 0, %s127
      %s128 = sphi 0, %s125
      %s129 = sphi 0, %s128
      %s145 = sphi 0, %s129
      %s151 = sphi 0, %s153
      %s154 = sphi 0, %s151
      %s155 = sphi 0, %s154
      %s171 = sphi 0, %s155
      %s177 = sphi 0, %s179
      %s180 = sphi 0, %s177
      %s181 = sphi 0, %s180
      %s197 = sphi 0, %s181
      %s203 = sphi 0, %s205
      %s206 = sphi 0, %s203
      %s207 = sphi 0, %s206
      %s223 = sphi 0, %s207
      %s229 = sphi 0, %s231
      %s232 = sphi 0, %s229
      %s233 = sphi 0, %s232
      %s249 = sphi 0, %s233
      %s255 = sphi 0, %s257
      %s258 = sphi 0, %s255
      %s259 = sphi 0, %s258
      %s275 = sphi 0, %s259
      %s281 = sphi 0, %s283
      %s284 = sphi 0, %s281
      %s285 = sphi 0, %s284
      %s301 = sphi 0, %s285
      %s307 = sphi 0, %s309
      %s310 = sphi 0, %s307
      %s311 = sphi 0, %s310
      %s327 = sphi 0, %s311
      %s333 = sphi 0, %s335
      %s336 = sphi 0, %s333
      %s337 = sphi 0, %s336
      %s353 = sphi 0, %s337
      %s359 = sphi 0, %s361
      %s362 = sphi 0, %s359
      %s363 = sphi 0, %s362
      %s379 = sphi 0, %s363
      %s385 = sphi 0, %s387
      %s388 = sphi 0, %s385
      %s389 = sphi 0, %s388
      %s405 = sphi 0, %s389
      %s411 = sphi 0, %s413
      %s414 = sphi 0, %s411
      %s415 = sphi 0, %s414
      %s431 = sphi 0, %s415
      %s435 = sphi 0, %s435
      %s437 = sphi 0, %s435
      %s438 = sphi 0, %s437
      %s452 = sphi 0, %s438
      %s456 = sphi 0, %s456
      %s458 = sphi 0, %s456
      %s459 = sphi 0, %s458
      %s473 = sphi 0, %s459
      %s479 = sphi 0, %s481
      %s482 = sphi 0, %s479
      %s483 = sphi 0, %s482
      %s499 = sphi 0, %s483
    $region4: #{tpu_custom_call.1} parent=1 // loop_header_branch
      %33 = sbr.rel (%p31) target = $region8
    $region5: #{tpu_custom_call.1} parent=1 // loop_body
      %s35 = ssub.s32 %s30, 1
      %s36 = ssub.s32 %s30, 2
      %s43 = sadd.s32 1, %s38
      %p44 = scmp.ge.s32.totalorder %s43, 2
      %s45 = scalar_select %p44, 0, %s43
      %s46 = sadd.s32 1, %s37
      %s47 = scalar_select %p44, %s46, %s37
      %p48 = scmp.ge.s32.totalorder %s47, 2
      %s49 = scalar_select %p48, 0, %s47
      %s50 = ssub.s32 %s37, %s49
      %p51 = scmp.eq.s32.totalorder %s50, 0
      %s53 = sadd.s32 %s52, 1
      %s54 = scalar_select %p51, %s52, %s53
      %p57 = pneg %p51
      %p58 = scmp.eq.s32.totalorder %s30, 3
      %p59 = por %p57, %p58
      %p60 = scmp.ne.s32.totalorder %s52, %s55
      %p61 = scmp.eq.s32.totalorder %s30, 0
      %p62 = por %p60, %p61
      %p63 = scmp.ne.s32.totalorder %s52, %s55
      %p64 = scmp.eq.s32.totalorder %s35, 3
      %p65 = por %p63, %p64
      %p66 = scmp.ne.s32.totalorder %s55, %s56
      %p67 = scmp.eq.s32.totalorder %s35, 0
      %p68 = por %p66, %p67
      %p69 = scmp.ne.s32.totalorder %s55, %s56
      %p70 = scmp.eq.s32.totalorder %s36, 3
      %p71 = por %p69, %p70
      %p73 = scmp.ne.s32.totalorder %s56, %s72
      %p74 = scmp.eq.s32.totalorder %s36, 0
      %p75 = por %p73, %p74
      %s77 = sadd.s32 %s76, 1
      %p80 = scmp.eq.s32.totalorder %s30, 3
      %p81 = scmp.ne.s32.totalorder %s76, %s78
      %p82 = scmp.eq.s32.totalorder %s30, 0
      %p83 = por %p81, %p82
      %p84 = scmp.ne.s32.totalorder %s76, %s78
      %p85 = scmp.eq.s32.totalorder %s35, 3
      %p86 = por %p84, %p85
      %p87 = scmp.ne.s32.totalorder %s78, %s79
      %p88 = scmp.eq.s32.totalorder %s35, 0
      %p89 = por %p87, %p88
      %p90 = scmp.ne.s32.totalorder %s78, %s79
      %p91 = scmp.eq.s32.totalorder %s36, 3
      %p92 = por %p90, %p91
      %p94 = scmp.ne.s32.totalorder %s79, %s93
      %p95 = scmp.eq.s32.totalorder %s36, 0
      %p96 = por %p94, %p95
      %s97 = ssub.s32 %s37, %s49
      %p98 = scmp.eq.s32.totalorder %s97, 0
      %s100 = sadd.s32 %s99, 1
      %s101 = scalar_select %p98, %s99, %s100
      %p104 = pneg %p98
      %p105 = scmp.eq.s32.totalorder %s30, 3
      %p106 = por %p104, %p105
      %p107 = scmp.ne.s32.totalorder %s99, %s102
      %p108 = scmp.eq.s32.totalorder %s30, 0
      %p109 = por %p107, %p108
      %p110 = scmp.ne.s32.totalorder %s99, %s102
      %p111 = scmp.eq.s32.totalorder %s35, 3
      %p112 = por %p110, %p111
      %p113 = scmp.ne.s32.totalorder %s102, %s103
      %p114 = scmp.eq.s32.totalorder %s35, 0
      %p115 = por %p113, %p114
      %p116 = scmp.ne.s32.totalorder %s102, %s103
      %p117 = scmp.eq.s32.totalorder %s36, 3
      %p118 = por %p116, %p117
      %p120 = scmp.ne.s32.totalorder %s103, %s119
      %p121 = scmp.eq.s32.totalorder %s36, 0
      %p122 = por %p120, %p121
      %s123 = ssub.s32 %s38, %s45
      %p124 = scmp.eq.s32.totalorder %s123, 0
      %s126 = sadd.s32 %s125, 1
      %s127 = scalar_select %p124, %s125, %s126
      %p130 = pneg %p124
      %p131 = scmp.eq.s32.totalorder %s30, 3
      %p132 = por %p130, %p131
      %p133 = scmp.ne.s32.totalorder %s125, %s128
      %p134 = scmp.eq.s32.totalorder %s30, 0
      %p135 = por %p133, %p134
      %p136 = scmp.ne.s32.totalorder %s125, %s128
      %p137 = scmp.eq.s32.totalorder %s35, 3
      %p138 = por %p136, %p137
      %p139 = scmp.ne.s32.totalorder %s128, %s129
      %p140 = scmp.eq.s32.totalorder %s35, 0
      %p141 = por %p139, %p140
      %p142 = scmp.ne.s32.totalorder %s128, %s129
      %p143 = scmp.eq.s32.totalorder %s36, 3
      %p144 = por %p142, %p143
      %p146 = scmp.ne.s32.totalorder %s129, %s145
      %p147 = scmp.eq.s32.totalorder %s36, 0
      %p148 = por %p146, %p147
      %s149 = ssub.s32 %s38, %s45
      %p150 = scmp.eq.s32.totalorder %s149, 0
      %s152 = sadd.s32 %s151, 1
      %s153 = scalar_select %p150, %s151, %s152
      %p156 = pneg %p150
      %p157 = scmp.eq.s32.totalorder %s30, 3
      %p158 = por %p156, %p157
      %p159 = scmp.ne.s32.totalorder %s151, %s154
      %p160 = scmp.eq.s32.totalorder %s30, 0
      %p161 = por %p159, %p160
      %p162 = scmp.ne.s32.totalorder %s151, %s154
      %p163 = scmp.eq.s32.totalorder %s35, 3
      %p164 = por %p162, %p163
      %p165 = scmp.ne.s32.totalorder %s154, %s155
      %p166 = scmp.eq.s32.totalorder %s35, 0
      %p167 = por %p165, %p166
      %p168 = scmp.ne.s32.totalorder %s154, %s155
      %p169 = scmp.eq.s32.totalorder %s36, 3
      %p170 = por %p168, %p169
      %p172 = scmp.ne.s32.totalorder %s155, %s171
      %p173 = scmp.eq.s32.totalorder %s36, 0
      %p174 = por %p172, %p173
      %s175 = ssub.s32 %s38, %s45
      %p176 = scmp.eq.s32.totalorder %s175, 0
      %s178 = sadd.s32 %s177, 1
      %s179 = scalar_select %p176, %s177, %s178
      %p182 = pneg %p176
      %p183 = scmp.eq.s32.totalorder %s30, 3
      %p184 = por %p182, %p183
      %p185 = scmp.ne.s32.totalorder %s177, %s180
      %p186 = scmp.eq.s32.totalorder %s30, 0
      %p187 = por %p185, %p186
      %p188 = scmp.ne.s32.totalorder %s177, %s180
      %p189 = scmp.eq.s32.totalorder %s35, 3
      %p190 = por %p188, %p189
      %p191 = scmp.ne.s32.totalorder %s180, %s181
      %p192 = scmp.eq.s32.totalorder %s35, 0
      %p193 = por %p191, %p192
      %p194 = scmp.ne.s32.totalorder %s180, %s181
      %p195 = scmp.eq.s32.totalorder %s36, 3
      %p196 = por %p194, %p195
      %p198 = scmp.ne.s32.totalorder %s181, %s197
      %p199 = scmp.eq.s32.totalorder %s36, 0
      %p200 = por %p198, %p199
      %s201 = ssub.s32 %s38, %s45
      %p202 = scmp.eq.s32.totalorder %s201, 0
      %s204 = sadd.s32 %s203, 1
      %s205 = scalar_select %p202, %s203, %s204
      %p208 = pneg %p202
      %p209 = scmp.eq.s32.totalorder %s30, 3
      %p210 = por %p208, %p209
      %p211 = scmp.ne.s32.totalorder %s203, %s206
      %p212 = scmp.eq.s32.totalorder %s30, 0
      %p213 = por %p211, %p212
      %p214 = scmp.ne.s32.totalorder %s203, %s206
      %p215 = scmp.eq.s32.totalorder %s35, 3
      %p216 = por %p214, %p215
      %p217 = scmp.ne.s32.totalorder %s206, %s207
      %p218 = scmp.eq.s32.totalorder %s35, 0
      %p219 = por %p217, %p218
      %p220 = scmp.ne.s32.totalorder %s206, %s207
      %p221 = scmp.eq.s32.totalorder %s36, 3
      %p222 = por %p220, %p221
      %p224 = scmp.ne.s32.totalorder %s207, %s223
      %p225 = scmp.eq.s32.totalorder %s36, 0
      %p226 = por %p224, %p225
      %s227 = ssub.s32 %s38, %s45
      %p228 = scmp.eq.s32.totalorder %s227, 0
      %s230 = sadd.s32 %s229, 1
      %s231 = scalar_select %p228, %s229, %s230
      %p234 = pneg %p228
      %p235 = scmp.eq.s32.totalorder %s30, 3
      %p236 = por %p234, %p235
      %p237 = scmp.ne.s32.totalorder %s229, %s232
      %p238 = scmp.eq.s32.totalorder %s30, 0
      %p239 = por %p237, %p238
      %p240 = scmp.ne.s32.totalorder %s229, %s232
      %p241 = scmp.eq.s32.totalorder %s35, 3
      %p242 = por %p240, %p241
      %p243 = scmp.ne.s32.totalorder %s232, %s233
      %p244 = scmp.eq.s32.totalorder %s35, 0
      %p245 = por %p243, %p244
      %p246 = scmp.ne.s32.totalorder %s232, %s233
      %p247 = scmp.eq.s32.totalorder %s36, 3
      %p248 = por %p246, %p247
      %p250 = scmp.ne.s32.totalorder %s233, %s249
      %p251 = scmp.eq.s32.totalorder %s36, 0
      %p252 = por %p250, %p251
      %s253 = ssub.s32 %s38, %s45
      %p254 = scmp.eq.s32.totalorder %s253, 0
      %s256 = sadd.s32 %s255, 1
      %s257 = scalar_select %p254, %s255, %s256
      %p260 = pneg %p254
      %p261 = scmp.eq.s32.totalorder %s30, 3
      %p262 = por %p260, %p261
      %p263 = scmp.ne.s32.totalorder %s255, %s258
      %p264 = scmp.eq.s32.totalorder %s30, 0
      %p265 = por %p263, %p264
      %p266 = scmp.ne.s32.totalorder %s255, %s258
      %p267 = scmp.eq.s32.totalorder %s35, 3
      %p268 = por %p266, %p267
      %p269 = scmp.ne.s32.totalorder %s258, %s259
      %p270 = scmp.eq.s32.totalorder %s35, 0
      %p271 = por %p269, %p270
      %p272 = scmp.ne.s32.totalorder %s258, %s259
      %p273 = scmp.eq.s32.totalorder %s36, 3
      %p274 = por %p272, %p273
      %p276 = scmp.ne.s32.totalorder %s259, %s275
      %p277 = scmp.eq.s32.totalorder %s36, 0
      %p278 = por %p276, %p277
      %s279 = ssub.s32 %s38, %s45
      %p280 = scmp.eq.s32.totalorder %s279, 0
      %s282 = sadd.s32 %s281, 1
      %s283 = scalar_select %p280, %s281, %s282
      %p286 = pneg %p280
      %p287 = scmp.eq.s32.totalorder %s30, 3
      %p288 = por %p286, %p287
      %p289 = scmp.ne.s32.totalorder %s281, %s284
      %p290 = scmp.eq.s32.totalorder %s30, 0
      %p291 = por %p289, %p290
      %p292 = scmp.ne.s32.totalorder %s281, %s284
      %p293 = scmp.eq.s32.totalorder %s35, 3
      %p294 = por %p292, %p293
      %p295 = scmp.ne.s32.totalorder %s284, %s285
      %p296 = scmp.eq.s32.totalorder %s35, 0
      %p297 = por %p295, %p296
      %p298 = scmp.ne.s32.totalorder %s284, %s285
      %p299 = scmp.eq.s32.totalorder %s36, 3
      %p300 = por %p298, %p299
      %p302 = scmp.ne.s32.totalorder %s285, %s301
      %p303 = scmp.eq.s32.totalorder %s36, 0
      %p304 = por %p302, %p303
      %s305 = ssub.s32 %s38, %s45
      %p306 = scmp.eq.s32.totalorder %s305, 0
      %s308 = sadd.s32 %s307, 1
      %s309 = scalar_select %p306, %s307, %s308
      %p312 = pneg %p306
      %p313 = scmp.eq.s32.totalorder %s30, 3
      %p314 = por %p312, %p313
      %p315 = scmp.ne.s32.totalorder %s307, %s310
      %p316 = scmp.eq.s32.totalorder %s30, 0
      %p317 = por %p315, %p316
      %p318 = scmp.ne.s32.totalorder %s307, %s310
      %p319 = scmp.eq.s32.totalorder %s35, 3
      %p320 = por %p318, %p319
      %p321 = scmp.ne.s32.totalorder %s310, %s311
      %p322 = scmp.eq.s32.totalorder %s35, 0
      %p323 = por %p321, %p322
      %p324 = scmp.ne.s32.totalorder %s310, %s311
      %p325 = scmp.eq.s32.totalorder %s36, 3
      %p326 = por %p324, %p325
      %p328 = scmp.ne.s32.totalorder %s311, %s327
      %p329 = scmp.eq.s32.totalorder %s36, 0
      %p330 = por %p328, %p329
      %s331 = ssub.s32 %s38, %s45
      %p332 = scmp.eq.s32.totalorder %s331, 0
      %s334 = sadd.s32 %s333, 1
      %s335 = scalar_select %p332, %s333, %s334
      %p338 = pneg %p332
      %p339 = scmp.eq.s32.totalorder %s30, 3
      %p340 = por %p338, %p339
      %p341 = scmp.ne.s32.totalorder %s333, %s336
      %p342 = scmp.eq.s32.totalorder %s30, 0
      %p343 = por %p341, %p342
      %p344 = scmp.ne.s32.totalorder %s333, %s336
      %p345 = scmp.eq.s32.totalorder %s35, 3
      %p346 = por %p344, %p345
      %p347 = scmp.ne.s32.totalorder %s336, %s337
      %p348 = scmp.eq.s32.totalorder %s35, 0
      %p349 = por %p347, %p348
      %p350 = scmp.ne.s32.totalorder %s336, %s337
      %p351 = scmp.eq.s32.totalorder %s36, 3
      %p352 = por %p350, %p351
      %p354 = scmp.ne.s32.totalorder %s337, %s353
      %p355 = scmp.eq.s32.totalorder %s36, 0
      %p356 = por %p354, %p355
      %s357 = ssub.s32 %s38, %s45
      %p358 = scmp.eq.s32.totalorder %s357, 0
      %s360 = sadd.s32 %s359, 1
      %s361 = scalar_select %p358, %s359, %s360
      %p364 = pneg %p358
      %p365 = scmp.eq.s32.totalorder %s30, 3
      %p366 = por %p364, %p365
      %p367 = scmp.ne.s32.totalorder %s359, %s362
      %p368 = scmp.eq.s32.totalorder %s30, 0
      %p369 = por %p367, %p368
      %p370 = scmp.ne.s32.totalorder %s359, %s362
      %p371 = scmp.eq.s32.totalorder %s35, 3
      %p372 = por %p370, %p371
      %p373 = scmp.ne.s32.totalorder %s362, %s363
      %p374 = scmp.eq.s32.totalorder %s35, 0
      %p375 = por %p373, %p374
      %p376 = scmp.ne.s32.totalorder %s362, %s363
      %p377 = scmp.eq.s32.totalorder %s36, 3
      %p378 = por %p376, %p377
      %p380 = scmp.ne.s32.totalorder %s363, %s379
      %p381 = scmp.eq.s32.totalorder %s36, 0
      %p382 = por %p380, %p381
      %s383 = ssub.s32 %s38, %s45
      %p384 = scmp.eq.s32.totalorder %s383, 0
      %s386 = sadd.s32 %s385, 1
      %s387 = scalar_select %p384, %s385, %s386
      %p390 = pneg %p384
      %p391 = scmp.eq.s32.totalorder %s30, 3
      %p392 = por %p390, %p391
      %p393 = scmp.ne.s32.totalorder %s385, %s388
      %p394 = scmp.eq.s32.totalorder %s30, 0
      %p395 = por %p393, %p394
      %p396 = scmp.ne.s32.totalorder %s385, %s388
      %p397 = scmp.eq.s32.totalorder %s35, 3
      %p398 = por %p396, %p397
      %p399 = scmp.ne.s32.totalorder %s388, %s389
      %p400 = scmp.eq.s32.totalorder %s35, 0
      %p401 = por %p399, %p400
      %p402 = scmp.ne.s32.totalorder %s388, %s389
      %p403 = scmp.eq.s32.totalorder %s36, 3
      %p404 = por %p402, %p403
      %p406 = scmp.ne.s32.totalorder %s389, %s405
      %p407 = scmp.eq.s32.totalorder %s36, 0
      %p408 = por %p406, %p407
      %s409 = ssub.s32 %s38, %s45
      %p410 = scmp.eq.s32.totalorder %s409, 0
      %s412 = sadd.s32 %s411, 1
      %s413 = scalar_select %p410, %s411, %s412
      %p416 = pneg %p410
      %p417 = scmp.eq.s32.totalorder %s30, 3
      %p418 = por %p416, %p417
      %p419 = scmp.ne.s32.totalorder %s411, %s414
      %p420 = scmp.eq.s32.totalorder %s30, 0
      %p421 = por %p419, %p420
      %p422 = scmp.ne.s32.totalorder %s411, %s414
      %p423 = scmp.eq.s32.totalorder %s35, 3
      %p424 = por %p422, %p423
      %p425 = scmp.ne.s32.totalorder %s414, %s415
      %p426 = scmp.eq.s32.totalorder %s35, 0
      %p427 = por %p425, %p426
      %p428 = scmp.ne.s32.totalorder %s414, %s415
      %p429 = scmp.eq.s32.totalorder %s36, 3
      %p430 = por %p428, %p429
      %p432 = scmp.ne.s32.totalorder %s415, %s431
      %p433 = scmp.eq.s32.totalorder %s36, 0
      %p434 = por %p432, %p433
      %s436 = sadd.s32 %s435, 1
      %p439 = scmp.eq.s32.totalorder %s30, 3
      %p440 = scmp.ne.s32.totalorder %s435, %s437
      %p441 = scmp.eq.s32.totalorder %s30, 0
      %p442 = por %p440, %p441
      %p443 = scmp.ne.s32.totalorder %s435, %s437
      %p444 = scmp.eq.s32.totalorder %s35, 3
      %p445 = por %p443, %p444
      %p446 = scmp.ne.s32.totalorder %s437, %s438
      %p447 = scmp.eq.s32.totalorder %s35, 0
      %p448 = por %p446, %p447
      %p449 = scmp.ne.s32.totalorder %s437, %s438
      %p450 = scmp.eq.s32.totalorder %s36, 3
      %p451 = por %p449, %p450
      %p453 = scmp.ne.s32.totalorder %s438, %s452
      %p454 = scmp.eq.s32.totalorder %s36, 0
      %p455 = por %p453, %p454
      %s457 = sadd.s32 %s456, 1
      %p460 = scmp.eq.s32.totalorder %s30, 3
      %p461 = scmp.ne.s32.totalorder %s456, %s458
      %p462 = scmp.eq.s32.totalorder %s30, 0
      %p463 = por %p461, %p462
      %p464 = scmp.ne.s32.totalorder %s456, %s458
      %p465 = scmp.eq.s32.totalorder %s35, 3
      %p466 = por %p464, %p465
      %p467 = scmp.ne.s32.totalorder %s458, %s459
      %p468 = scmp.eq.s32.totalorder %s35, 0
      %p469 = por %p467, %p468
      %p470 = scmp.ne.s32.totalorder %s458, %s459
      %p471 = scmp.eq.s32.totalorder %s36, 3
      %p472 = por %p470, %p471
      %p474 = scmp.ne.s32.totalorder %s459, %s473
      %p475 = scmp.eq.s32.totalorder %s36, 0
      %p476 = por %p474, %p475
      %s477 = ssub.s32 %s37, %s49
      %p478 = scmp.eq.s32.totalorder %s477, 0
      %s480 = sadd.s32 %s479, 1
      %s481 = scalar_select %p478, %s479, %s480
      %p484 = pneg %p478
      %p485 = scmp.eq.s32.totalorder %s30, 3
      %p486 = por %p484, %p485
      %p487 = scmp.ne.s32.totalorder %s479, %s482
      %p488 = scmp.eq.s32.totalorder %s30, 0
      %p489 = por %p487, %p488
      %p490 = scmp.ne.s32.totalorder %s479, %s482
      %p491 = scmp.eq.s32.totalorder %s35, 3
      %p492 = por %p490, %p491
      %p493 = scmp.ne.s32.totalorder %s482, %s483
      %p494 = scmp.eq.s32.totalorder %s35, 0
      %p495 = por %p493, %p494
      %p496 = scmp.ne.s32.totalorder %s482, %s483
      %p497 = scmp.eq.s32.totalorder %s36, 3
      %p498 = por %p496, %p497
      %p500 = scmp.ne.s32.totalorder %s483, %s499
      %p501 = scmp.eq.s32.totalorder %s36, 0
      %p502 = por %p500, %p501
      %p503 = scmp.le.s32.totalorder 1, %s30
      %p504 = scmp.lt.s32.totalorder %s30, 5
      %p505 = pnand %p503, %p504
      %p506 = pneg %p505
      // Predicated region
      $region9: #{tpu_custom_call.1} parent=5 // pred_check
        _
      $region10: #{tpu_custom_call.1} parent=5 // pred_check_branch
        %508 = sbr.rel (%p505) target = $region12
      $region11: #{tpu_custom_call.1} parent=5 // pred_region
        %s509 = ssub.s32 %s30, 1
        // Predicated region
        $region13: #{tpu_custom_call.1} parent=11 // pred_check
          %p510 = pneg %p89
        $region14: #{tpu_custom_call.1} parent=11 // pred_check_branch
          %512 = sbr.rel (%p510) target = $region16
        $region15: #{tpu_custom_call.1} parent=11 // pred_region
          %s514 = ssub.s32 1024, 1024
          %515 = vsyncadd [#allocation6], %s514
          %s516 = sshll.u32 [#allocation5], 4
          %s517 = int_to_ptr.vmem [resolvable:$true] %s516
          %522 = dma.hbm_to_vmem [thread:$0]  %s1, 1024, %s517, [#allocation6], 128, 128, 8
        $region16: #{tpu_custom_call.1} parent=11 // pred_fallthru
          _
        // Predicated region
        $region17: #{tpu_custom_call.1} parent=11 // pred_check
          %p523 = pneg %p448
        $region18: #{tpu_custom_call.1} parent=11 // pred_check_branch
          %525 = sbr.rel (%p523) target = $region20
        $region19: #{tpu_custom_call.1} parent=11 // pred_region
          _
        $region20: #{tpu_custom_call.1} parent=11 // pred_fallthru
          _
        // Predicated region
        $region21: #{tpu_custom_call.1} parent=11 // pred_check
          %p526 = pneg %p469
        $region22: #{tpu_custom_call.1} parent=11 // pred_check_branch
          %528 = sbr.rel (%p526) target = $region24
        $region23: #{tpu_custom_call.1} parent=11 // pred_region
          _
        $region24: #{tpu_custom_call.1} parent=11 // pred_fallthru
          _
      $region12: #{tpu_custom_call.1} parent=5 // pred_fallthru
        _
      %p529 = scmp.lt.s32.totalorder %s30, 4
      // Predicated region
      $region25: #{tpu_custom_call.1} parent=5 // pred_check
        %p530 = pneg %p529
      $region26: #{tpu_custom_call.1} parent=5 // pred_check_branch
        %532 = sbr.rel (%p530) target = $region28
      $region27: #{tpu_custom_call.1} parent=5 // pred_region
        // Predicated region
        $region29: #{tpu_custom_call.1} parent=27 // pred_check
          %p533 = pneg %p62
        $region30: #{tpu_custom_call.1} parent=27 // pred_check_branch
          %535 = sbr.rel (%p533) target = $region32
        $region31: #{tpu_custom_call.1} parent=27 // pred_region
          %s536 = sand.u32 %s30, 1
          %s537 = scalar_lea.sflag [#allocation3], %s536
          %s538 = sand.u32 %s52, 1
          %s539 = smul.addr %s538, 16
          %s540 = scalar_lea.vmem [#allocation2], %s539
          %s541 = smul.u32 2, %s37
          %s543 = ssub.s32 256, 256
          %544 = vsyncadd %s537, %s543
          %s545 = smul.addr %s541, 128
          %s546 = scalar_lea.hbm %s0, %s545
          %s547 = sshll.u32 %s540, 4
          %s548 = int_to_ptr.vmem [resolvable:$true] %s547
          %553 = dma.hbm_to_vmem [thread:$0]  %s546, 256, %s548, %s537, 128, 128, 8
        $region32: #{tpu_custom_call.1} parent=27 // pred_fallthru
          _
        // Predicated region
        $region33: #{tpu_custom_call.1} parent=27 // pred_check
          %p554 = pneg %p109
        $region34: #{tpu_custom_call.1} parent=27 // pred_check_branch
          %556 = sbr.rel (%p554) target = $region36
        $region35: #{tpu_custom_call.1} parent=27 // pred_region
          %s557 = sand.u32 %s30, 1
          %s558 = scalar_lea.sflag [#allocation3], %s557
          %s559 = sand.u32 %s99, 1
          %s560 = smul.addr %s559, 16
          %s561 = scalar_lea.vmem [#allocation7], %s560
          %s562 = smul.u32 2, %s37
          %s564 = ssub.s32 256, 256
          %565 = vsyncadd %s558, %s564
          %s566 = smul.addr %s562, 128
          %s567 = scalar_lea.hbm %s2, %s566
          %s568 = sshll.u32 %s561, 4
          %s569 = int_to_ptr.vmem [resolvable:$true] %s568
          %574 = dma.hbm_to_vmem [thread:$0]  %s567, 256, %s569, %s558, 128, 128, 8
        $region36: #{tpu_custom_call.1} parent=27 // pred_fallthru
          _
        // Predicated region
        $region37: #{tpu_custom_call.1} parent=27 // pred_check
          %p575 = pneg %p135
        $region38: #{tpu_custom_call.1} parent=27 // pred_check_branch
          %577 = sbr.rel (%p575) target = $region40
        $region39: #{tpu_custom_call.1} parent=27 // pred_region
          %p578 = scmp.lt.s32.totalorder %s38, 1
          %s579 = scalar_select %p578, %s38, 1
          %s580 = scalar_lea.vmem %s3, %s579
        $region40: #{tpu_custom_call.1} parent=27 // pred_fallthru
          _
        // Predicated region
        $region41: #{tpu_custom_call.1} parent=27 // pred_check
          %p581 = pneg %p161
        $region42: #{tpu_custom_call.1} parent=27 // pred_check_branch
          %583 = sbr.rel (%p581) target = $region44
        $region43: #{tpu_custom_call.1} parent=27 // pred_region
          %s584 = sand.u32 %s30, 1
          %s585 = scalar_lea.sflag [#allocation3], %s584
          %s586 = sand.u32 %s151, 1
          %s587 = scalar_lea.vmem [#allocation8], %s586
          %s589 = ssub.s32 16, 16
          %590 = vsyncadd %s585, %s589
          %s591 = smul.addr %s38, 16
          %s592 = scalar_lea.hbm %s4, %s591
          %s594 = sshll.u32 %s587, 4
          %s595 = int_to_ptr.vmem [resolvable:$true] %s594
          %597 = dma.hbm_to_vmem [thread:$0]  %s592, 16, %s595, %s585
        $region44: #{tpu_custom_call.1} parent=27 // pred_fallthru
          _
        // Predicated region
        $region45: #{tpu_custom_call.1} parent=27 // pred_check
          %p598 = pneg %p187
        $region46: #{tpu_custom_call.1} parent=27 // pred_check_branch
          %600 = sbr.rel (%p598) target = $region48
        $region47: #{tpu_custom_call.1} parent=27 // pred_region
          %s601 = sand.u32 %s30, 1
          %s602 = scalar_lea.sflag [#allocation3], %s601
          %s603 = sand.u32 %s177, 1
          %s604 = smul.addr %s603, 384
          %s605 = scalar_lea.vmem [#allocation9], %s604
          %s607 = ssub.s32 6144, 6144
          %608 = vsyncadd %s602, %s607
          %s609 = smul.addr %s38, 48
          %s610 = smul.addr %s609, 128
          %s611 = scalar_lea.hbm %s5, %s610
          %s612 = sshll.u32 %s605, 4
          %s613 = int_to_ptr.vmem [resolvable:$true] %s612
          %618 = dma.hbm_to_vmem [thread:$0]  %s611, 6144, %s613, %s602, 384, 384, 24
        $region48: #{tpu_custom_call.1} parent=27 // pred_fallthru
          _
        // Predicated region
        $region49: #{tpu_custom_call.1} parent=27 // pred_check
          %p619 = pneg %p213
        $region50: #{tpu_custom_call.1} parent=27 // pred_check_branch
          %621 = sbr.rel (%p619) target = $region52
        $region51: #{tpu_custom_call.1} parent=27 // pred_region
          %p622 = scmp.lt.s32.totalorder %s38, 1
          %s623 = scalar_select %p622, %s38, 1
          %s624 = smul.addr %s623, 3
          %s625 = scalar_lea.vmem %s6, %s624
        $region52: #{tpu_custom_call.1} parent=27 // pred_fallthru
          _
        // Predicated region
        $region53: #{tpu_custom_call.1} parent=27 // pred_check
          %p626 = pneg %p239
        $region54: #{tpu_custom_call.1} parent=27 // pred_check_branch
          %628 = sbr.rel (%p626) target = $region56
        $region55: #{tpu_custom_call.1} parent=27 // pred_region
          %s629 = sand.u32 %s30, 1
          %s630 = scalar_lea.sflag [#allocation3], %s629
          %s631 = sand.u32 %s229, 1
          %s632 = smul.addr %s631, 128
          %s633 = scalar_lea.vmem [#allocation10], %s632
          %s635 = ssub.s32 2048, 2048
          %636 = vsyncadd %s630, %s635
          %s637 = smul.addr %s38, 16
          %s638 = smul.addr %s637, 128
          %s639 = scalar_lea.hbm %s7, %s638
          %s640 = sshll.u32 %s633, 4
          %s641 = int_to_ptr.vmem [resolvable:$true] %s640
          %646 = dma.hbm_to_vmem [thread:$0]  %s639, 2048, %s641, %s630, 128, 128, 8
        $region56: #{tpu_custom_call.1} parent=27 // pred_fallthru
          _
        // Predicated region
        $region57: #{tpu_custom_call.1} parent=27 // pred_check
          %p647 = pneg %p265
        $region58: #{tpu_custom_call.1} parent=27 // pred_check_branch
          %649 = sbr.rel (%p647) target = $region60
        $region59: #{tpu_custom_call.1} parent=27 // pred_region
          %s650 = sand.u32 %s30, 1
          %s651 = scalar_lea.sflag [#allocation3], %s650
          %s652 = sand.u32 %s255, 1
          %s653 = scalar_lea.vmem [#allocation11], %s652
          %s655 = ssub.s32 16, 16
          %656 = vsyncadd %s651, %s655
          %s657 = smul.addr %s38, 16
          %s658 = scalar_lea.hbm %s8, %s657
          %s660 = sshll.u32 %s653, 4
          %s661 = int_to_ptr.vmem [resolvable:$true] %s660
          %663 = dma.hbm_to_vmem [thread:$0]  %s658, 16, %s661, %s651
        $region60: #{tpu_custom_call.1} parent=27 // pred_fallthru
          _
        // Predicated region
        $region61: #{tpu_custom_call.1} parent=27 // pred_check
          %p664 = pneg %p291
        $region62: #{tpu_custom_call.1} parent=27 // pred_check_branch
          %666 = sbr.rel (%p664) target = $region64
        $region63: #{tpu_custom_call.1} parent=27 // pred_region
          %s667 = sand.u32 %s30, 1
          %s668 = scalar_lea.sflag [#allocation3], %s667
          %s669 = sand.u32 %s281, 1
          %s670 = scalar_lea.vmem [#allocation12], %s669
          %s672 = ssub.s32 16, 16
          %673 = vsyncadd %s668, %s672
          %s674 = smul.addr %s38, 16
          %s675 = scalar_lea.hbm %s9, %s674
          %s677 = sshll.u32 %s670, 4
          %s678 = int_to_ptr.vmem [resolvable:$true] %s677
          %680 = dma.hbm_to_vmem [thread:$0]  %s675, 16, %s678, %s668
        $region64: #{tpu_custom_call.1} parent=27 // pred_fallthru
          _
        // Predicated region
        $region65: #{tpu_custom_call.1} parent=27 // pred_check
          %p681 = pneg %p317
        $region66: #{tpu_custom_call.1} parent=27 // pred_check_branch
          %683 = sbr.rel (%p681) target = $region68
        $region67: #{tpu_custom_call.1} parent=27 // pred_region
          %p684 = scmp.lt.s32.totalorder %s38, 1
          %s685 = scalar_select %p684, %s38, 1
          %s686 = scalar_lea.vmem %s10, %s685
        $region68: #{tpu_custom_call.1} parent=27 // pred_fallthru
          _
        // Predicated region
        $region69: #{tpu_custom_call.1} parent=27 // pred_check
          %p687 = pneg %p343
        $region70: #{tpu_custom_call.1} parent=27 // pred_check_branch
          %689 = sbr.rel (%p687) target = $region72
        $region71: #{tpu_custom_call.1} parent=27 // pred_region
          %s690 = sand.u32 %s30, 1
          %s691 = scalar_lea.sflag [#allocation3], %s690
          %s692 = sand.u32 %s333, 1
          %s693 = smul.addr %s692, 512
          %s694 = scalar_lea.vmem [#allocation13], %s693
          %s696 = ssub.s32 8192, 8192
          %697 = vsyncadd %s691, %s696
          %s698 = smul.addr %s38, 64
          %s699 = smul.addr %s698, 128
          %s700 = scalar_lea.hbm %s11, %s699
          %s701 = sshll.u32 %s694, 4
          %s702 = int_to_ptr.vmem [resolvable:$true] %s701
          %707 = dma.hbm_to_vmem [thread:$0]  %s700, 8192, %s702, %s691, 512, 512, 32
        $region72: #{tpu_custom_call.1} parent=27 // pred_fallthru
          _
        // Predicated region
        $region73: #{tpu_custom_call.1} parent=27 // pred_check
          %p708 = pneg %p369
        $region74: #{tpu_custom_call.1} parent=27 // pred_check_branch
          %710 = sbr.rel (%p708) target = $region76
        $region75: #{tpu_custom_call.1} parent=27 // pred_region
          %p711 = scmp.lt.s32.totalorder %s38, 1
          %s712 = scalar_select %p711, %s38, 1
          %s713 = smul.addr %s712, 4
          %s714 = scalar_lea.vmem %s12, %s713
        $region76: #{tpu_custom_call.1} parent=27 // pred_fallthru
          _
        // Predicated region
        $region77: #{tpu_custom_call.1} parent=27 // pred_check
          %p715 = pneg %p395
        $region78: #{tpu_custom_call.1} parent=27 // pred_check_branch
          %717 = sbr.rel (%p715) target = $region80
        $region79: #{tpu_custom_call.1} parent=27 // pred_region
          %s718 = sand.u32 %s30, 1
          %s719 = scalar_lea.sflag [#allocation3], %s718
          %s720 = sand.u32 %s385, 1
          %s721 = smul.addr %s720, 512
          %s722 = scalar_lea.vmem [#allocation14], %s721
          %s724 = ssub.s32 8192, 8192
          %725 = vsyncadd %s719, %s724
          %s726 = smul.addr %s38, 64
          %s727 = smul.addr %s726, 128
          %s728 = scalar_lea.hbm %s13, %s727
          %s729 = sshll.u32 %s722, 4
          %s730 = int_to_ptr.vmem [resolvable:$true] %s729
          %735 = dma.hbm_to_vmem [thread:$0]  %s728, 8192, %s730, %s719, 128, 128, 8
        $region80: #{tpu_custom_call.1} parent=27 // pred_fallthru
          _
        // Predicated region
        $region81: #{tpu_custom_call.1} parent=27 // pred_check
          %p736 = pneg %p421
        $region82: #{tpu_custom_call.1} parent=27 // pred_check_branch
          %738 = sbr.rel (%p736) target = $region84
        $region83: #{tpu_custom_call.1} parent=27 // pred_region
          %p739 = scmp.lt.s32.totalorder %s38, 1
          %s740 = scalar_select %p739, %s38, 1
          %s741 = scalar_lea.vmem %s14, %s740
        $region84: #{tpu_custom_call.1} parent=27 // pred_fallthru
          _
      $region28: #{tpu_custom_call.1} parent=5 // pred_fallthru
        _
      %p742 = scmp.le.s32.totalorder 1, %s30
      %p743 = scmp.lt.s32.totalorder %s30, 5
      %p744 = pnand %p742, %p743
      %p745 = pneg %p744
      // Predicated region
      $region85: #{tpu_custom_call.1} parent=5 // pred_check
        _
      $region86: #{tpu_custom_call.1} parent=5 // pred_check_branch
        %747 = sbr.rel (%p744) target = $region88
      $region87: #{tpu_custom_call.1} parent=5 // pred_region
        %s748 = ssub.s32 %s30, 1
        %s749 = sand.u32 %s35, 1
        %s750 = scalar_lea.sflag [#allocation3], %s749
        %s751 = sand.u32 %s55, 1
        %s752 = smul.addr %s751, 16
        %s753 = scalar_lea.vmem [#allocation2], %s752
        // Predicated region
        $region89: #{tpu_custom_call.1} parent=87 // pred_check
          %p754 = pneg %p68
        $region90: #{tpu_custom_call.1} parent=87 // pred_check_branch
          %756 = sbr.rel (%p754) target = $region92
        $region91: #{tpu_custom_call.1} parent=87 // pred_region
          %757 = dma.done %s750, 256
        $region92: #{tpu_custom_call.1} parent=87 // pred_fallthru
          _
        // Predicated region
        $region93: #{tpu_custom_call.1} parent=87 // pred_check
          %p758 = pneg %p89
        $region94: #{tpu_custom_call.1} parent=87 // pred_check_branch
          %760 = sbr.rel (%p758) target = $region96
        $region95: #{tpu_custom_call.1} parent=87 // pred_region
          %761 = dma.done [#allocation6], 1024
        $region96: #{tpu_custom_call.1} parent=87 // pred_fallthru
          _
        %s762 = sand.u32 %s35, 1
        %s763 = scalar_lea.sflag [#allocation3], %s762
        %s764 = sand.u32 %s102, 1
        %s765 = smul.addr %s764, 16
        %s766 = scalar_lea.vmem [#allocation7], %s765
        // Predicated region
        $region97: #{tpu_custom_call.1} parent=87 // pred_check
          %p767 = pneg %p115
        $region98: #{tpu_custom_call.1} parent=87 // pred_check_branch
          %769 = sbr.rel (%p767) target = $region100
        $region99: #{tpu_custom_call.1} parent=87 // pred_region
          %770 = dma.done %s763, 256
        $region100: #{tpu_custom_call.1} parent=87 // pred_fallthru
          _
        %s771 = sand.u32 %s35, 1
        %s772 = scalar_lea.sflag [#allocation3], %s771
        %s773 = sand.u32 %s154, 1
        %s774 = scalar_lea.vmem [#allocation8], %s773
        // Predicated region
        $region101: #{tpu_custom_call.1} parent=87 // pred_check
          %p775 = pneg %p167
        $region102: #{tpu_custom_call.1} parent=87 // pred_check_branch
          %777 = sbr.rel (%p775) target = $region104
        $region103: #{tpu_custom_call.1} parent=87 // pred_region
          %778 = dma.done %s772, 16
        $region104: #{tpu_custom_call.1} parent=87 // pred_fallthru
          _
        %s779 = sand.u32 %s35, 1
        %s780 = scalar_lea.sflag [#allocation3], %s779
        %s781 = sand.u32 %s180, 1
        %s782 = smul.addr %s781, 384
        %s783 = scalar_lea.vmem [#allocation9], %s782
        // Predicated region
        $region105: #{tpu_custom_call.1} parent=87 // pred_check
          %p784 = pneg %p193
        $region106: #{tpu_custom_call.1} parent=87 // pred_check_branch
          %786 = sbr.rel (%p784) target = $region108
        $region107: #{tpu_custom_call.1} parent=87 // pred_region
          %787 = dma.done %s780, 6144
        $region108: #{tpu_custom_call.1} parent=87 // pred_fallthru
          _
        %s788 = sand.u32 %s35, 1
        %s789 = scalar_lea.sflag [#allocation3], %s788
        %s790 = sand.u32 %s232, 1
        %s791 = smul.addr %s790, 128
        %s792 = scalar_lea.vmem [#allocation10], %s791
        // Predicated region
        $region109: #{tpu_custom_call.1} parent=87 // pred_check
          %p793 = pneg %p245
        $region110: #{tpu_custom_call.1} parent=87 // pred_check_branch
          %795 = sbr.rel (%p793) target = $region112
        $region111: #{tpu_custom_call.1} parent=87 // pred_region
          %796 = dma.done %s789, 2048
        $region112: #{tpu_custom_call.1} parent=87 // pred_fallthru
          _
        %s797 = sand.u32 %s35, 1
        %s798 = scalar_lea.sflag [#allocation3], %s797
        %s799 = sand.u32 %s258, 1
        %s800 = scalar_lea.vmem [#allocation11], %s799
        // Predicated region
        $region113: #{tpu_custom_call.1} parent=87 // pred_check
          %p801 = pneg %p271
        $region114: #{tpu_custom_call.1} parent=87 // pred_check_branch
          %803 = sbr.rel (%p801) target = $region116
        $region115: #{tpu_custom_call.1} parent=87 // pred_region
          %804 = dma.done %s798, 16
        $region116: #{tpu_custom_call.1} parent=87 // pred_fallthru
          _
        %s805 = sand.u32 %s35, 1
        %s806 = scalar_lea.sflag [#allocation3], %s805
        %s807 = sand.u32 %s284, 1
        %s808 = scalar_lea.vmem [#allocation12], %s807
        // Predicated region
        $region117: #{tpu_custom_call.1} parent=87 // pred_check
          %p809 = pneg %p297
        $region118: #{tpu_custom_call.1} parent=87 // pred_check_branch
          %811 = sbr.rel (%p809) target = $region120
        $region119: #{tpu_custom_call.1} parent=87 // pred_region
          %812 = dma.done %s806, 16
        $region120: #{tpu_custom_call.1} parent=87 // pred_fallthru
          _
        %s813 = sand.u32 %s35, 1
        %s814 = scalar_lea.sflag [#allocation3], %s813
        %s815 = sand.u32 %s336, 1
        %s816 = smul.addr %s815, 512
        %s817 = scalar_lea.vmem [#allocation13], %s816
        // Predicated region
        $region121: #{tpu_custom_call.1} parent=87 // pred_check
          %p818 = pneg %p349
        $region122: #{tpu_custom_call.1} parent=87 // pred_check_branch
          %820 = sbr.rel (%p818) target = $region124
        $region123: #{tpu_custom_call.1} parent=87 // pred_region
          %821 = dma.done %s814, 8192
        $region124: #{tpu_custom_call.1} parent=87 // pred_fallthru
          _
        %s822 = sand.u32 %s35, 1
        %s823 = scalar_lea.sflag [#allocation3], %s822
        %s824 = sand.u32 %s388, 1
        %s825 = smul.addr %s824, 512
        %s826 = scalar_lea.vmem [#allocation14], %s825
        // Predicated region
        $region125: #{tpu_custom_call.1} parent=87 // pred_check
          %p827 = pneg %p401
        $region126: #{tpu_custom_call.1} parent=87 // pred_check_branch
          %829 = sbr.rel (%p827) target = $region128
        $region127: #{tpu_custom_call.1} parent=87 // pred_region
          %830 = dma.done %s823, 8192
        $region128: #{tpu_custom_call.1} parent=87 // pred_fallthru
          _
        %s831 = sand.u32 %s35, 1
        %s832 = scalar_lea.sflag [#allocation3], %s831
        %s833 = sand.u32 %s55, 1
        %s834 = smul.addr %s833, 16
        %s835 = scalar_lea.vmem [#allocation2], %s834
        %p836 = pneg %p68
        %p837 = pneg %p65
        %p838 = pneg %p89
        %p839 = pneg %p86
        %s840 = sand.u32 %s35, 1
        %s841 = scalar_lea.sflag [#allocation3], %s840
        %s842 = sand.u32 %s102, 1
        %s843 = smul.addr %s842, 16
        %s844 = scalar_lea.vmem [#allocation7], %s843
        %p845 = pneg %p115
        %p846 = pneg %p112
        %p847 = scmp.lt.s32.totalorder %s40, 1
        %s848 = scalar_select %p847, %s40, 1
        %s849 = scalar_lea.vmem %s3, %s848
        %p850 = pneg %p141
        %p851 = pneg %p138
        %s852 = sand.u32 %s35, 1
        %s853 = scalar_lea.sflag [#allocation3], %s852
        %s854 = sand.u32 %s154, 1
        %s855 = scalar_lea.vmem [#allocation8], %s854
        %p856 = pneg %p167
        %p857 = pneg %p164
        %s858 = sand.u32 %s35, 1
        %s859 = scalar_lea.sflag [#allocation3], %s858
        %s860 = sand.u32 %s180, 1
        %s861 = smul.addr %s860, 384
        %s862 = scalar_lea.vmem [#allocation9], %s861
        %p863 = pneg %p193
        %p864 = pneg %p190
        %p865 = scmp.lt.s32.totalorder %s40, 1
        %s866 = scalar_select %p865, %s40, 1
        %s867 = smul.addr %s866, 3
        %s868 = scalar_lea.vmem %s6, %s867
        %p869 = pneg %p219
        %p870 = pneg %p216
        %s871 = sand.u32 %s35, 1
        %s872 = scalar_lea.sflag [#allocation3], %s871
        %s873 = sand.u32 %s232, 1
        %s874 = smul.addr %s873, 128
        %s875 = scalar_lea.vmem [#allocation10], %s874
        %p876 = pneg %p245
        %p877 = pneg %p242
        %s878 = sand.u32 %s35, 1
        %s879 = scalar_lea.sflag [#allocation3], %s878
        %s880 = sand.u32 %s258, 1
        %s881 = scalar_lea.vmem [#allocation11], %s880
        %p882 = pneg %p271
        %p883 = pneg %p268
        %s884 = sand.u32 %s35, 1
        %s885 = scalar_lea.sflag [#allocation3], %s884
        %s886 = sand.u32 %s284, 1
        %s887 = scalar_lea.vmem [#allocation12], %s886
        %p888 = pneg %p297
        %p889 = pneg %p294
        %p890 = scmp.lt.s32.totalorder %s40, 1
        %s891 = scalar_select %p890, %s40, 1
        %s892 = scalar_lea.vmem %s10, %s891
        %p893 = pneg %p323
        %p894 = pneg %p320
        %s895 = sand.u32 %s35, 1
        %s896 = scalar_lea.sflag [#allocation3], %s895
        %s897 = sand.u32 %s336, 1
        %s898 = smul.addr %s897, 512
        %s899 = scalar_lea.vmem [#allocation13], %s898
        %p900 = pneg %p349
        %p901 = pneg %p346
        %p902 = scmp.lt.s32.totalorder %s40, 1
        %s903 = scalar_select %p902, %s40, 1
        %s904 = smul.addr %s903, 4
        %s905 = scalar_lea.vmem %s12, %s904
        %p906 = pneg %p375
        %p907 = pneg %p372
        %s908 = sand.u32 %s35, 1
        %s909 = scalar_lea.sflag [#allocation3], %s908
        %s910 = sand.u32 %s388, 1
        %s911 = smul.addr %s910, 512
        %s912 = scalar_lea.vmem [#allocation14], %s911
        %p913 = pneg %p401
        %p914 = pneg %p398
        %p915 = scmp.lt.s32.totalorder %s40, 1
        %s916 = scalar_select %p915, %s40, 1
        %s917 = scalar_lea.vmem %s14, %s916
        %p918 = pneg %p427
        %p919 = pneg %p424
        %p920 = pneg %p448
        %p921 = pneg %p445
        %p922 = pneg %p469
        %p923 = pneg %p466
        %p924 = pneg %p495
        %p925 = pneg %p492
        %s926 = sand.u32 %s482, 1
        %s927 = scalar_lea.sflag [#allocation4], %s926
        %s928 = sand.u32 %s482, 1
        %s929 = smul.addr %s928, 16
        %s930 = scalar_lea.vmem [#allocation15], %s929
        %s931 = smul.u32 2, %s39
        %s932 = smul.u32 2, %s39
        %p933 = scmp.lt.s32.totalorder %s40, 1
        %s934 = scalar_select %p933, %s40, 1
        %s935 = scalar_lea.vmem %s3, %s934
        %p936 = scmp.lt.s32.totalorder %s40, 1
        %s937 = scalar_select %p936, %s40, 1
        %s938 = smul.addr %s937, 3
        %s939 = scalar_lea.vmem %s6, %s938
        %p940 = scmp.lt.s32.totalorder %s40, 1
        %s941 = scalar_select %p940, %s40, 1
        %s942 = scalar_lea.vmem %s10, %s941
        %p943 = scmp.lt.s32.totalorder %s40, 1
        %s944 = scalar_select %p943, %s40, 1
        %s945 = smul.addr %s944, 4
        %s946 = scalar_lea.vmem %s12, %s945
        %p947 = scmp.lt.s32.totalorder %s40, 1
        %s948 = scalar_select %p947, %s40, 1
        %s949 = scalar_lea.vmem %s14, %s948
        %s950 = smul.u32 2, %s39
        %p951 = scmp.eq.s32.totalorder %s40, 0
        // Predicated region
        $region129: #{tpu_custom_call.1} parent=87 // pred_check
          %p952 = pneg %p951
        $region130: #{tpu_custom_call.1} parent=87 // pred_check_branch
          %954 = sbr.rel (%p952) target = $region132
        $region131: #{tpu_custom_call.1} parent=87 // pred_region
          %v955 = vld [vmem:[%s753] sm:$0xff]
          %v956 = vld [vmem:[%s753 + $0x8] sm:$0xff]
          %v957 = vld [vmem:[#allocation5] sm:$0xff]
          %v958 = vld [vmem:[#allocation5 + $0x8] sm:$0xff]
          %v959 = vld [vmem:[#allocation5 + $0x10] sm:$0xff]
          %v960 = vld [vmem:[#allocation5 + $0x18] sm:$0xff]
          %v961 = vld [vmem:[#allocation5 + $0x20] sm:$0xff]
          %v962 = vld [vmem:[#allocation5 + $0x28] sm:$0xff]
          %v963 = vld [vmem:[#allocation5 + $0x30] sm:$0xff]
          %v964 = vld [vmem:[#allocation5 + $0x38] sm:$0xff]
          %v965 = vld [vmem:[%s766] sm:$0xff]
          %v966 = vld [vmem:[%s766 + $0x8] sm:$0xff]
          %vm967 = vcmask 523264
          %v969 = vsel %vm967, %v955, 0
          %v972 = vsel %vm967, %v956, 0
          %974 = vmatprep.subr.mxu0 0.0
          %975 = vmatpush1.msra.mxu0 0.0
          %976 = vmatprep.subr.mxu0 0.0
          %977 = vmatpush1.msra.mxu0 0.0
          %978 = vmatprep.subr.mxu0 0.0
          %979 = vmatpush1.msra.mxu0 0.0
          %980 = vmatprep.subr.mxu0 0.0
          %981 = vmatpush1.msra.mxu0 0.0
          %982 = vmatprep.subr.mxu0 0.0
          %983 = vmatpush1.msra.mxu0 0.0
          %984 = vmatprep.subr.mxu0 0.0
          %985 = vmatpush1.msra.mxu0 0.0
          %986 = vmatprep.subr.mxu0 0.0
          %987 = vmatpush1.msra.mxu0 0.0
          %988 = vmatprep.subr.mxu0 0.0
          %989 = vmatpush1.msra.mxu0 0.0
          %990 = vmatprep.subr.mxu0 0.0
          %991 = vmatpush1.msra.mxu0 %v964
          %992 = vmatprep.subr.mxu0 0.0
          %993 = vmatpush1.msra.mxu0 %v963
          %994 = vmatprep.subr.mxu0 0.0
          %995 = vmatpush1.msra.mxu0 %v962
          %996 = vmatprep.subr.mxu0 0.0
          %997 = vmatpush1.msra.mxu0 %v961
          %998 = vmatprep.subr.mxu0 0.0
          %999 = vmatpush1.msra.mxu0 %v960
          %1000 = vmatprep.subr.mxu0 0.0
          %1001 = vmatpush1.msra.mxu0 %v959
          %1002 = vmatprep.subr.mxu0 0.0
          %1003 = vmatpush1.msra.mxu0 %v958
          %1004 = vmatprep.subr.mxu0 0.0
          %1005 = vmatpush1.msra.mxu0 %v957
          %1006 = vmatprep.subr.mxu0 0.0
          %1007 = vmatpush2.msra.mxu0 0.0
          %1008 = vmatprep.subr.mxu0 0.0
          %1009 = vmatpush2.msra.mxu0 0.0
          %1010 = vmatprep.subr.mxu0 0.0
          %1011 = vmatpush2.msra.mxu0 0.0
          %1012 = vmatprep.subr.mxu0 0.0
          %1013 = vmatpush2.msra.mxu0 0.0
          %1014 = vmatprep.subr.mxu0 0.0
          %1015 = vmatpush2.msra.mxu0 0.0
          %1016 = vmatprep.subr.mxu0 0.0
          %1017 = vmatpush2.msra.mxu0 0.0
          %1018 = vmatprep.subr.mxu0 0.0
          %1019 = vmatpush2.msra.mxu0 0.0
          %1020 = vmatprep.subr.mxu0 0.0
          %1021 = vmatpush2.msra.mxu0 0.0
          %1022 = vmatprep.subr.mxu0 0.0
          %1023 = vmatpush2.msra.mxu0 0.0
          %1024 = vmatprep.subr.mxu0 0.0
          %1025 = vmatpush2.msra.mxu0 0.0
          %1026 = vmatprep.subr.mxu0 0.0
          %1027 = vmatpush2.msra.mxu0 0.0
          %1028 = vmatprep.subr.mxu0 0.0
          %1029 = vmatpush2.msra.mxu0 0.0
          %1030 = vmatprep.subr.mxu0 0.0
          %1031 = vmatpush2.msra.mxu0 0.0
          %1032 = vmatprep.subr.mxu0 0.0
          %1033 = vmatpush2.msra.mxu0 0.0
          %1034 = vmatprep.subr.mxu0 0.0
          %1035 = vmatpush2.msra.mxu0 0.0
          %1036 = vmatprep.subr.mxu0 0.0
          %1037 = vmatpush2.msra.mxu0 0.0
          %1038 = vmatprep.mubr.f32.mxu0 0.0
          %1039 = vmatmul.mubr.f32.gmra.mxu0 %v969
          %v1040 = vpop.f32.mrf.mxu0
          %v1041 = vadd.f32 %v965, %v1040
          %v1042 = vpop.f32.mrf.mxu0
          %1043 = vmatprep.mubr.f32.mxu0 0.0
          %1044 = vmatmul.mubr.f32.gmra.mxu0 %v972
          %v1045 = vpop.f32.mrf.mxu0
          %v1046 = vadd.f32 %v966, %v1045
          %v1047 = vpop.f32.mrf.mxu0
          %1048 = vdwg.mxu0
          %1049 = vst [vmem:[%s930] sm:$0xff] %v1041
          %1050 = vst [vmem:[%s930 + $0x8] sm:$0xff] %v1046
        $region132: #{tpu_custom_call.1} parent=87 // pred_fallthru
          _
        %v1051 = vld [vmem:[%s930] sm:$0xff]
        %v1052 = vld [vmem:[%s930 + $0x8] sm:$0xff]
        %v1053 = vld [vmem:[%s935] sm:$0x1]
        %v1054 = vld [vmem:[%s774] sm:$0x1]
        %1055 = vadd.xlane.f32.xlu0 %v1051
        %v1056 = vpop.xlane.xlu0 %1055
        %1057 = vadd.xlane.f32.xlu0 %v1052
        %v1058 = vpop.xlane.xlu0 %1057
        %v1059 = vrcp.pop 128.0
        %v1060 = vmul.f32 %v1056, %v1059
        %v1061 = vmul.f32 %v1058, %v1059
        %v1062 = vsub.f32 %v1051, %v1060
        %v1063 = vsub.f32 %v1052, %v1061
        %v1064 = vmul.f32 %v1062, %v1062
        %v1065 = vmul.f32 %v1063, %v1063
        %1066 = vadd.xlane.f32.xlu0 %v1064
        %v1067 = vpop.xlane.xlu0 %1066
        %1068 = vadd.xlane.f32.xlu0 %v1065
        %v1069 = vpop.xlane.xlu0 %1068
        %v1070 = vmul.f32 %v1067, %v1059
        %v1071 = vmul.f32 %v1069, %v1059
        %v1072 = vadd.f32 %v1070, 1e-05
        %v1073 = vadd.f32 %v1071, 1e-05
        %v1074 = vrsqrt.pop %v1072
        %v1075 = vrsqrt.pop %v1073
        %v1076 = vmul.f32 %v1062, %v1074
        %v1077 = vmul.f32 %v1063, %v1075
        %v1079 = vlaneseq
        %v1080 = vshrl.u32 %v1079, 7
        %v1081 = vsub.s32 0, %v1080
        %v1082 = vrot.slane %v1053, %v1081
        %v1084 = vmul.f32 %v1076, %v1082
        %v1085 = vmul.f32 %v1077, %v1082
        %v1087 = vlaneseq
        %v1088 = vshrl.u32 %v1087, 7
        %v1089 = vsub.s32 0, %v1088
        %v1090 = vrot.slane %v1054, %v1089
        %v1092 = vadd.f32 %v1084, %v1090
        %v1093 = vadd.f32 %v1085, %v1090
        %v1094 = vld [vmem:[%s783] sm:$0xff]
        %v1095 = vld [vmem:[%s783 + $0x8] sm:$0xff]
        %v1096 = vld [vmem:[%s783 + $0x10] sm:$0xff]
        %v1097 = vld [vmem:[%s783 + $0x18] sm:$0xff]
        %v1098 = vld [vmem:[%s783 + $0x20] sm:$0xff]
        %v1099 = vld [vmem:[%s783 + $0x28] sm:$0xff]
        %v1100 = vld [vmem:[%s783 + $0x30] sm:$0xff]
        %v1101 = vld [vmem:[%s783 + $0x38] sm:$0xff]
        %v1102 = vld [vmem:[%s783 + $0x40] sm:$0xff]
        %v1103 = vld [vmem:[%s783 + $0x48] sm:$0xff]
        %v1104 = vld [vmem:[%s783 + $0x50] sm:$0xff]
        %v1105 = vld [vmem:[%s783 + $0x58] sm:$0xff]
        %v1106 = vld [vmem:[%s783 + $0x60] sm:$0xff]
        %v1107 = vld [vmem:[%s783 + $0x68] sm:$0xff]
        %v1108 = vld [vmem:[%s783 + $0x70] sm:$0xff]
        %v1109 = vld [vmem:[%s783 + $0x78] sm:$0xff]
        %v1110 = vld [vmem:[%s783 + $0x80] sm:$0xff]
        %v1111 = vld [vmem:[%s783 + $0x88] sm:$0xff]
        %v1112 = vld [vmem:[%s783 + $0x90] sm:$0xff]
        %v1113 = vld [vmem:[%s783 + $0x98] sm:$0xff]
        %v1114 = vld [vmem:[%s783 + $0xa0] sm:$0xff]
        %v1115 = vld [vmem:[%s783 + $0xa8] sm:$0xff]
        %v1116 = vld [vmem:[%s783 + $0xb0] sm:$0xff]
        %v1117 = vld [vmem:[%s783 + $0xb8] sm:$0xff]
        %v1118 = vld [vmem:[%s783 + $0xc0] sm:$0xff]
        %v1119 = vld [vmem:[%s783 + $0xc8] sm:$0xff]
        %v1120 = vld [vmem:[%s783 + $0xd0] sm:$0xff]
        %v1121 = vld [vmem:[%s783 + $0xd8] sm:$0xff]
        %v1122 = vld [vmem:[%s783 + $0xe0] sm:$0xff]
        %v1123 = vld [vmem:[%s783 + $0xe8] sm:$0xff]
        %v1124 = vld [vmem:[%s783 + $0xf0] sm:$0xff]
        %v1125 = vld [vmem:[%s783 + $0xf8] sm:$0xff]
        %v1126 = vld [vmem:[%s783 + $0x100] sm:$0xff]
        %v1127 = vld [vmem:[%s783 + $0x108] sm:$0xff]
        %v1128 = vld [vmem:[%s783 + $0x110] sm:$0xff]
        %v1129 = vld [vmem:[%s783 + $0x118] sm:$0xff]
        %v1130 = vld [vmem:[%s783 + $0x120] sm:$0xff]
        %v1131 = vld [vmem:[%s783 + $0x128] sm:$0xff]
        %v1132 = vld [vmem:[%s783 + $0x130] sm:$0xff]
        %v1133 = vld [vmem:[%s783 + $0x138] sm:$0xff]
        %v1134 = vld [vmem:[%s783 + $0x140] sm:$0xff]
        %v1135 = vld [vmem:[%s783 + $0x148] sm:$0xff]
        %v1136 = vld [vmem:[%s783 + $0x150] sm:$0xff]
        %v1137 = vld [vmem:[%s783 + $0x158] sm:$0xff]
        %v1138 = vld [vmem:[%s783 + $0x160] sm:$0xff]
        %v1139 = vld [vmem:[%s783 + $0x168] sm:$0xff]
        %v1140 = vld [vmem:[%s783 + $0x170] sm:$0xff]
        %v1141 = vld [vmem:[%s783 + $0x178] sm:$0xff]
        %v1142 = vld [vmem:[%s939] sm:$0x7]
        %v1144 = vlaneseq
        %v1145 = vshrl.u32 %v1144, 7
        %v1146 = vsub.s32 0, %v1145
        %v1147 = vrot.slane %v1142, %v1146
        %v1148 = vlaneseq
        %v1149 = vshrl.u32 %v1148, 7
        %v1150 = vsub.s32 1, %v1149
        %v1151 = vrot.slane %v1142, %v1150
        %v1152 = vlaneseq
        %v1153 = vshrl.u32 %v1152, 7
        %v1154 = vsub.s32 2, %v1153
        %v1155 = vrot.slane %v1142, %v1154
        %1159 = vmatprep.subr.mxu0 %v1140
        %1160 = vmatpush1.msra.mxu0 %v1139
        %1161 = vmatprep.subr.mxu0 %v1137
        %1162 = vmatpush1.msra.mxu0 %v1136
        %1163 = vmatprep.subr.mxu0 %v1134
        %1164 = vmatpush1.msra.mxu0 %v1133
        %1165 = vmatprep.subr.mxu0 %v1131
        %1166 = vmatpush1.msra.mxu0 %v1130
        %1167 = vmatprep.subr.mxu0 %v1128
        %1168 = vmatpush1.msra.mxu0 %v1127
        %1169 = vmatprep.subr.mxu0 %v1125
        %1170 = vmatpush1.msra.mxu0 %v1124
        %1171 = vmatprep.subr.mxu0 %v1122
        %1172 = vmatpush1.msra.mxu0 %v1121
        %1173 = vmatprep.subr.mxu0 %v1119
        %1174 = vmatpush1.msra.mxu0 %v1118
        %1175 = vmatprep.subr.mxu0 %v1116
        %1176 = vmatpush1.msra.mxu0 %v1115
        %1177 = vmatprep.subr.mxu0 %v1113
        %1178 = vmatpush1.msra.mxu0 %v1112
        %1179 = vmatprep.subr.mxu0 %v1110
        %1180 = vmatpush1.msra.mxu0 %v1109
        %1181 = vmatprep.subr.mxu0 %v1107
        %1182 = vmatpush1.msra.mxu0 %v1106
        %1183 = vmatprep.subr.mxu0 %v1104
        %1184 = vmatpush1.msra.mxu0 %v1103
        %1185 = vmatprep.subr.mxu0 %v1101
        %1186 = vmatpush1.msra.mxu0 %v1100
        %1187 = vmatprep.subr.mxu0 %v1098
        %1188 = vmatpush1.msra.mxu0 %v1097
        %1189 = vmatprep.subr.mxu0 %v1095
        %1190 = vmatpush1.msra.mxu0 %v1094
        %1191 = vmatprep.subr.mxu0 0.0
        %1192 = vmatpush2.msra.mxu0 0.0
        %1193 = vmatprep.subr.mxu0 0.0
        %1194 = vmatpush2.msra.mxu0 0.0
        %1195 = vmatprep.subr.mxu0 0.0
        %1196 = vmatpush2.msra.mxu0 0.0
        %1197 = vmatprep.subr.mxu0 0.0
        %1198 = vmatpush2.msra.mxu0 0.0
        %1199 = vmatprep.subr.mxu0 0.0
        %1200 = vmatpush2.msra.mxu0 0.0
        %1201 = vmatprep.subr.mxu0 0.0
        %1202 = vmatpush2.msra.mxu0 0.0
        %1203 = vmatprep.subr.mxu0 0.0
        %1204 = vmatpush2.msra.mxu0 0.0
        %1205 = vmatprep.subr.mxu0 0.0
        %1206 = vmatpush2.msra.mxu0 0.0
        %1207 = vmatprep.subr.mxu0 0.0
        %1208 = vmatpush2.msra.mxu0 0.0
        %1209 = vmatprep.subr.mxu0 0.0
        %1210 = vmatpush2.msra.mxu0 0.0
        %1211 = vmatprep.subr.mxu0 0.0
        %1212 = vmatpush2.msra.mxu0 0.0
        %1213 = vmatprep.subr.mxu0 0.0
        %1214 = vmatpush2.msra.mxu0 0.0
        %1215 = vmatprep.subr.mxu0 0.0
        %1216 = vmatpush2.msra.mxu0 0.0
        %1217 = vmatprep.subr.mxu0 0.0
        %1218 = vmatpush2.msra.mxu0 0.0
        %1219 = vmatprep.subr.mxu0 0.0
        %1220 = vmatpush2.msra.mxu0 0.0
        %1221 = vmatprep.subr.mxu0 0.0
        %1222 = vmatpush2.msra.mxu0 0.0
        %1223 = vmatprep.mubr.f32.mxu0 0.0
        %1224 = vmatmul.mubr.f32.gmra.mxu0 %v1092
        %v1225 = vpop.f32.mrf.mxu0
        %v1226 = vadd.f32 %v1147, %v1225
        %v1227 = vpop.f32.mrf.mxu0
        %v1228 = vadd.f32 %v1151, %v1227
        %1229 = vmatprep.mubr.f32.mxu0 0.0
        %1230 = vmatmul.mubr.f32.gmra.mxu0 %v1093
        %v1231 = vpop.f32.mrf.mxu0
        %v1232 = vadd.f32 %v1147, %v1231
        %v1233 = vpop.f32.mrf.mxu0
        %v1234 = vadd.f32 %v1151, %v1233
        %1235 = vdwg.mxu0
        %1236 = vmatprep.subr.mxu0 0.0
        %1237 = vmatpush1.msra.mxu0 %v1141
        %1238 = vmatprep.subr.mxu0 0.0
        %1239 = vmatpush1.msra.mxu0 %v1138
        %1240 = vmatprep.subr.mxu0 0.0
        %1241 = vmatpush1.msra.mxu0 %v1135
        %1242 = vmatprep.subr.mxu0 0.0
        %1243 = vmatpush1.msra.mxu0 %v1132
        %1244 = vmatprep.subr.mxu0 0.0
        %1245 = vmatpush1.msra.mxu0 %v1129
        %1246 = vmatprep.subr.mxu0 0.0
        %1247 = vmatpush1.msra.mxu0 %v1126
        %1248 = vmatprep.subr.mxu0 0.0
        %1249 = vmatpush1.msra.mxu0 %v1123
        %1250 = vmatprep.subr.mxu0 0.0
        %1251 = vmatpush1.msra.mxu0 %v1120
        %1252 = vmatprep.subr.mxu0 0.0
        %1253 = vmatpush1.msra.mxu0 %v1117
        %1254 = vmatprep.subr.mxu0 0.0
        %1255 = vmatpush1.msra.mxu0 %v1114
        %1256 = vmatprep.subr.mxu0 0.0
        %1257 = vmatpush1.msra.mxu0 %v1111
        %1258 = vmatprep.subr.mxu0 0.0
        %1259 = vmatpush1.msra.mxu0 %v1108
        %1260 = vmatprep.subr.mxu0 0.0
        %1261 = vmatpush1.msra.mxu0 %v1105
        %1262 = vmatprep.subr.mxu0 0.0
        %1263 = vmatpush1.msra.mxu0 %v1102
        %1264 = vmatprep.subr.mxu0 0.0
        %1265 = vmatpush1.msra.mxu0 %v1099
        %1266 = vmatprep.subr.mxu0 0.0
        %1267 = vmatpush1.msra.mxu0 %v1096
        %1268 = vmatprep.subr.mxu0 0.0
        %1269 = vmatpush2.msra.mxu0 0.0
        %1270 = vmatprep.subr.mxu0 0.0
        %1271 = vmatpush2.msra.mxu0 0.0
        %1272 = vmatprep.subr.mxu0 0.0
        %1273 = vmatpush2.msra.mxu0 0.0
        %1274 = vmatprep.subr.mxu0 0.0
        %1275 = vmatpush2.msra.mxu0 0.0
        %1276 = vmatprep.subr.mxu0 0.0
        %1277 = vmatpush2.msra.mxu0 0.0
        %1278 = vmatprep.subr.mxu0 0.0
        %1279 = vmatpush2.msra.mxu0 0.0
        %1280 = vmatprep.subr.mxu0 0.0
        %1281 = vmatpush2.msra.mxu0 0.0
        %1282 = vmatprep.subr.mxu0 0.0
        %1283 = vmatpush2.msra.mxu0 0.0
        %1284 = vmatprep.subr.mxu0 0.0
        %1285 = vmatpush2.msra.mxu0 0.0
        %1286 = vmatprep.subr.mxu0 0.0
        %1287 = vmatpush2.msra.mxu0 0.0
        %1288 = vmatprep.subr.mxu0 0.0
        %1289 = vmatpush2.msra.mxu0 0.0
        %1290 = vmatprep.subr.mxu0 0.0
        %1291 = vmatpush2.msra.mxu0 0.0
        %1292 = vmatprep.subr.mxu0 0.0
        %1293 = vmatpush2.msra.mxu0 0.0
        %1294 = vmatprep.subr.mxu0 0.0
        %1295 = vmatpush2.msra.mxu0 0.0
        %1296 = vmatprep.subr.mxu0 0.0
        %1297 = vmatpush2.msra.mxu0 0.0
        %1298 = vmatprep.subr.mxu0 0.0
        %1299 = vmatpush2.msra.mxu0 0.0
        %1300 = vmatprep.mubr.f32.mxu0 0.0
        %1301 = vmatmul.mubr.f32.gmra.mxu0 %v1092
        %v1302 = vpop.f32.mrf.mxu0
        %v1303 = vadd.f32 %v1155, %v1302
        %v1304 = vpop.f32.mrf.mxu0
        %1305 = vmatprep.mubr.f32.mxu0 0.0
        %1306 = vmatmul.mubr.f32.gmra.mxu0 %v1093
        %v1307 = vpop.f32.mrf.mxu0
        %v1308 = vadd.f32 %v1155, %v1307
        %v1309 = vpop.f32.mrf.mxu0
        %1310 = vdwg.mxu0
        %vm1311 = vcmask 261120
        %v1313 = vsel %vm1311, %v1226, 0
        %v1316 = vsel %vm1311, %v1232, 0
        %v1319 = vsel %vm1311, %v1228, 0
        %v1322 = vsel %vm1311, %v1234, 0
        %1324 = vmatprep.subr.mxu0 0.0
        %1325 = vmatpush1.xpose.msra.mxu0 0.0
        %1326 = vmatprep.subr.mxu0 0.0
        %1327 = vmatpush1.xpose.msra.mxu0 0.0
        %1328 = vmatprep.subr.mxu0 0.0
        %1329 = vmatpush1.xpose.msra.mxu0 0.0
        %1330 = vmatprep.subr.mxu0 0.0
        %1331 = vmatpush1.xpose.msra.mxu0 0.0
        %1332 = vmatprep.subr.mxu0 0.0
        %1333 = vmatpush1.xpose.msra.mxu0 0.0
        %1334 = vmatprep.subr.mxu0 0.0
        %1335 = vmatpush1.xpose.msra.mxu0 0.0
        %1336 = vmatprep.subr.mxu0 0.0
        %1337 = vmatpush1.xpose.msra.mxu0 0.0
        %1338 = vmatprep.subr.mxu0 0.0
        %1339 = vmatpush1.xpose.msra.mxu0 0.0
        %1340 = vmatprep.subr.mxu0 0.0
        %1341 = vmatpush1.xpose.msra.mxu0 0.0
        %1342 = vmatprep.subr.mxu0 0.0
        %1343 = vmatpush1.xpose.msra.mxu0 0.0
        %1344 = vmatprep.subr.mxu0 0.0
        %1345 = vmatpush1.xpose.msra.mxu0 0.0
        %1346 = vmatprep.subr.mxu0 0.0
        %1347 = vmatpush1.xpose.msra.mxu0 0.0
        %1348 = vmatprep.subr.mxu0 0.0
        %1349 = vmatpush1.xpose.msra.mxu0 0.0
        %1350 = vmatprep.subr.mxu0 0.0
        %1351 = vmatpush1.xpose.msra.mxu0 0.0
        %1352 = vmatprep.subr.mxu0 0.0
        %1353 = vmatpush1.xpose.msra.mxu0 %v1322
        %1354 = vmatprep.subr.mxu0 0.0
        %1355 = vmatpush1.xpose.msra.mxu0 %v1319
        %1356 = vmatprep.subr.mxu0 0.0
        %1357 = vmatpush2.xpose.msra.mxu0 0.0
        %1358 = vmatprep.subr.mxu0 0.0
        %1359 = vmatpush2.xpose.msra.mxu0 0.0
        %1360 = vmatprep.subr.mxu0 0.0
        %1361 = vmatpush2.xpose.msra.mxu0 0.0
        %1362 = vmatprep.subr.mxu0 0.0
        %1363 = vmatpush2.xpose.msra.mxu0 0.0
        %1364 = vmatprep.subr.mxu0 0.0
        %1365 = vmatpush2.xpose.msra.mxu0 0.0
        %1366 = vmatprep.subr.mxu0 0.0
        %1367 = vmatpush2.xpose.msra.mxu0 0.0
        %1368 = vmatprep.subr.mxu0 0.0
        %1369 = vmatpush2.xpose.msra.mxu0 0.0
        %1370 = vmatprep.subr.mxu0 0.0
        %1371 = vmatpush2.xpose.msra.mxu0 0.0
        %1372 = vmatprep.subr.mxu0 0.0
        %1373 = vmatpush2.xpose.msra.mxu0 0.0
        %1374 = vmatprep.subr.mxu0 0.0
        %1375 = vmatpush2.xpose.msra.mxu0 0.0
        %1376 = vmatprep.subr.mxu0 0.0
        %1377 = vmatpush2.xpose.msra.mxu0 0.0
        %1378 = vmatprep.subr.mxu0 0.0
        %1379 = vmatpush2.xpose.msra.mxu0 0.0
        %1380 = vmatprep.subr.mxu0 0.0
        %1381 = vmatpush2.xpose.msra.mxu0 0.0
        %1382 = vmatprep.subr.mxu0 0.0
        %1383 = vmatpush2.xpose.msra.mxu0 0.0
        %1384 = vmatprep.subr.mxu0 0.0
        %1385 = vmatpush2.xpose.msra.mxu0 0.0
        %1386 = vmatprep.subr.mxu0 0.0
        %1387 = vmatpush2.xpose.msra.mxu0 0.0
        %1388 = vmatprep.mubr.f32.mxu0 0.0
        %1389 = vmatmul.mubr.f32.gmra.mxu0 %v1313
        %v1390 = vpop.f32.mrf.mxu0
        %v1391 = vadd.f32 0.0, %v1390
        %v1392 = vpop.f32.mrf.mxu0
        %1393 = vmatprep.mubr.f32.mxu0 0.0
        %1394 = vmatmul.mubr.f32.gmra.mxu0 %v1316
        %v1395 = vpop.f32.mrf.mxu0
        %v1396 = vadd.f32 0.0, %v1395
        %v1397 = vpop.f32.mrf.mxu0
        %1398 = vdwg.mxu0
        %v1399 = vmul.f32 %v1391, 0.17677669
        %v1400 = vmul.f32 %v1396, 0.17677669
        %vm1401 = vcmask 130048
        %v1402 = vsel %vm1401, %v1399, -inf
        %1403 = vmax.xlane.f32.xlu0 %v1402
        %v1404 = vpop.xlane.xlu0 %1403
        %v1405 = vsel %vm1401, %v1400, -inf
        %1406 = vmax.xlane.f32.xlu0 %v1405
        %v1407 = vpop.xlane.xlu0 %1406
        %v1408 = vsub.f32 %v1399, %v1404
        %v1409 = vsub.f32 %v1400, %v1407
        %v1410 = vmul.f32 %v1408, 1.442695
        %v1411 = vpow.pop %v1410
        %v1412 = vmul.f32 %v1409, 1.442695
        %v1413 = vpow.pop %v1412
        %v1414 = vsel %vm1401, %v1411, 0.0
        %1415 = vadd.xlane.f32.xlu0 %v1414
        %v1416 = vpop.xlane.xlu0 %1415
        %v1417 = vsel %vm1401, %v1413, 0.0
        %1418 = vadd.xlane.f32.xlu0 %v1417
        %v1419 = vpop.xlane.xlu0 %1418
        %v1420 = vrcp.pop %v1416
        %v1421 = vrcp.pop %v1419
        %v1422 = vmul.f32 %v1411, %v1420
        %v1423 = vmul.f32 %v1413, %v1421
        %v1425 = vsel %vm1401, %v1422, 0
        %v1428 = vsel %vm1401, %v1423, 0
        %1430 = vmatprep.subr.mxu0 0.0
        %1431 = vmatpush1.msra.mxu0 0.0
        %1432 = vmatprep.subr.mxu0 0.0
        %1433 = vmatpush1.msra.mxu0 0.0
        %1434 = vmatprep.subr.mxu0 0.0
        %1435 = vmatpush1.msra.mxu0 0.0
        %1436 = vmatprep.subr.mxu0 0.0
        %1437 = vmatpush1.msra.mxu0 0.0
        %1438 = vmatprep.subr.mxu0 0.0
        %1439 = vmatpush1.msra.mxu0 0.0
        %1440 = vmatprep.subr.mxu0 0.0
        %1441 = vmatpush1.msra.mxu0 0.0
        %1442 = vmatprep.subr.mxu0 0.0
        %1443 = vmatpush1.msra.mxu0 0.0
        %1444 = vmatprep.subr.mxu0 0.0
        %1445 = vmatpush1.msra.mxu0 0.0
        %1446 = vmatprep.subr.mxu0 0.0
        %1447 = vmatpush1.msra.mxu0 0.0
        %1448 = vmatprep.subr.mxu0 0.0
        %1449 = vmatpush1.msra.mxu0 0.0
        %1450 = vmatprep.subr.mxu0 0.0
        %1451 = vmatpush1.msra.mxu0 0.0
        %1452 = vmatprep.subr.mxu0 0.0
        %1453 = vmatpush1.msra.mxu0 0.0
        %1454 = vmatprep.subr.mxu0 0.0
        %1455 = vmatpush1.msra.mxu0 0.0
        %1456 = vmatprep.subr.mxu0 0.0
        %1457 = vmatpush1.msra.mxu0 0.0
        %1458 = vmatprep.subr.mxu0 0.0
        %1459 = vmatpush1.msra.mxu0 %v1308
        %1460 = vmatprep.subr.mxu0 0.0
        %1461 = vmatpush1.msra.mxu0 %v1303
        %1462 = vmatprep.subr.mxu0 0.0
        %1463 = vmatpush2.msra.mxu0 0.0
        %1464 = vmatprep.subr.mxu0 0.0
        %1465 = vmatpush2.msra.mxu0 0.0
        %1466 = vmatprep.subr.mxu0 0.0
        %1467 = vmatpush2.msra.mxu0 0.0
        %1468 = vmatprep.subr.mxu0 0.0
        %1469 = vmatpush2.msra.mxu0 0.0
        %1470 = vmatprep.subr.mxu0 0.0
        %1471 = vmatpush2.msra.mxu0 0.0
        %1472 = vmatprep.subr.mxu0 0.0
        %1473 = vmatpush2.msra.mxu0 0.0
        %1474 = vmatprep.subr.mxu0 0.0
        %1475 = vmatpush2.msra.mxu0 0.0
        %1476 = vmatprep.subr.mxu0 0.0
        %1477 = vmatpush2.msra.mxu0 0.0
        %1478 = vmatprep.subr.mxu0 0.0
        %1479 = vmatpush2.msra.mxu0 0.0
        %1480 = vmatprep.subr.mxu0 0.0
        %1481 = vmatpush2.msra.mxu0 0.0
        %1482 = vmatprep.subr.mxu0 0.0
        %1483 = vmatpush2.msra.mxu0 0.0
        %1484 = vmatprep.subr.mxu0 0.0
        %1485 = vmatpush2.msra.mxu0 0.0
        %1486 = vmatprep.subr.mxu0 0.0
        %1487 = vmatpush2.msra.mxu0 0.0
        %1488 = vmatprep.subr.mxu0 0.0
        %1489 = vmatpush2.msra.mxu0 0.0
        %1490 = vmatprep.subr.mxu0 0.0
        %1491 = vmatpush2.msra.mxu0 0.0
        %1492 = vmatprep.subr.mxu0 0.0
        %1493 = vmatpush2.msra.mxu0 0.0
        %1494 = vmatprep.mubr.f32.mxu0 0.0
        %1495 = vmatmul.mubr.f32.gmra.mxu0 %v1425
        %v1496 = vpop.f32.mrf.mxu0
        %v1497 = vadd.f32 0.0, %v1496
        %v1498 = vpop.f32.mrf.mxu0
        %1499 = vmatprep.mubr.f32.mxu0 0.0
        %1500 = vmatmul.mubr.f32.gmra.mxu0 %v1428
        %v1501 = vpop.f32.mrf.mxu0
        %v1502 = vadd.f32 0.0, %v1501
        %v1503 = vpop.f32.mrf.mxu0
        %1504 = vdwg.mxu0
        %v1505 = vld [vmem:[%s792] sm:$0xff]
        %v1506 = vld [vmem:[%s792 + $0x8] sm:$0xff]
        %v1507 = vld [vmem:[%s792 + $0x10] sm:$0xff]
        %v1508 = vld [vmem:[%s792 + $0x18] sm:$0xff]
        %1509 = vrot.lane.b32.xlu0 %v1226, 96
        %v1510 = vpop.permute.xlu0 %1509
        %1511 = vrot.lane.b32.xlu0 %v1232, 96
        %v1512 = vpop.permute.xlu0 %1511
        %1513 = vrot.lane.b32.xlu0 %v1228, 96
        %v1514 = vpop.permute.xlu0 %1513
        %1515 = vrot.lane.b32.xlu0 %v1234, 96
        %v1516 = vpop.permute.xlu0 %1515
        %v1517 = vsel %vm1311, %v1510, 0
        %v1519 = vsel %vm1311, %v1512, 0
        %v1521 = vsel %vm1311, %v1514, 0
        %v1523 = vsel %vm1311, %v1516, 0
        %1525 = vmatprep.subr.mxu0 0.0
        %1526 = vmatpush1.xpose.msra.mxu0 0.0
        %1527 = vmatprep.subr.mxu0 0.0
        %1528 = vmatpush1.xpose.msra.mxu0 0.0
        %1529 = vmatprep.subr.mxu0 0.0
        %1530 = vmatpush1.xpose.msra.mxu0 0.0
        %1531 = vmatprep.subr.mxu0 0.0
        %1532 = vmatpush1.xpose.msra.mxu0 0.0
        %1533 = vmatprep.subr.mxu0 0.0
        %1534 = vmatpush1.xpose.msra.mxu0 0.0
        %1535 = vmatprep.subr.mxu0 0.0
        %1536 = vmatpush1.xpose.msra.mxu0 0.0
        %1537 = vmatprep.subr.mxu0 0.0
        %1538 = vmatpush1.xpose.msra.mxu0 0.0
        %1539 = vmatprep.subr.mxu0 0.0
        %1540 = vmatpush1.xpose.msra.mxu0 0.0
        %1541 = vmatprep.subr.mxu0 0.0
        %1542 = vmatpush1.xpose.msra.mxu0 0.0
        %1543 = vmatprep.subr.mxu0 0.0
        %1544 = vmatpush1.xpose.msra.mxu0 0.0
        %1545 = vmatprep.subr.mxu0 0.0
        %1546 = vmatpush1.xpose.msra.mxu0 0.0
        %1547 = vmatprep.subr.mxu0 0.0
        %1548 = vmatpush1.xpose.msra.mxu0 0.0
        %1549 = vmatprep.subr.mxu0 0.0
        %1550 = vmatpush1.xpose.msra.mxu0 0.0
        %1551 = vmatprep.subr.mxu0 0.0
        %1552 = vmatpush1.xpose.msra.mxu0 0.0
        %1553 = vmatprep.subr.mxu0 0.0
        %1554 = vmatpush1.xpose.msra.mxu0 %v1523
        %1555 = vmatprep.subr.mxu0 0.0
        %1556 = vmatpush1.xpose.msra.mxu0 %v1521
        %1557 = vmatprep.subr.mxu0 0.0
        %1558 = vmatpush2.xpose.msra.mxu0 0.0
        %1559 = vmatprep.subr.mxu0 0.0
        %1560 = vmatpush2.xpose.msra.mxu0 0.0
        %1561 = vmatprep.subr.mxu0 0.0
        %1562 = vmatpush2.xpose.msra.mxu0 0.0
        %1563 = vmatprep.subr.mxu0 0.0
        %1564 = vmatpush2.xpose.msra.mxu0 0.0
        %1565 = vmatprep.subr.mxu0 0.0
        %1566 = vmatpush2.xpose.msra.mxu0 0.0
        %1567 = vmatprep.subr.mxu0 0.0
        %1568 = vmatpush2.xpose.msra.mxu0 0.0
        %1569 = vmatprep.subr.mxu0 0.0
        %1570 = vmatpush2.xpose.msra.mxu0 0.0
        %1571 = vmatprep.subr.mxu0 0.0
        %1572 = vmatpush2.xpose.msra.mxu0 0.0
        %1573 = vmatprep.subr.mxu0 0.0
        %1574 = vmatpush2.xpose.msra.mxu0 0.0
        %1575 = vmatprep.subr.mxu0 0.0
        %1576 = vmatpush2.xpose.msra.mxu0 0.0
        %1577 = vmatprep.subr.mxu0 0.0
        %1578 = vmatpush2.xpose.msra.mxu0 0.0
        %1579 = vmatprep.subr.mxu0 0.0
        %1580 = vmatpush2.xpose.msra.mxu0 0.0
        %1581 = vmatprep.subr.mxu0 0.0
        %1582 = vmatpush2.xpose.msra.mxu0 0.0
        %1583 = vmatprep.subr.mxu0 0.0
        %1584 = vmatpush2.xpose.msra.mxu0 0.0
        %1585 = vmatprep.subr.mxu0 0.0
        %1586 = vmatpush2.xpose.msra.mxu0 0.0
        %1587 = vmatprep.subr.mxu0 0.0
        %1588 = vmatpush2.xpose.msra.mxu0 0.0
        %1589 = vmatprep.mubr.f32.mxu0 0.0
        %1590 = vmatmul.mubr.f32.gmra.mxu0 %v1517
        %v1591 = vpop.f32.mrf.mxu0
        %v1592 = vadd.f32 0.0, %v1591
        %v1593 = vpop.f32.mrf.mxu0
        %1594 = vmatprep.mubr.f32.mxu0 0.0
        %1595 = vmatmul.mubr.f32.gmra.mxu0 %v1519
        %v1596 = vpop.f32.mrf.mxu0
        %v1597 = vadd.f32 0.0, %v1596
        %v1598 = vpop.f32.mrf.mxu0
        %1599 = vdwg.mxu0
        %v1600 = vmul.f32 %v1592, 0.17677669
        %v1601 = vmul.f32 %v1597, 0.17677669
        %v1602 = vsel %vm1401, %v1600, -inf
        %1603 = vmax.xlane.f32.xlu0 %v1602
        %v1604 = vpop.xlane.xlu0 %1603
        %v1605 = vsel %vm1401, %v1601, -inf
        %1606 = vmax.xlane.f32.xlu0 %v1605
        %v1607 = vpop.xlane.xlu0 %1606
        %v1608 = vsub.f32 %v1600, %v1604
        %v1609 = vsub.f32 %v1601, %v1607
        %v1610 = vmul.f32 %v1608, 1.442695
        %v1611 = vpow.pop %v1610
        %v1612 = vmul.f32 %v1609, 1.442695
        %v1613 = vpow.pop %v1612
        %v1614 = vsel %vm1401, %v1611, 0.0
        %1615 = vadd.xlane.f32.xlu0 %v1614
        %v1616 = vpop.xlane.xlu0 %1615
        %v1617 = vsel %vm1401, %v1613, 0.0
        %1618 = vadd.xlane.f32.xlu0 %v1617
        %v1619 = vpop.xlane.xlu0 %1618
        %v1620 = vrcp.pop %v1616
        %v1621 = vrcp.pop %v1619
        %v1622 = vmul.f32 %v1611, %v1620
        %v1623 = vmul.f32 %v1613, %v1621
        %1626 = vrot.lane.b32.xlu0 %v1303, 96
        %v1627 = vpop.permute.xlu0 %1626
        %1628 = vrot.lane.b32.xlu0 %v1308, 96
        %v1629 = vpop.permute.xlu0 %1628
        %v1633 = vsel %vm1401, %v1622, 0
        %v1636 = vsel %vm1401, %v1623, 0
        %1638 = vmatprep.subr.mxu0 0.0
        %1639 = vmatpush1.msra.mxu0 0.0
        %1640 = vmatprep.subr.mxu0 0.0
        %1641 = vmatpush1.msra.mxu0 0.0
        %1642 = vmatprep.subr.mxu0 0.0
        %1643 = vmatpush1.msra.mxu0 0.0
        %1644 = vmatprep.subr.mxu0 0.0
        %1645 = vmatpush1.msra.mxu0 0.0
        %1646 = vmatprep.subr.mxu0 0.0
        %1647 = vmatpush1.msra.mxu0 0.0
        %1648 = vmatprep.subr.mxu0 0.0
        %1649 = vmatpush1.msra.mxu0 0.0
        %1650 = vmatprep.subr.mxu0 0.0
        %1651 = vmatpush1.msra.mxu0 0.0
        %1652 = vmatprep.subr.mxu0 0.0
        %1653 = vmatpush1.msra.mxu0 0.0
        %1654 = vmatprep.subr.mxu0 0.0
        %1655 = vmatpush1.msra.mxu0 0.0
        %1656 = vmatprep.subr.mxu0 0.0
        %1657 = vmatpush1.msra.mxu0 0.0
        %1658 = vmatprep.subr.mxu0 0.0
        %1659 = vmatpush1.msra.mxu0 0.0
        %1660 = vmatprep.subr.mxu0 0.0
        %1661 = vmatpush1.msra.mxu0 0.0
        %1662 = vmatprep.subr.mxu0 0.0
        %1663 = vmatpush1.msra.mxu0 0.0
        %1664 = vmatprep.subr.mxu0 0.0
        %1665 = vmatpush1.msra.mxu0 0.0
        %1666 = vmatprep.subr.mxu0 0.0
        %1667 = vmatpush1.msra.mxu0 %v1629
        %1668 = vmatprep.subr.mxu0 0.0
        %1669 = vmatpush1.msra.mxu0 %v1627
        %1670 = vmatprep.subr.mxu0 0.0
        %1671 = vmatpush2.msra.mxu0 0.0
        %1672 = vmatprep.subr.mxu0 0.0
        %1673 = vmatpush2.msra.mxu0 0.0
        %1674 = vmatprep.subr.mxu0 0.0
        %1675 = vmatpush2.msra.mxu0 0.0
        %1676 = vmatprep.subr.mxu0 0.0
        %1677 = vmatpush2.msra.mxu0 0.0
        %1678 = vmatprep.subr.mxu0 0.0
        %1679 = vmatpush2.msra.mxu0 0.0
        %1680 = vmatprep.subr.mxu0 0.0
        %1681 = vmatpush2.msra.mxu0 0.0
        %1682 = vmatprep.subr.mxu0 0.0
        %1683 = vmatpush2.msra.mxu0 0.0
        %1684 = vmatprep.subr.mxu0 0.0
        %1685 = vmatpush2.msra.mxu0 0.0
        %1686 = vmatprep.subr.mxu0 0.0
        %1687 = vmatpush2.msra.mxu0 0.0
        %1688 = vmatprep.subr.mxu0 0.0
        %1689 = vmatpush2.msra.mxu0 0.0
        %1690 = vmatprep.subr.mxu0 0.0
        %1691 = vmatpush2.msra.mxu0 0.0
        %1692 = vmatprep.subr.mxu0 0.0
        %1693 = vmatpush2.msra.mxu0 0.0
        %1694 = vmatprep.subr.mxu0 0.0
        %1695 = vmatpush2.msra.mxu0 0.0
        %1696 = vmatprep.subr.mxu0 0.0
        %1697 = vmatpush2.msra.mxu0 0.0
        %1698 = vmatprep.subr.mxu0 0.0
        %1699 = vmatpush2.msra.mxu0 0.0
        %1700 = vmatprep.subr.mxu0 0.0
        %1701 = vmatpush2.msra.mxu0 0.0
        %1702 = vmatprep.mubr.f32.mxu0 0.0
        %1703 = vmatmul.mubr.f32.gmra.mxu0 %v1633
        %v1704 = vpop.f32.mrf.mxu0
        %v1705 = vadd.f32 0.0, %v1704
        %v1706 = vpop.f32.mrf.mxu0
        %1707 = vmatprep.mubr.f32.mxu0 0.0
        %1708 = vmatmul.mubr.f32.gmra.mxu0 %v1636
        %v1709 = vpop.f32.mrf.mxu0
        %v1710 = vadd.f32 0.0, %v1709
        %v1711 = vpop.f32.mrf.mxu0
        %1712 = vdwg.mxu0
        %v1713 = vld [vmem:[%s792 + $0x20] sm:$0xff]
        %v1714 = vld [vmem:[%s792 + $0x28] sm:$0xff]
        %v1715 = vld [vmem:[%s792 + $0x30] sm:$0xff]
        %v1716 = vld [vmem:[%s792 + $0x38] sm:$0xff]
        %v1718 = vsel %vm1311, %v1705, 0
        %v1721 = vsel %vm1311, %v1710, 0
        %1723 = vmatprep.subr.mxu0 0.0
        %1724 = vmatpush1.msra.mxu0 0.0
        %1725 = vmatprep.subr.mxu0 0.0
        %1726 = vmatpush1.msra.mxu0 0.0
        %1727 = vmatprep.subr.mxu0 0.0
        %1728 = vmatpush1.msra.mxu0 0.0
        %1729 = vmatprep.subr.mxu0 0.0
        %1730 = vmatpush1.msra.mxu0 0.0
        %1731 = vmatprep.subr.mxu0 0.0
        %1732 = vmatpush1.msra.mxu0 0.0
        %1733 = vmatprep.subr.mxu0 0.0
        %1734 = vmatpush1.msra.mxu0 0.0
        %1735 = vmatprep.subr.mxu0 0.0
        %1736 = vmatpush1.msra.mxu0 0.0
        %1737 = vmatprep.subr.mxu0 0.0
        %1738 = vmatpush1.msra.mxu0 0.0
        %1739 = vmatprep.subr.mxu0 0.0
        %1740 = vmatpush1.msra.mxu0 0.0
        %1741 = vmatprep.subr.mxu0 0.0
        %1742 = vmatpush1.msra.mxu0 0.0
        %1743 = vmatprep.subr.mxu0 0.0
        %1744 = vmatpush1.msra.mxu0 0.0
        %1745 = vmatprep.subr.mxu0 0.0
        %1746 = vmatpush1.msra.mxu0 0.0
        %1747 = vmatprep.subr.mxu0 0.0
        %1748 = vmatpush1.msra.mxu0 %v1716
        %1749 = vmatprep.subr.mxu0 0.0
        %1750 = vmatpush1.msra.mxu0 %v1715
        %1751 = vmatprep.subr.mxu0 0.0
        %1752 = vmatpush1.msra.mxu0 %v1714
        %1753 = vmatprep.subr.mxu0 0.0
        %1754 = vmatpush1.msra.mxu0 %v1713
        %1755 = vmatprep.subr.mxu0 0.0
        %1756 = vmatpush2.msra.mxu0 0.0
        %1757 = vmatprep.subr.mxu0 0.0
        %1758 = vmatpush2.msra.mxu0 0.0
        %1759 = vmatprep.subr.mxu0 0.0
        %1760 = vmatpush2.msra.mxu0 0.0
        %1761 = vmatprep.subr.mxu0 0.0
        %1762 = vmatpush2.msra.mxu0 0.0
        %1763 = vmatprep.subr.mxu0 0.0
        %1764 = vmatpush2.msra.mxu0 0.0
        %1765 = vmatprep.subr.mxu0 0.0
        %1766 = vmatpush2.msra.mxu0 0.0
        %1767 = vmatprep.subr.mxu0 0.0
        %1768 = vmatpush2.msra.mxu0 0.0
        %1769 = vmatprep.subr.mxu0 0.0
        %1770 = vmatpush2.msra.mxu0 0.0
        %1771 = vmatprep.subr.mxu0 0.0
        %1772 = vmatpush2.msra.mxu0 0.0
        %1773 = vmatprep.subr.mxu0 0.0
        %1774 = vmatpush2.msra.mxu0 0.0
        %1775 = vmatprep.subr.mxu0 0.0
        %1776 = vmatpush2.msra.mxu0 0.0
        %1777 = vmatprep.subr.mxu0 0.0
        %1778 = vmatpush2.msra.mxu0 0.0
        %1779 = vmatprep.subr.mxu0 0.0
        %1780 = vmatpush2.msra.mxu0 0.0
        %1781 = vmatprep.subr.mxu0 0.0
        %1782 = vmatpush2.msra.mxu0 0.0
        %1783 = vmatprep.subr.mxu0 0.0
        %1784 = vmatpush2.msra.mxu0 0.0
        %1785 = vmatprep.subr.mxu0 0.0
        %1786 = vmatpush2.msra.mxu0 0.0
        %1787 = vmatprep.mubr.f32.mxu0 0.0
        %1788 = vmatmul.mubr.f32.gmra.mxu0 %v1718
        %v1789 = vpop.f32.mrf.mxu0
        %v1790 = vadd.f32 0.0, %v1789
        %v1791 = vpop.f32.mrf.mxu0
        %1792 = vmatprep.mubr.f32.mxu0 0.0
        %1793 = vmatmul.mubr.f32.gmra.mxu0 %v1721
        %v1794 = vpop.f32.mrf.mxu0
        %v1795 = vadd.f32 0.0, %v1794
        %v1796 = vpop.f32.mrf.mxu0
        %1797 = vdwg.mxu0
        %v1799 = vsel %vm1311, %v1497, 0
        %v1802 = vsel %vm1311, %v1502, 0
        %1804 = vmatprep.subr.mxu0 0.0
        %1805 = vmatpush1.msra.mxu0 0.0
        %1806 = vmatprep.subr.mxu0 0.0
        %1807 = vmatpush1.msra.mxu0 0.0
        %1808 = vmatprep.subr.mxu0 0.0
        %1809 = vmatpush1.msra.mxu0 0.0
        %1810 = vmatprep.subr.mxu0 0.0
        %1811 = vmatpush1.msra.mxu0 0.0
        %1812 = vmatprep.subr.mxu0 0.0
        %1813 = vmatpush1.msra.mxu0 0.0
        %1814 = vmatprep.subr.mxu0 0.0
        %1815 = vmatpush1.msra.mxu0 0.0
        %1816 = vmatprep.subr.mxu0 0.0
        %1817 = vmatpush1.msra.mxu0 0.0
        %1818 = vmatprep.subr.mxu0 0.0
        %1819 = vmatpush1.msra.mxu0 0.0
        %1820 = vmatprep.subr.mxu0 0.0
        %1821 = vmatpush1.msra.mxu0 0.0
        %1822 = vmatprep.subr.mxu0 0.0
        %1823 = vmatpush1.msra.mxu0 0.0
        %1824 = vmatprep.subr.mxu0 0.0
        %1825 = vmatpush1.msra.mxu0 0.0
        %1826 = vmatprep.subr.mxu0 0.0
        %1827 = vmatpush1.msra.mxu0 0.0
        %1828 = vmatprep.subr.mxu0 0.0
        %1829 = vmatpush1.msra.mxu0 %v1508
        %1830 = vmatprep.subr.mxu0 0.0
        %1831 = vmatpush1.msra.mxu0 %v1507
        %1832 = vmatprep.subr.mxu0 0.0
        %1833 = vmatpush1.msra.mxu0 %v1506
        %1834 = vmatprep.subr.mxu0 0.0
        %1835 = vmatpush1.msra.mxu0 %v1505
        %1836 = vmatprep.subr.mxu0 0.0
        %1837 = vmatpush2.msra.mxu0 0.0
        %1838 = vmatprep.subr.mxu0 0.0
        %1839 = vmatpush2.msra.mxu0 0.0
        %1840 = vmatprep.subr.mxu0 0.0
        %1841 = vmatpush2.msra.mxu0 0.0
        %1842 = vmatprep.subr.mxu0 0.0
        %1843 = vmatpush2.msra.mxu0 0.0
        %1844 = vmatprep.subr.mxu0 0.0
        %1845 = vmatpush2.msra.mxu0 0.0
        %1846 = vmatprep.subr.mxu0 0.0
        %1847 = vmatpush2.msra.mxu0 0.0
        %1848 = vmatprep.subr.mxu0 0.0
        %1849 = vmatpush2.msra.mxu0 0.0
        %1850 = vmatprep.subr.mxu0 0.0
        %1851 = vmatpush2.msra.mxu0 0.0
        %1852 = vmatprep.subr.mxu0 0.0
        %1853 = vmatpush2.msra.mxu0 0.0
        %1854 = vmatprep.subr.mxu0 0.0
        %1855 = vmatpush2.msra.mxu0 0.0
        %1856 = vmatprep.subr.mxu0 0.0
        %1857 = vmatpush2.msra.mxu0 0.0
        %1858 = vmatprep.subr.mxu0 0.0
        %1859 = vmatpush2.msra.mxu0 0.0
        %1860 = vmatprep.subr.mxu0 0.0
        %1861 = vmatpush2.msra.mxu0 0.0
        %1862 = vmatprep.subr.mxu0 0.0
        %1863 = vmatpush2.msra.mxu0 0.0
        %1864 = vmatprep.subr.mxu0 0.0
        %1865 = vmatpush2.msra.mxu0 0.0
        %1866 = vmatprep.subr.mxu0 0.0
        %1867 = vmatpush2.msra.mxu0 0.0
        %1868 = vmatprep.mubr.f32.mxu0 0.0
        %1869 = vmatmul.mubr.f32.gmra.mxu0 %v1799
        %v1870 = vpop.f32.mrf.mxu0
        %v1871 = vadd.f32 %v1790, %v1870
        %v1872 = vpop.f32.mrf.mxu0
        %1873 = vmatprep.mubr.f32.mxu0 0.0
        %1874 = vmatmul.mubr.f32.gmra.mxu0 %v1802
        %v1875 = vpop.f32.mrf.mxu0
        %v1876 = vadd.f32 %v1795, %v1875
        %v1877 = vpop.f32.mrf.mxu0
        %1878 = vdwg.mxu0
        %1879 = vrot.lane.b32.xlu0 %v1226, 64
        %v1880 = vpop.permute.xlu0 %1879
        %1881 = vrot.lane.b32.xlu0 %v1232, 64
        %v1882 = vpop.permute.xlu0 %1881
        %1883 = vrot.lane.b32.xlu0 %v1228, 64
        %v1884 = vpop.permute.xlu0 %1883
        %1885 = vrot.lane.b32.xlu0 %v1234, 64
        %v1886 = vpop.permute.xlu0 %1885
        %v1887 = vsel %vm1311, %v1880, 0
        %v1889 = vsel %vm1311, %v1882, 0
        %v1891 = vsel %vm1311, %v1884, 0
        %v1893 = vsel %vm1311, %v1886, 0
        %1895 = vmatprep.subr.mxu0 0.0
        %1896 = vmatpush1.xpose.msra.mxu0 0.0
        %1897 = vmatprep.subr.mxu0 0.0
        %1898 = vmatpush1.xpose.msra.mxu0 0.0
        %1899 = vmatprep.subr.mxu0 0.0
        %1900 = vmatpush1.xpose.msra.mxu0 0.0
        %1901 = vmatprep.subr.mxu0 0.0
        %1902 = vmatpush1.xpose.msra.mxu0 0.0
        %1903 = vmatprep.subr.mxu0 0.0
        %1904 = vmatpush1.xpose.msra.mxu0 0.0
        %1905 = vmatprep.subr.mxu0 0.0
        %1906 = vmatpush1.xpose.msra.mxu0 0.0
        %1907 = vmatprep.subr.mxu0 0.0
        %1908 = vmatpush1.xpose.msra.mxu0 0.0
        %1909 = vmatprep.subr.mxu0 0.0
        %1910 = vmatpush1.xpose.msra.mxu0 0.0
        %1911 = vmatprep.subr.mxu0 0.0
        %1912 = vmatpush1.xpose.msra.mxu0 0.0
        %1913 = vmatprep.subr.mxu0 0.0
        %1914 = vmatpush1.xpose.msra.mxu0 0.0
        %1915 = vmatprep.subr.mxu0 0.0
        %1916 = vmatpush1.xpose.msra.mxu0 0.0
        %1917 = vmatprep.subr.mxu0 0.0
        %1918 = vmatpush1.xpose.msra.mxu0 0.0
        %1919 = vmatprep.subr.mxu0 0.0
        %1920 = vmatpush1.xpose.msra.mxu0 0.0
        %1921 = vmatprep.subr.mxu0 0.0
        %1922 = vmatpush1.xpose.msra.mxu0 0.0
        %1923 = vmatprep.subr.mxu0 0.0
        %1924 = vmatpush1.xpose.msra.mxu0 %v1893
        %1925 = vmatprep.subr.mxu0 0.0
        %1926 = vmatpush1.xpose.msra.mxu0 %v1891
        %1927 = vmatprep.subr.mxu0 0.0
        %1928 = vmatpush2.xpose.msra.mxu0 0.0
        %1929 = vmatprep.subr.mxu0 0.0
        %1930 = vmatpush2.xpose.msra.mxu0 0.0
        %1931 = vmatprep.subr.mxu0 0.0
        %1932 = vmatpush2.xpose.msra.mxu0 0.0
        %1933 = vmatprep.subr.mxu0 0.0
        %1934 = vmatpush2.xpose.msra.mxu0 0.0
        %1935 = vmatprep.subr.mxu0 0.0
        %1936 = vmatpush2.xpose.msra.mxu0 0.0
        %1937 = vmatprep.subr.mxu0 0.0
        %1938 = vmatpush2.xpose.msra.mxu0 0.0
        %1939 = vmatprep.subr.mxu0 0.0
        %1940 = vmatpush2.xpose.msra.mxu0 0.0
        %1941 = vmatprep.subr.mxu0 0.0
        %1942 = vmatpush2.xpose.msra.mxu0 0.0
        %1943 = vmatprep.subr.mxu0 0.0
        %1944 = vmatpush2.xpose.msra.mxu0 0.0
        %1945 = vmatprep.subr.mxu0 0.0
        %1946 = vmatpush2.xpose.msra.mxu0 0.0
        %1947 = vmatprep.subr.mxu0 0.0
        %1948 = vmatpush2.xpose.msra.mxu0 0.0
        %1949 = vmatprep.subr.mxu0 0.0
        %1950 = vmatpush2.xpose.msra.mxu0 0.0
        %1951 = vmatprep.subr.mxu0 0.0
        %1952 = vmatpush2.xpose.msra.mxu0 0.0
        %1953 = vmatprep.subr.mxu0 0.0
        %1954 = vmatpush2.xpose.msra.mxu0 0.0
        %1955 = vmatprep.subr.mxu0 0.0
        %1956 = vmatpush2.xpose.msra.mxu0 0.0
        %1957 = vmatprep.subr.mxu0 0.0
        %1958 = vmatpush2.xpose.msra.mxu0 0.0
        %1959 = vmatprep.mubr.f32.mxu0 0.0
        %1960 = vmatmul.mubr.f32.gmra.mxu0 %v1887
        %v1961 = vpop.f32.mrf.mxu0
        %v1962 = vadd.f32 0.0, %v1961
        %v1963 = vpop.f32.mrf.mxu0
        %1964 = vmatprep.mubr.f32.mxu0 0.0
        %1965 = vmatmul.mubr.f32.gmra.mxu0 %v1889
        %v1966 = vpop.f32.mrf.mxu0
        %v1967 = vadd.f32 0.0, %v1966
        %v1968 = vpop.f32.mrf.mxu0
        %1969 = vdwg.mxu0
        %v1970 = vmul.f32 %v1962, 0.17677669
        %v1971 = vmul.f32 %v1967, 0.17677669
        %v1972 = vsel %vm1401, %v1970, -inf
        %1973 = vmax.xlane.f32.xlu0 %v1972
        %v1974 = vpop.xlane.xlu0 %1973
        %v1975 = vsel %vm1401, %v1971, -inf
        %1976 = vmax.xlane.f32.xlu0 %v1975
        %v1977 = vpop.xlane.xlu0 %1976
        %v1978 = vsub.f32 %v1970, %v1974
        %v1979 = vsub.f32 %v1971, %v1977
        %v1980 = vmul.f32 %v1978, 1.442695
        %v1981 = vpow.pop %v1980
        %v1982 = vmul.f32 %v1979, 1.442695
        %v1983 = vpow.pop %v1982
        %v1984 = vsel %vm1401, %v1981, 0.0
        %1985 = vadd.xlane.f32.xlu0 %v1984
        %v1986 = vpop.xlane.xlu0 %1985
        %v1987 = vsel %vm1401, %v1983, 0.0
        %1988 = vadd.xlane.f32.xlu0 %v1987
        %v1989 = vpop.xlane.xlu0 %1988
        %v1990 = vrcp.pop %v1986
        %v1991 = vrcp.pop %v1989
        %v1992 = vmul.f32 %v1981, %v1990
        %v1993 = vmul.f32 %v1983, %v1991
        %1994 = vrot.lane.b32.xlu0 %v1303, 64
        %v1995 = vpop.permute.xlu0 %1994
        %1996 = vrot.lane.b32.xlu0 %v1308, 64
        %v1997 = vpop.permute.xlu0 %1996
        %v2001 = vsel %vm1401, %v1992, 0
        %v2004 = vsel %vm1401, %v1993, 0
        %2006 = vmatprep.subr.mxu0 0.0
        %2007 = vmatpush1.msra.mxu0 0.0
        %2008 = vmatprep.subr.mxu0 0.0
        %2009 = vmatpush1.msra.mxu0 0.0
        %2010 = vmatprep.subr.mxu0 0.0
        %2011 = vmatpush1.msra.mxu0 0.0
        %2012 = vmatprep.subr.mxu0 0.0
        %2013 = vmatpush1.msra.mxu0 0.0
        %2014 = vmatprep.subr.mxu0 0.0
        %2015 = vmatpush1.msra.mxu0 0.0
        %2016 = vmatprep.subr.mxu0 0.0
        %2017 = vmatpush1.msra.mxu0 0.0
        %2018 = vmatprep.subr.mxu0 0.0
        %2019 = vmatpush1.msra.mxu0 0.0
        %2020 = vmatprep.subr.mxu0 0.0
        %2021 = vmatpush1.msra.mxu0 0.0
        %2022 = vmatprep.subr.mxu0 0.0
        %2023 = vmatpush1.msra.mxu0 0.0
        %2024 = vmatprep.subr.mxu0 0.0
        %2025 = vmatpush1.msra.mxu0 0.0
        %2026 = vmatprep.subr.mxu0 0.0
        %2027 = vmatpush1.msra.mxu0 0.0
        %2028 = vmatprep.subr.mxu0 0.0
        %2029 = vmatpush1.msra.mxu0 0.0
        %2030 = vmatprep.subr.mxu0 0.0
        %2031 = vmatpush1.msra.mxu0 0.0
        %2032 = vmatprep.subr.mxu0 0.0
        %2033 = vmatpush1.msra.mxu0 0.0
        %2034 = vmatprep.subr.mxu0 0.0
        %2035 = vmatpush1.msra.mxu0 %v1997
        %2036 = vmatprep.subr.mxu0 0.0
        %2037 = vmatpush1.msra.mxu0 %v1995
        %2038 = vmatprep.subr.mxu0 0.0
        %2039 = vmatpush2.msra.mxu0 0.0
        %2040 = vmatprep.subr.mxu0 0.0
        %2041 = vmatpush2.msra.mxu0 0.0
        %2042 = vmatprep.subr.mxu0 0.0
        %2043 = vmatpush2.msra.mxu0 0.0
        %2044 = vmatprep.subr.mxu0 0.0
        %2045 = vmatpush2.msra.mxu0 0.0
        %2046 = vmatprep.subr.mxu0 0.0
        %2047 = vmatpush2.msra.mxu0 0.0
        %2048 = vmatprep.subr.mxu0 0.0
        %2049 = vmatpush2.msra.mxu0 0.0
        %2050 = vmatprep.subr.mxu0 0.0
        %2051 = vmatpush2.msra.mxu0 0.0
        %2052 = vmatprep.subr.mxu0 0.0
        %2053 = vmatpush2.msra.mxu0 0.0
        %2054 = vmatprep.subr.mxu0 0.0
        %2055 = vmatpush2.msra.mxu0 0.0
        %2056 = vmatprep.subr.mxu0 0.0
        %2057 = vmatpush2.msra.mxu0 0.0
        %2058 = vmatprep.subr.mxu0 0.0
        %2059 = vmatpush2.msra.mxu0 0.0
        %2060 = vmatprep.subr.mxu0 0.0
        %2061 = vmatpush2.msra.mxu0 0.0
        %2062 = vmatprep.subr.mxu0 0.0
        %2063 = vmatpush2.msra.mxu0 0.0
        %2064 = vmatprep.subr.mxu0 0.0
        %2065 = vmatpush2.msra.mxu0 0.0
        %2066 = vmatprep.subr.mxu0 0.0
        %2067 = vmatpush2.msra.mxu0 0.0
        %2068 = vmatprep.subr.mxu0 0.0
        %2069 = vmatpush2.msra.mxu0 0.0
        %2070 = vmatprep.mubr.f32.mxu0 0.0
        %2071 = vmatmul.mubr.f32.gmra.mxu0 %v2001
        %v2072 = vpop.f32.mrf.mxu0
        %v2073 = vadd.f32 0.0, %v2072
        %v2074 = vpop.f32.mrf.mxu0
        %2075 = vmatprep.mubr.f32.mxu0 0.0
        %2076 = vmatmul.mubr.f32.gmra.mxu0 %v2004
        %v2077 = vpop.f32.mrf.mxu0
        %v2078 = vadd.f32 0.0, %v2077
        %v2079 = vpop.f32.mrf.mxu0
        %2080 = vdwg.mxu0
        %v2081 = vld [vmem:[%s792 + $0x40] sm:$0xff]
        %v2082 = vld [vmem:[%s792 + $0x48] sm:$0xff]
        %v2083 = vld [vmem:[%s792 + $0x50] sm:$0xff]
        %v2084 = vld [vmem:[%s792 + $0x58] sm:$0xff]
        %v2086 = vsel %vm1311, %v2073, 0
        %v2089 = vsel %vm1311, %v2078, 0
        %2091 = vmatprep.subr.mxu0 0.0
        %2092 = vmatpush1.msra.mxu0 0.0
        %2093 = vmatprep.subr.mxu0 0.0
        %2094 = vmatpush1.msra.mxu0 0.0
        %2095 = vmatprep.subr.mxu0 0.0
        %2096 = vmatpush1.msra.mxu0 0.0
        %2097 = vmatprep.subr.mxu0 0.0
        %2098 = vmatpush1.msra.mxu0 0.0
        %2099 = vmatprep.subr.mxu0 0.0
        %2100 = vmatpush1.msra.mxu0 0.0
        %2101 = vmatprep.subr.mxu0 0.0
        %2102 = vmatpush1.msra.mxu0 0.0
        %2103 = vmatprep.subr.mxu0 0.0
        %2104 = vmatpush1.msra.mxu0 0.0
        %2105 = vmatprep.subr.mxu0 0.0
        %2106 = vmatpush1.msra.mxu0 0.0
        %2107 = vmatprep.subr.mxu0 0.0
        %2108 = vmatpush1.msra.mxu0 0.0
        %2109 = vmatprep.subr.mxu0 0.0
        %2110 = vmatpush1.msra.mxu0 0.0
        %2111 = vmatprep.subr.mxu0 0.0
        %2112 = vmatpush1.msra.mxu0 0.0
        %2113 = vmatprep.subr.mxu0 0.0
        %2114 = vmatpush1.msra.mxu0 0.0
        %2115 = vmatprep.subr.mxu0 0.0
        %2116 = vmatpush1.msra.mxu0 %v2084
        %2117 = vmatprep.subr.mxu0 0.0
        %2118 = vmatpush1.msra.mxu0 %v2083
        %2119 = vmatprep.subr.mxu0 0.0
        %2120 = vmatpush1.msra.mxu0 %v2082
        %2121 = vmatprep.subr.mxu0 0.0
        %2122 = vmatpush1.msra.mxu0 %v2081
        %2123 = vmatprep.subr.mxu0 0.0
        %2124 = vmatpush2.msra.mxu0 0.0
        %2125 = vmatprep.subr.mxu0 0.0
        %2126 = vmatpush2.msra.mxu0 0.0
        %2127 = vmatprep.subr.mxu0 0.0
        %2128 = vmatpush2.msra.mxu0 0.0
        %2129 = vmatprep.subr.mxu0 0.0
        %2130 = vmatpush2.msra.mxu0 0.0
        %2131 = vmatprep.subr.mxu0 0.0
        %2132 = vmatpush2.msra.mxu0 0.0
        %2133 = vmatprep.subr.mxu0 0.0
        %2134 = vmatpush2.msra.mxu0 0.0
        %2135 = vmatprep.subr.mxu0 0.0
        %2136 = vmatpush2.msra.mxu0 0.0
        %2137 = vmatprep.subr.mxu0 0.0
        %2138 = vmatpush2.msra.mxu0 0.0
        %2139 = vmatprep.subr.mxu0 0.0
        %2140 = vmatpush2.msra.mxu0 0.0
        %2141 = vmatprep.subr.mxu0 0.0
        %2142 = vmatpush2.msra.mxu0 0.0
        %2143 = vmatprep.subr.mxu0 0.0
        %2144 = vmatpush2.msra.mxu0 0.0
        %2145 = vmatprep.subr.mxu0 0.0
        %2146 = vmatpush2.msra.mxu0 0.0
        %2147 = vmatprep.subr.mxu0 0.0
        %2148 = vmatpush2.msra.mxu0 0.0
        %2149 = vmatprep.subr.mxu0 0.0
        %2150 = vmatpush2.msra.mxu0 0.0
        %2151 = vmatprep.subr.mxu0 0.0
        %2152 = vmatpush2.msra.mxu0 0.0
        %2153 = vmatprep.subr.mxu0 0.0
        %2154 = vmatpush2.msra.mxu0 0.0
        %2155 = vmatprep.mubr.f32.mxu0 0.0
        %2156 = vmatmul.mubr.f32.gmra.mxu0 %v2086
        %v2157 = vpop.f32.mrf.mxu0
        %v2158 = vadd.f32 0.0, %v2157
        %v2159 = vpop.f32.mrf.mxu0
        %2160 = vmatprep.mubr.f32.mxu0 0.0
        %2161 = vmatmul.mubr.f32.gmra.mxu0 %v2089
        %v2162 = vpop.f32.mrf.mxu0
        %v2163 = vadd.f32 0.0, %v2162
        %v2164 = vpop.f32.mrf.mxu0
        %2165 = vdwg.mxu0
        %v2166 = vadd.f32 %v1871, %v2158
        %v2167 = vadd.f32 %v1876, %v2163
        %2168 = vrot.lane.b32.xlu0 %v1226, 32
        %v2169 = vpop.permute.xlu0 %2168
        %2170 = vrot.lane.b32.xlu0 %v1232, 32
        %v2171 = vpop.permute.xlu0 %2170
        %2172 = vrot.lane.b32.xlu0 %v1228, 32
        %v2173 = vpop.permute.xlu0 %2172
        %2174 = vrot.lane.b32.xlu0 %v1234, 32
        %v2175 = vpop.permute.xlu0 %2174
        %v2176 = vsel %vm1311, %v2169, 0
        %v2178 = vsel %vm1311, %v2171, 0
        %v2180 = vsel %vm1311, %v2173, 0
        %v2182 = vsel %vm1311, %v2175, 0
        %2184 = vmatprep.subr.mxu0 0.0
        %2185 = vmatpush1.xpose.msra.mxu0 0.0
        %2186 = vmatprep.subr.mxu0 0.0
        %2187 = vmatpush1.xpose.msra.mxu0 0.0
        %2188 = vmatprep.subr.mxu0 0.0
        %2189 = vmatpush1.xpose.msra.mxu0 0.0
        %2190 = vmatprep.subr.mxu0 0.0
        %2191 = vmatpush1.xpose.msra.mxu0 0.0
        %2192 = vmatprep.subr.mxu0 0.0
        %2193 = vmatpush1.xpose.msra.mxu0 0.0
        %2194 = vmatprep.subr.mxu0 0.0
        %2195 = vmatpush1.xpose.msra.mxu0 0.0
        %2196 = vmatprep.subr.mxu0 0.0
        %2197 = vmatpush1.xpose.msra.mxu0 0.0
        %2198 = vmatprep.subr.mxu0 0.0
        %2199 = vmatpush1.xpose.msra.mxu0 0.0
        %2200 = vmatprep.subr.mxu0 0.0
        %2201 = vmatpush1.xpose.msra.mxu0 0.0
        %2202 = vmatprep.subr.mxu0 0.0
        %2203 = vmatpush1.xpose.msra.mxu0 0.0
        %2204 = vmatprep.subr.mxu0 0.0
        %2205 = vmatpush1.xpose.msra.mxu0 0.0
        %2206 = vmatprep.subr.mxu0 0.0
        %2207 = vmatpush1.xpose.msra.mxu0 0.0
        %2208 = vmatprep.subr.mxu0 0.0
        %2209 = vmatpush1.xpose.msra.mxu0 0.0
        %2210 = vmatprep.subr.mxu0 0.0
        %2211 = vmatpush1.xpose.msra.mxu0 0.0
        %2212 = vmatprep.subr.mxu0 0.0
        %2213 = vmatpush1.xpose.msra.mxu0 %v2182
        %2214 = vmatprep.subr.mxu0 0.0
        %2215 = vmatpush1.xpose.msra.mxu0 %v2180
        %2216 = vmatprep.subr.mxu0 0.0
        %2217 = vmatpush2.xpose.msra.mxu0 0.0
        %2218 = vmatprep.subr.mxu0 0.0
        %2219 = vmatpush2.xpose.msra.mxu0 0.0
        %2220 = vmatprep.subr.mxu0 0.0
        %2221 = vmatpush2.xpose.msra.mxu0 0.0
        %2222 = vmatprep.subr.mxu0 0.0
        %2223 = vmatpush2.xpose.msra.mxu0 0.0
        %2224 = vmatprep.subr.mxu0 0.0
        %2225 = vmatpush2.xpose.msra.mxu0 0.0
        %2226 = vmatprep.subr.mxu0 0.0
        %2227 = vmatpush2.xpose.msra.mxu0 0.0
        %2228 = vmatprep.subr.mxu0 0.0
        %2229 = vmatpush2.xpose.msra.mxu0 0.0
        %2230 = vmatprep.subr.mxu0 0.0
        %2231 = vmatpush2.xpose.msra.mxu0 0.0
        %2232 = vmatprep.subr.mxu0 0.0
        %2233 = vmatpush2.xpose.msra.mxu0 0.0
        %2234 = vmatprep.subr.mxu0 0.0
        %2235 = vmatpush2.xpose.msra.mxu0 0.0
        %2236 = vmatprep.subr.mxu0 0.0
        %2237 = vmatpush2.xpose.msra.mxu0 0.0
        %2238 = vmatprep.subr.mxu0 0.0
        %2239 = vmatpush2.xpose.msra.mxu0 0.0
        %2240 = vmatprep.subr.mxu0 0.0
        %2241 = vmatpush2.xpose.msra.mxu0 0.0
        %2242 = vmatprep.subr.mxu0 0.0
        %2243 = vmatpush2.xpose.msra.mxu0 0.0
        %2244 = vmatprep.subr.mxu0 0.0
        %2245 = vmatpush2.xpose.msra.mxu0 0.0
        %2246 = vmatprep.subr.mxu0 0.0
        %2247 = vmatpush2.xpose.msra.mxu0 0.0
        %2248 = vmatprep.mubr.f32.mxu0 0.0
        %2249 = vmatmul.mubr.f32.gmra.mxu0 %v2176
        %v2250 = vpop.f32.mrf.mxu0
        %v2251 = vadd.f32 0.0, %v2250
        %v2252 = vpop.f32.mrf.mxu0
        %2253 = vmatprep.mubr.f32.mxu0 0.0
        %2254 = vmatmul.mubr.f32.gmra.mxu0 %v2178
        %v2255 = vpop.f32.mrf.mxu0
        %v2256 = vadd.f32 0.0, %v2255
        %v2257 = vpop.f32.mrf.mxu0
        %2258 = vdwg.mxu0
        %v2259 = vmul.f32 %v2251, 0.17677669
        %v2260 = vmul.f32 %v2256, 0.17677669
        %v2261 = vsel %vm1401, %v2259, -inf
        %2262 = vmax.xlane.f32.xlu0 %v2261
        %v2263 = vpop.xlane.xlu0 %2262
        %v2264 = vsel %vm1401, %v2260, -inf
        %2265 = vmax.xlane.f32.xlu0 %v2264
        %v2266 = vpop.xlane.xlu0 %2265
        %v2267 = vsub.f32 %v2259, %v2263
        %v2268 = vsub.f32 %v2260, %v2266
        %v2269 = vmul.f32 %v2267, 1.442695
        %v2270 = vpow.pop %v2269
        %v2271 = vmul.f32 %v2268, 1.442695
        %v2272 = vpow.pop %v2271
        %v2273 = vsel %vm1401, %v2270, 0.0
        %2274 = vadd.xlane.f32.xlu0 %v2273
        %v2275 = vpop.xlane.xlu0 %2274
        %v2276 = vsel %vm1401, %v2272, 0.0
        %2277 = vadd.xlane.f32.xlu0 %v2276
        %v2278 = vpop.xlane.xlu0 %2277
        %v2279 = vrcp.pop %v2275
        %v2280 = vrcp.pop %v2278
        %v2281 = vmul.f32 %v2270, %v2279
        %v2282 = vmul.f32 %v2272, %v2280
        %2283 = vrot.lane.b32.xlu0 %v1303, 32
        %v2284 = vpop.permute.xlu0 %2283
        %2285 = vrot.lane.b32.xlu0 %v1308, 32
        %v2286 = vpop.permute.xlu0 %2285
        %v2290 = vsel %vm1401, %v2281, 0
        %v2293 = vsel %vm1401, %v2282, 0
        %2295 = vmatprep.subr.mxu0 0.0
        %2296 = vmatpush1.msra.mxu0 0.0
        %2297 = vmatprep.subr.mxu0 0.0
        %2298 = vmatpush1.msra.mxu0 0.0
        %2299 = vmatprep.subr.mxu0 0.0
        %2300 = vmatpush1.msra.mxu0 0.0
        %2301 = vmatprep.subr.mxu0 0.0
        %2302 = vmatpush1.msra.mxu0 0.0
        %2303 = vmatprep.subr.mxu0 0.0
        %2304 = vmatpush1.msra.mxu0 0.0
        %2305 = vmatprep.subr.mxu0 0.0
        %2306 = vmatpush1.msra.mxu0 0.0
        %2307 = vmatprep.subr.mxu0 0.0
        %2308 = vmatpush1.msra.mxu0 0.0
        %2309 = vmatprep.subr.mxu0 0.0
        %2310 = vmatpush1.msra.mxu0 0.0
        %2311 = vmatprep.subr.mxu0 0.0
        %2312 = vmatpush1.msra.mxu0 0.0
        %2313 = vmatprep.subr.mxu0 0.0
        %2314 = vmatpush1.msra.mxu0 0.0
        %2315 = vmatprep.subr.mxu0 0.0
        %2316 = vmatpush1.msra.mxu0 0.0
        %2317 = vmatprep.subr.mxu0 0.0
        %2318 = vmatpush1.msra.mxu0 0.0
        %2319 = vmatprep.subr.mxu0 0.0
        %2320 = vmatpush1.msra.mxu0 0.0
        %2321 = vmatprep.subr.mxu0 0.0
        %2322 = vmatpush1.msra.mxu0 0.0
        %2323 = vmatprep.subr.mxu0 0.0
        %2324 = vmatpush1.msra.mxu0 %v2286
        %2325 = vmatprep.subr.mxu0 0.0
        %2326 = vmatpush1.msra.mxu0 %v2284
        %2327 = vmatprep.subr.mxu0 0.0
        %2328 = vmatpush2.msra.mxu0 0.0
        %2329 = vmatprep.subr.mxu0 0.0
        %2330 = vmatpush2.msra.mxu0 0.0
        %2331 = vmatprep.subr.mxu0 0.0
        %2332 = vmatpush2.msra.mxu0 0.0
        %2333 = vmatprep.subr.mxu0 0.0
        %2334 = vmatpush2.msra.mxu0 0.0
        %2335 = vmatprep.subr.mxu0 0.0
        %2336 = vmatpush2.msra.mxu0 0.0
        %2337 = vmatprep.subr.mxu0 0.0
        %2338 = vmatpush2.msra.mxu0 0.0
        %2339 = vmatprep.subr.mxu0 0.0
        %2340 = vmatpush2.msra.mxu0 0.0
        %2341 = vmatprep.subr.mxu0 0.0
        %2342 = vmatpush2.msra.mxu0 0.0
        %2343 = vmatprep.subr.mxu0 0.0
        %2344 = vmatpush2.msra.mxu0 0.0
        %2345 = vmatprep.subr.mxu0 0.0
        %2346 = vmatpush2.msra.mxu0 0.0
        %2347 = vmatprep.subr.mxu0 0.0
        %2348 = vmatpush2.msra.mxu0 0.0
        %2349 = vmatprep.subr.mxu0 0.0
        %2350 = vmatpush2.msra.mxu0 0.0
        %2351 = vmatprep.subr.mxu0 0.0
        %2352 = vmatpush2.msra.mxu0 0.0
        %2353 = vmatprep.subr.mxu0 0.0
        %2354 = vmatpush2.msra.mxu0 0.0
        %2355 = vmatprep.subr.mxu0 0.0
        %2356 = vmatpush2.msra.mxu0 0.0
        %2357 = vmatprep.subr.mxu0 0.0
        %2358 = vmatpush2.msra.mxu0 0.0
        %2359 = vmatprep.mubr.f32.mxu0 0.0
        %2360 = vmatmul.mubr.f32.gmra.mxu0 %v2290
        %v2361 = vpop.f32.mrf.mxu0
        %v2362 = vadd.f32 0.0, %v2361
        %v2363 = vpop.f32.mrf.mxu0
        %2364 = vmatprep.mubr.f32.mxu0 0.0
        %2365 = vmatmul.mubr.f32.gmra.mxu0 %v2293
        %v2366 = vpop.f32.mrf.mxu0
        %v2367 = vadd.f32 0.0, %v2366
        %v2368 = vpop.f32.mrf.mxu0
        %2369 = vdwg.mxu0
        %v2370 = vld [vmem:[%s792 + $0x60] sm:$0xff]
        %v2371 = vld [vmem:[%s792 + $0x68] sm:$0xff]
        %v2372 = vld [vmem:[%s792 + $0x70] sm:$0xff]
        %v2373 = vld [vmem:[%s792 + $0x78] sm:$0xff]
        %v2375 = vsel %vm1311, %v2362, 0
        %v2378 = vsel %vm1311, %v2367, 0
        %2380 = vmatprep.subr.mxu0 0.0
        %2381 = vmatpush1.msra.mxu0 0.0
        %2382 = vmatprep.subr.mxu0 0.0
        %2383 = vmatpush1.msra.mxu0 0.0
        %2384 = vmatprep.subr.mxu0 0.0
        %2385 = vmatpush1.msra.mxu0 0.0
        %2386 = vmatprep.subr.mxu0 0.0
        %2387 = vmatpush1.msra.mxu0 0.0
        %2388 = vmatprep.subr.mxu0 0.0
        %2389 = vmatpush1.msra.mxu0 0.0
        %2390 = vmatprep.subr.mxu0 0.0
        %2391 = vmatpush1.msra.mxu0 0.0
        %2392 = vmatprep.subr.mxu0 0.0
        %2393 = vmatpush1.msra.mxu0 0.0
        %2394 = vmatprep.subr.mxu0 0.0
        %2395 = vmatpush1.msra.mxu0 0.0
        %2396 = vmatprep.subr.mxu0 0.0
        %2397 = vmatpush1.msra.mxu0 0.0
        %2398 = vmatprep.subr.mxu0 0.0
        %2399 = vmatpush1.msra.mxu0 0.0
        %2400 = vmatprep.subr.mxu0 0.0
        %2401 = vmatpush1.msra.mxu0 0.0
        %2402 = vmatprep.subr.mxu0 0.0
        %2403 = vmatpush1.msra.mxu0 0.0
        %2404 = vmatprep.subr.mxu0 0.0
        %2405 = vmatpush1.msra.mxu0 %v2373
        %2406 = vmatprep.subr.mxu0 0.0
        %2407 = vmatpush1.msra.mxu0 %v2372
        %2408 = vmatprep.subr.mxu0 0.0
        %2409 = vmatpush1.msra.mxu0 %v2371
        %2410 = vmatprep.subr.mxu0 0.0
        %2411 = vmatpush1.msra.mxu0 %v2370
        %2412 = vmatprep.subr.mxu0 0.0
        %2413 = vmatpush2.msra.mxu0 0.0
        %2414 = vmatprep.subr.mxu0 0.0
        %2415 = vmatpush2.msra.mxu0 0.0
        %2416 = vmatprep.subr.mxu0 0.0
        %2417 = vmatpush2.msra.mxu0 0.0
        %2418 = vmatprep.subr.mxu0 0.0
        %2419 = vmatpush2.msra.mxu0 0.0
        %2420 = vmatprep.subr.mxu0 0.0
        %2421 = vmatpush2.msra.mxu0 0.0
        %2422 = vmatprep.subr.mxu0 0.0
        %2423 = vmatpush2.msra.mxu0 0.0
        %2424 = vmatprep.subr.mxu0 0.0
        %2425 = vmatpush2.msra.mxu0 0.0
        %2426 = vmatprep.subr.mxu0 0.0
        %2427 = vmatpush2.msra.mxu0 0.0
        %2428 = vmatprep.subr.mxu0 0.0
        %2429 = vmatpush2.msra.mxu0 0.0
        %2430 = vmatprep.subr.mxu0 0.0
        %2431 = vmatpush2.msra.mxu0 0.0
        %2432 = vmatprep.subr.mxu0 0.0
        %2433 = vmatpush2.msra.mxu0 0.0
        %2434 = vmatprep.subr.mxu0 0.0
        %2435 = vmatpush2.msra.mxu0 0.0
        %2436 = vmatprep.subr.mxu0 0.0
        %2437 = vmatpush2.msra.mxu0 0.0
        %2438 = vmatprep.subr.mxu0 0.0
        %2439 = vmatpush2.msra.mxu0 0.0
        %2440 = vmatprep.subr.mxu0 0.0
        %2441 = vmatpush2.msra.mxu0 0.0
        %2442 = vmatprep.subr.mxu0 0.0
        %2443 = vmatpush2.msra.mxu0 0.0
        %2444 = vmatprep.mubr.f32.mxu0 0.0
        %2445 = vmatmul.mubr.f32.gmra.mxu0 %v2375
        %v2446 = vpop.f32.mrf.mxu0
        %v2447 = vadd.f32 0.0, %v2446
        %v2448 = vpop.f32.mrf.mxu0
        %2449 = vmatprep.mubr.f32.mxu0 0.0
        %2450 = vmatmul.mubr.f32.gmra.mxu0 %v2378
        %v2451 = vpop.f32.mrf.mxu0
        %v2452 = vadd.f32 0.0, %v2451
        %v2453 = vpop.f32.mrf.mxu0
        %2454 = vdwg.mxu0
        %v2455 = vadd.f32 %v2166, %v2447
        %v2456 = vadd.f32 %v2167, %v2452
        %v2457 = vadd.f32 %v1051, %v2455
        %v2458 = vadd.f32 %v1052, %v2456
        %v2459 = vld [vmem:[%s800] sm:$0x1]
        %v2461 = vlaneseq
        %v2462 = vshrl.u32 %v2461, 7
        %v2463 = vsub.s32 0, %v2462
        %v2464 = vrot.slane %v2459, %v2463
        %v2466 = vadd.f32 %v2457, %v2464
        %v2467 = vadd.f32 %v2458, %v2464
        %v2468 = vld [vmem:[%s808] sm:$0x1]
        %v2469 = vld [vmem:[%s942] sm:$0x1]
        %2470 = vadd.xlane.f32.xlu0 %v2466
        %v2471 = vpop.xlane.xlu0 %2470
        %2472 = vadd.xlane.f32.xlu0 %v2467
        %v2473 = vpop.xlane.xlu0 %2472
        %v2474 = vmul.f32 %v2471, %v1059
        %v2475 = vmul.f32 %v2473, %v1059
        %v2476 = vsub.f32 %v2466, %v2474
        %v2477 = vsub.f32 %v2467, %v2475
        %v2478 = vmul.f32 %v2476, %v2476
        %v2479 = vmul.f32 %v2477, %v2477
        %2480 = vadd.xlane.f32.xlu0 %v2478
        %v2481 = vpop.xlane.xlu0 %2480
        %2482 = vadd.xlane.f32.xlu0 %v2479
        %v2483 = vpop.xlane.xlu0 %2482
        %v2484 = vmul.f32 %v2481, %v1059
        %v2485 = vmul.f32 %v2483, %v1059
        %v2486 = vadd.f32 %v2484, 1e-05
        %v2487 = vadd.f32 %v2485, 1e-05
        %v2488 = vrsqrt.pop %v2486
        %v2489 = vrsqrt.pop %v2487
        %v2490 = vmul.f32 %v2476, %v2488
        %v2491 = vmul.f32 %v2477, %v2489
        %v2493 = vlaneseq
        %v2494 = vshrl.u32 %v2493, 7
        %v2495 = vsub.s32 0, %v2494
        %v2496 = vrot.slane %v2468, %v2495
        %v2498 = vmul.f32 %v2490, %v2496
        %v2499 = vmul.f32 %v2491, %v2496
        %v2501 = vlaneseq
        %v2502 = vshrl.u32 %v2501, 7
        %v2503 = vsub.s32 0, %v2502
        %v2504 = vrot.slane %v2469, %v2503
        %v2506 = vadd.f32 %v2498, %v2504
        %v2507 = vadd.f32 %v2499, %v2504
        %v2508 = vld [vmem:[%s817] sm:$0xff]
        %v2509 = vld [vmem:[%s817 + $0x8] sm:$0xff]
        %v2510 = vld [vmem:[%s817 + $0x10] sm:$0xff]
        %v2511 = vld [vmem:[%s817 + $0x18] sm:$0xff]
        %v2512 = vld [vmem:[%s817 + $0x20] sm:$0xff]
        %v2513 = vld [vmem:[%s817 + $0x28] sm:$0xff]
        %v2514 = vld [vmem:[%s817 + $0x30] sm:$0xff]
        %v2515 = vld [vmem:[%s817 + $0x38] sm:$0xff]
        %v2516 = vld [vmem:[%s817 + $0x40] sm:$0xff]
        %v2517 = vld [vmem:[%s817 + $0x48] sm:$0xff]
        %v2518 = vld [vmem:[%s817 + $0x50] sm:$0xff]
        %v2519 = vld [vmem:[%s817 + $0x58] sm:$0xff]
        %v2520 = vld [vmem:[%s817 + $0x60] sm:$0xff]
        %v2521 = vld [vmem:[%s817 + $0x68] sm:$0xff]
        %v2522 = vld [vmem:[%s817 + $0x70] sm:$0xff]
        %v2523 = vld [vmem:[%s817 + $0x78] sm:$0xff]
        %v2524 = vld [vmem:[%s817 + $0x80] sm:$0xff]
        %v2525 = vld [vmem:[%s817 + $0x88] sm:$0xff]
        %v2526 = vld [vmem:[%s817 + $0x90] sm:$0xff]
        %v2527 = vld [vmem:[%s817 + $0x98] sm:$0xff]
        %v2528 = vld [vmem:[%s817 + $0xa0] sm:$0xff]
        %v2529 = vld [vmem:[%s817 + $0xa8] sm:$0xff]
        %v2530 = vld [vmem:[%s817 + $0xb0] sm:$0xff]
        %v2531 = vld [vmem:[%s817 + $0xb8] sm:$0xff]
        %v2532 = vld [vmem:[%s817 + $0xc0] sm:$0xff]
        %v2533 = vld [vmem:[%s817 + $0xc8] sm:$0xff]
        %v2534 = vld [vmem:[%s817 + $0xd0] sm:$0xff]
        %v2535 = vld [vmem:[%s817 + $0xd8] sm:$0xff]
        %v2536 = vld [vmem:[%s817 + $0xe0] sm:$0xff]
        %v2537 = vld [vmem:[%s817 + $0xe8] sm:$0xff]
        %v2538 = vld [vmem:[%s817 + $0xf0] sm:$0xff]
        %v2539 = vld [vmem:[%s817 + $0xf8] sm:$0xff]
        %v2540 = vld [vmem:[%s817 + $0x100] sm:$0xff]
        %v2541 = vld [vmem:[%s817 + $0x108] sm:$0xff]
        %v2542 = vld [vmem:[%s817 + $0x110] sm:$0xff]
        %v2543 = vld [vmem:[%s817 + $0x118] sm:$0xff]
        %v2544 = vld [vmem:[%s817 + $0x120] sm:$0xff]
        %v2545 = vld [vmem:[%s817 + $0x128] sm:$0xff]
        %v2546 = vld [vmem:[%s817 + $0x130] sm:$0xff]
        %v2547 = vld [vmem:[%s817 + $0x138] sm:$0xff]
        %v2548 = vld [vmem:[%s817 + $0x140] sm:$0xff]
        %v2549 = vld [vmem:[%s817 + $0x148] sm:$0xff]
        %v2550 = vld [vmem:[%s817 + $0x150] sm:$0xff]
        %v2551 = vld [vmem:[%s817 + $0x158] sm:$0xff]
        %v2552 = vld [vmem:[%s817 + $0x160] sm:$0xff]
        %v2553 = vld [vmem:[%s817 + $0x168] sm:$0xff]
        %v2554 = vld [vmem:[%s817 + $0x170] sm:$0xff]
        %v2555 = vld [vmem:[%s817 + $0x178] sm:$0xff]
        %v2556 = vld [vmem:[%s817 + $0x180] sm:$0xff]
        %v2557 = vld [vmem:[%s817 + $0x188] sm:$0xff]
        %v2558 = vld [vmem:[%s817 + $0x190] sm:$0xff]
        %v2559 = vld [vmem:[%s817 + $0x198] sm:$0xff]
        %v2560 = vld [vmem:[%s817 + $0x1a0] sm:$0xff]
        %v2561 = vld [vmem:[%s817 + $0x1a8] sm:$0xff]
        %v2562 = vld [vmem:[%s817 + $0x1b0] sm:$0xff]
        %v2563 = vld [vmem:[%s817 + $0x1b8] sm:$0xff]
        %v2564 = vld [vmem:[%s817 + $0x1c0] sm:$0xff]
        %v2565 = vld [vmem:[%s817 + $0x1c8] sm:$0xff]
        %v2566 = vld [vmem:[%s817 + $0x1d0] sm:$0xff]
        %v2567 = vld [vmem:[%s817 + $0x1d8] sm:$0xff]
        %v2568 = vld [vmem:[%s817 + $0x1e0] sm:$0xff]
        %v2569 = vld [vmem:[%s817 + $0x1e8] sm:$0xff]
        %v2570 = vld [vmem:[%s817 + $0x1f0] sm:$0xff]
        %v2571 = vld [vmem:[%s817 + $0x1f8] sm:$0xff]
        %v2572 = vld [vmem:[%s946] sm:$0xf]
        %v2574 = vlaneseq
        %v2575 = vshrl.u32 %v2574, 7
        %v2576 = vsub.s32 0, %v2575
        %v2577 = vrot.slane %v2572, %v2576
        %v2578 = vlaneseq
        %v2579 = vshrl.u32 %v2578, 7
        %v2580 = vsub.s32 1, %v2579
        %v2581 = vrot.slane %v2572, %v2580
        %v2582 = vlaneseq
        %v2583 = vshrl.u32 %v2582, 7
        %v2584 = vsub.s32 2, %v2583
        %v2585 = vrot.slane %v2572, %v2584
        %v2586 = vlaneseq
        %v2587 = vshrl.u32 %v2586, 7
        %v2588 = vsub.s32 3, %v2587
        %v2589 = vrot.slane %v2572, %v2588
        %2594 = vmatprep.subr.mxu0 %v2569
        %2595 = vmatpush1.msra.mxu0 %v2568
        %2596 = vmatprep.subr.mxu0 %v2565
        %2597 = vmatpush1.msra.mxu0 %v2564
        %2598 = vmatprep.subr.mxu0 %v2561
        %2599 = vmatpush1.msra.mxu0 %v2560
        %2600 = vmatprep.subr.mxu0 %v2557
        %2601 = vmatpush1.msra.mxu0 %v2556
        %2602 = vmatprep.subr.mxu0 %v2553
        %2603 = vmatpush1.msra.mxu0 %v2552
        %2604 = vmatprep.subr.mxu0 %v2549
        %2605 = vmatpush1.msra.mxu0 %v2548
        %2606 = vmatprep.subr.mxu0 %v2545
        %2607 = vmatpush1.msra.mxu0 %v2544
        %2608 = vmatprep.subr.mxu0 %v2541
        %2609 = vmatpush1.msra.mxu0 %v2540
        %2610 = vmatprep.subr.mxu0 %v2537
        %2611 = vmatpush1.msra.mxu0 %v2536
        %2612 = vmatprep.subr.mxu0 %v2533
        %2613 = vmatpush1.msra.mxu0 %v2532
        %2614 = vmatprep.subr.mxu0 %v2529
        %2615 = vmatpush1.msra.mxu0 %v2528
        %2616 = vmatprep.subr.mxu0 %v2525
        %2617 = vmatpush1.msra.mxu0 %v2524
        %2618 = vmatprep.subr.mxu0 %v2521
        %2619 = vmatpush1.msra.mxu0 %v2520
        %2620 = vmatprep.subr.mxu0 %v2517
        %2621 = vmatpush1.msra.mxu0 %v2516
        %2622 = vmatprep.subr.mxu0 %v2513
        %2623 = vmatpush1.msra.mxu0 %v2512
        %2624 = vmatprep.subr.mxu0 %v2509
        %2625 = vmatpush1.msra.mxu0 %v2508
        %2626 = vmatprep.subr.mxu0 0.0
        %2627 = vmatpush2.msra.mxu0 0.0
        %2628 = vmatprep.subr.mxu0 0.0
        %2629 = vmatpush2.msra.mxu0 0.0
        %2630 = vmatprep.subr.mxu0 0.0
        %2631 = vmatpush2.msra.mxu0 0.0
        %2632 = vmatprep.subr.mxu0 0.0
        %2633 = vmatpush2.msra.mxu0 0.0
        %2634 = vmatprep.subr.mxu0 0.0
        %2635 = vmatpush2.msra.mxu0 0.0
        %2636 = vmatprep.subr.mxu0 0.0
        %2637 = vmatpush2.msra.mxu0 0.0
        %2638 = vmatprep.subr.mxu0 0.0
        %2639 = vmatpush2.msra.mxu0 0.0
        %2640 = vmatprep.subr.mxu0 0.0
        %2641 = vmatpush2.msra.mxu0 0.0
        %2642 = vmatprep.subr.mxu0 0.0
        %2643 = vmatpush2.msra.mxu0 0.0
        %2644 = vmatprep.subr.mxu0 0.0
        %2645 = vmatpush2.msra.mxu0 0.0
        %2646 = vmatprep.subr.mxu0 0.0
        %2647 = vmatpush2.msra.mxu0 0.0
        %2648 = vmatprep.subr.mxu0 0.0
        %2649 = vmatpush2.msra.mxu0 0.0
        %2650 = vmatprep.subr.mxu0 0.0
        %2651 = vmatpush2.msra.mxu0 0.0
        %2652 = vmatprep.subr.mxu0 0.0
        %2653 = vmatpush2.msra.mxu0 0.0
        %2654 = vmatprep.subr.mxu0 0.0
        %2655 = vmatpush2.msra.mxu0 0.0
        %2656 = vmatprep.subr.mxu0 0.0
        %2657 = vmatpush2.msra.mxu0 0.0
        %2658 = vmatprep.mubr.f32.mxu0 0.0
        %2659 = vmatmul.mubr.f32.gmra.mxu0 %v2506
        %v2660 = vpop.f32.mrf.mxu0
        %v2661 = vadd.f32 %v2577, %v2660
        %v2662 = vpop.f32.mrf.mxu0
        %v2663 = vadd.f32 %v2581, %v2662
        %2664 = vmatprep.mubr.f32.mxu0 0.0
        %2665 = vmatmul.mubr.f32.gmra.mxu0 %v2507
        %v2666 = vpop.f32.mrf.mxu0
        %v2667 = vadd.f32 %v2577, %v2666
        %v2668 = vpop.f32.mrf.mxu0
        %v2669 = vadd.f32 %v2581, %v2668
        %2670 = vdwg.mxu0
        %2671 = vmatprep.subr.mxu0 %v2571
        %2672 = vmatpush1.msra.mxu0 %v2570
        %2673 = vmatprep.subr.mxu0 %v2567
        %2674 = vmatpush1.msra.mxu0 %v2566
        %2675 = vmatprep.subr.mxu0 %v2563
        %2676 = vmatpush1.msra.mxu0 %v2562
        %2677 = vmatprep.subr.mxu0 %v2559
        %2678 = vmatpush1.msra.mxu0 %v2558
        %2679 = vmatprep.subr.mxu0 %v2555
        %2680 = vmatpush1.msra.mxu0 %v2554
        %2681 = vmatprep.subr.mxu0 %v2551
        %2682 = vmatpush1.msra.mxu0 %v2550
        %2683 = vmatprep.subr.mxu0 %v2547
        %2684 = vmatpush1.msra.mxu0 %v2546
        %2685 = vmatprep.subr.mxu0 %v2543
        %2686 = vmatpush1.msra.mxu0 %v2542
        %2687 = vmatprep.subr.mxu0 %v2539
        %2688 = vmatpush1.msra.mxu0 %v2538
        %2689 = vmatprep.subr.mxu0 %v2535
        %2690 = vmatpush1.msra.mxu0 %v2534
        %2691 = vmatprep.subr.mxu0 %v2531
        %2692 = vmatpush1.msra.mxu0 %v2530
        %2693 = vmatprep.subr.mxu0 %v2527
        %2694 = vmatpush1.msra.mxu0 %v2526
        %2695 = vmatprep.subr.mxu0 %v2523
        %2696 = vmatpush1.msra.mxu0 %v2522
        %2697 = vmatprep.subr.mxu0 %v2519
        %2698 = vmatpush1.msra.mxu0 %v2518
        %2699 = vmatprep.subr.mxu0 %v2515
        %2700 = vmatpush1.msra.mxu0 %v2514
        %2701 = vmatprep.subr.mxu0 %v2511
        %2702 = vmatpush1.msra.mxu0 %v2510
        %2703 = vmatprep.subr.mxu0 0.0
        %2704 = vmatpush2.msra.mxu0 0.0
        %2705 = vmatprep.subr.mxu0 0.0
        %2706 = vmatpush2.msra.mxu0 0.0
        %2707 = vmatprep.subr.mxu0 0.0
        %2708 = vmatpush2.msra.mxu0 0.0
        %2709 = vmatprep.subr.mxu0 0.0
        %2710 = vmatpush2.msra.mxu0 0.0
        %2711 = vmatprep.subr.mxu0 0.0
        %2712 = vmatpush2.msra.mxu0 0.0
        %2713 = vmatprep.subr.mxu0 0.0
        %2714 = vmatpush2.msra.mxu0 0.0
        %2715 = vmatprep.subr.mxu0 0.0
        %2716 = vmatpush2.msra.mxu0 0.0
        %2717 = vmatprep.subr.mxu0 0.0
        %2718 = vmatpush2.msra.mxu0 0.0
        %2719 = vmatprep.subr.mxu0 0.0
        %2720 = vmatpush2.msra.mxu0 0.0
        %2721 = vmatprep.subr.mxu0 0.0
        %2722 = vmatpush2.msra.mxu0 0.0
        %2723 = vmatprep.subr.mxu0 0.0
        %2724 = vmatpush2.msra.mxu0 0.0
        %2725 = vmatprep.subr.mxu0 0.0
        %2726 = vmatpush2.msra.mxu0 0.0
        %2727 = vmatprep.subr.mxu0 0.0
        %2728 = vmatpush2.msra.mxu0 0.0
        %2729 = vmatprep.subr.mxu0 0.0
        %2730 = vmatpush2.msra.mxu0 0.0
        %2731 = vmatprep.subr.mxu0 0.0
        %2732 = vmatpush2.msra.mxu0 0.0
        %2733 = vmatprep.subr.mxu0 0.0
        %2734 = vmatpush2.msra.mxu0 0.0
        %2735 = vmatprep.mubr.f32.mxu0 0.0
        %2736 = vmatmul.mubr.f32.gmra.mxu0 %v2506
        %v2737 = vpop.f32.mrf.mxu0
        %v2738 = vadd.f32 %v2585, %v2737
        %v2739 = vpop.f32.mrf.mxu0
        %v2740 = vadd.f32 %v2589, %v2739
        %2741 = vmatprep.mubr.f32.mxu0 0.0
        %2742 = vmatmul.mubr.f32.gmra.mxu0 %v2507
        %v2743 = vpop.f32.mrf.mxu0
        %v2744 = vadd.f32 %v2585, %v2743
        %v2745 = vpop.f32.mrf.mxu0
        %v2746 = vadd.f32 %v2589, %v2745
        %2747 = vdwg.mxu0
        %v2748 = vmul.f32 %v2661, 0.5
        %v2749 = vmul.f32 %v2663, 0.5
        %v2750 = vmul.f32 %v2738, 0.5
        %v2751 = vmul.f32 %v2740, 0.5
        %v2752 = vmul.f32 %v2667, 0.5
        %v2753 = vmul.f32 %v2669, 0.5
        %v2754 = vmul.f32 %v2744, 0.5
        %v2755 = vmul.f32 %v2746, 0.5
        %v2756 = vmul.f32 %v2661, 0.044715
        %v2757 = vmul.f32 %v2663, 0.044715
        %v2758 = vmul.f32 %v2738, 0.044715
        %v2759 = vmul.f32 %v2740, 0.044715
        %v2760 = vmul.f32 %v2667, 0.044715
        %v2761 = vmul.f32 %v2669, 0.044715
        %v2762 = vmul.f32 %v2744, 0.044715
        %v2763 = vmul.f32 %v2746, 0.044715
        %v2764 = vmul.f32 %v2756, %v2661
        %v2765 = vmul.f32 %v2757, %v2663
        %v2766 = vmul.f32 %v2758, %v2738
        %v2767 = vmul.f32 %v2759, %v2740
        %v2768 = vmul.f32 %v2760, %v2667
        %v2769 = vmul.f32 %v2761, %v2669
        %v2770 = vmul.f32 %v2762, %v2744
        %v2771 = vmul.f32 %v2763, %v2746
        %v2772 = vmul.f32 %v2764, %v2661
        %v2773 = vmul.f32 %v2765, %v2663
        %v2774 = vmul.f32 %v2766, %v2738
        %v2775 = vmul.f32 %v2767, %v2740
        %v2776 = vmul.f32 %v2768, %v2667
        %v2777 = vmul.f32 %v2769, %v2669
        %v2778 = vmul.f32 %v2770, %v2744
        %v2779 = vmul.f32 %v2771, %v2746
        %v2780 = vadd.f32 %v2661, %v2772
        %v2781 = vadd.f32 %v2663, %v2773
        %v2782 = vadd.f32 %v2738, %v2774
        %v2783 = vadd.f32 %v2740, %v2775
        %v2784 = vadd.f32 %v2667, %v2776
        %v2785 = vadd.f32 %v2669, %v2777
        %v2786 = vadd.f32 %v2744, %v2778
        %v2787 = vadd.f32 %v2746, %v2779
        %v2788 = vmul.f32 %v2780, 0.7978846
        %v2789 = vmul.f32 %v2781, 0.7978846
        %v2790 = vmul.f32 %v2782, 0.7978846
        %v2791 = vmul.f32 %v2783, 0.7978846
        %v2792 = vmul.f32 %v2784, 0.7978846
        %v2793 = vmul.f32 %v2785, 0.7978846
        %v2794 = vmul.f32 %v2786, 0.7978846
        %v2795 = vmul.f32 %v2787, 0.7978846
        %v2796 = vtanh.pop %v2788
        %v2797 = vtanh.pop %v2789
        %v2798 = vtanh.pop %v2790
        %v2799 = vtanh.pop %v2791
        %v2800 = vtanh.pop %v2792
        %v2801 = vtanh.pop %v2793
        %v2802 = vtanh.pop %v2794
        %v2803 = vtanh.pop %v2795
        %v2804 = vadd.f32 %v2796, 1.0
        %v2805 = vadd.f32 %v2797, 1.0
        %v2806 = vadd.f32 %v2798, 1.0
        %v2807 = vadd.f32 %v2799, 1.0
        %v2808 = vadd.f32 %v2800, 1.0
        %v2809 = vadd.f32 %v2801, 1.0
        %v2810 = vadd.f32 %v2802, 1.0
        %v2811 = vadd.f32 %v2803, 1.0
        %v2812 = vmul.f32 %v2748, %v2804
        %v2813 = vmul.f32 %v2749, %v2805
        %v2814 = vmul.f32 %v2750, %v2806
        %v2815 = vmul.f32 %v2751, %v2807
        %v2816 = vmul.f32 %v2752, %v2808
        %v2817 = vmul.f32 %v2753, %v2809
        %v2818 = vmul.f32 %v2754, %v2810
        %v2819 = vmul.f32 %v2755, %v2811
        %v2820 = vld [vmem:[%s826] sm:$0xff]
        %v2821 = vld [vmem:[%s826 + $0x8] sm:$0xff]
        %v2822 = vld [vmem:[%s826 + $0x10] sm:$0xff]
        %v2823 = vld [vmem:[%s826 + $0x18] sm:$0xff]
        %v2824 = vld [vmem:[%s826 + $0x20] sm:$0xff]
        %v2825 = vld [vmem:[%s826 + $0x28] sm:$0xff]
        %v2826 = vld [vmem:[%s826 + $0x30] sm:$0xff]
        %v2827 = vld [vmem:[%s826 + $0x38] sm:$0xff]
        %v2828 = vld [vmem:[%s826 + $0x40] sm:$0xff]
        %v2829 = vld [vmem:[%s826 + $0x48] sm:$0xff]
        %v2830 = vld [vmem:[%s826 + $0x50] sm:$0xff]
        %v2831 = vld [vmem:[%s826 + $0x58] sm:$0xff]
        %v2832 = vld [vmem:[%s826 + $0x60] sm:$0xff]
        %v2833 = vld [vmem:[%s826 + $0x68] sm:$0xff]
        %v2834 = vld [vmem:[%s826 + $0x70] sm:$0xff]
        %v2835 = vld [vmem:[%s826 + $0x78] sm:$0xff]
        %v2836 = vld [vmem:[%s826 + $0x80] sm:$0xff]
        %v2837 = vld [vmem:[%s826 + $0x88] sm:$0xff]
        %v2838 = vld [vmem:[%s826 + $0x90] sm:$0xff]
        %v2839 = vld [vmem:[%s826 + $0x98] sm:$0xff]
        %v2840 = vld [vmem:[%s826 + $0xa0] sm:$0xff]
        %v2841 = vld [vmem:[%s826 + $0xa8] sm:$0xff]
        %v2842 = vld [vmem:[%s826 + $0xb0] sm:$0xff]
        %v2843 = vld [vmem:[%s826 + $0xb8] sm:$0xff]
        %v2844 = vld [vmem:[%s826 + $0xc0] sm:$0xff]
        %v2845 = vld [vmem:[%s826 + $0xc8] sm:$0xff]
        %v2846 = vld [vmem:[%s826 + $0xd0] sm:$0xff]
        %v2847 = vld [vmem:[%s826 + $0xd8] sm:$0xff]
        %v2848 = vld [vmem:[%s826 + $0xe0] sm:$0xff]
        %v2849 = vld [vmem:[%s826 + $0xe8] sm:$0xff]
        %v2850 = vld [vmem:[%s826 + $0xf0] sm:$0xff]
        %v2851 = vld [vmem:[%s826 + $0xf8] sm:$0xff]
        %v2852 = vld [vmem:[%s826 + $0x100] sm:$0xff]
        %v2853 = vld [vmem:[%s826 + $0x108] sm:$0xff]
        %v2854 = vld [vmem:[%s826 + $0x110] sm:$0xff]
        %v2855 = vld [vmem:[%s826 + $0x118] sm:$0xff]
        %v2856 = vld [vmem:[%s826 + $0x120] sm:$0xff]
        %v2857 = vld [vmem:[%s826 + $0x128] sm:$0xff]
        %v2858 = vld [vmem:[%s826 + $0x130] sm:$0xff]
        %v2859 = vld [vmem:[%s826 + $0x138] sm:$0xff]
        %v2860 = vld [vmem:[%s826 + $0x140] sm:$0xff]
        %v2861 = vld [vmem:[%s826 + $0x148] sm:$0xff]
        %v2862 = vld [vmem:[%s826 + $0x150] sm:$0xff]
        %v2863 = vld [vmem:[%s826 + $0x158] sm:$0xff]
        %v2864 = vld [vmem:[%s826 + $0x160] sm:$0xff]
        %v2865 = vld [vmem:[%s826 + $0x168] sm:$0xff]
        %v2866 = vld [vmem:[%s826 + $0x170] sm:$0xff]
        %v2867 = vld [vmem:[%s826 + $0x178] sm:$0xff]
        %v2868 = vld [vmem:[%s826 + $0x180] sm:$0xff]
        %v2869 = vld [vmem:[%s826 + $0x188] sm:$0xff]
        %v2870 = vld [vmem:[%s826 + $0x190] sm:$0xff]
        %v2871 = vld [vmem:[%s826 + $0x198] sm:$0xff]
        %v2872 = vld [vmem:[%s826 + $0x1a0] sm:$0xff]
        %v2873 = vld [vmem:[%s826 + $0x1a8] sm:$0xff]
        %v2874 = vld [vmem:[%s826 + $0x1b0] sm:$0xff]
        %v2875 = vld [vmem:[%s826 + $0x1b8] sm:$0xff]
        %v2876 = vld [vmem:[%s826 + $0x1c0] sm:$0xff]
        %v2877 = vld [vmem:[%s826 + $0x1c8] sm:$0xff]
        %v2878 = vld [vmem:[%s826 + $0x1d0] sm:$0xff]
        %v2879 = vld [vmem:[%s826 + $0x1d8] sm:$0xff]
        %v2880 = vld [vmem:[%s826 + $0x1e0] sm:$0xff]
        %v2881 = vld [vmem:[%s826 + $0x1e8] sm:$0xff]
        %v2882 = vld [vmem:[%s826 + $0x1f0] sm:$0xff]
        %v2883 = vld [vmem:[%s826 + $0x1f8] sm:$0xff]
        %2884 = vmatprep.subr.mxu0 0.0
        %2885 = vmatpush1.msra.mxu0 %v2835
        %2886 = vmatprep.subr.mxu0 0.0
        %2887 = vmatpush1.msra.mxu0 %v2834
        %2888 = vmatprep.subr.mxu0 0.0
        %2889 = vmatpush1.msra.mxu0 %v2833
        %2890 = vmatprep.subr.mxu0 0.0
        %2891 = vmatpush1.msra.mxu0 %v2832
        %2892 = vmatprep.subr.mxu0 0.0
        %2893 = vmatpush1.msra.mxu0 %v2831
        %2894 = vmatprep.subr.mxu0 0.0
        %2895 = vmatpush1.msra.mxu0 %v2830
        %2896 = vmatprep.subr.mxu0 0.0
        %2897 = vmatpush1.msra.mxu0 %v2829
        %2898 = vmatprep.subr.mxu0 0.0
        %2899 = vmatpush1.msra.mxu0 %v2828
        %2900 = vmatprep.subr.mxu0 0.0
        %2901 = vmatpush1.msra.mxu0 %v2827
        %2902 = vmatprep.subr.mxu0 0.0
        %2903 = vmatpush1.msra.mxu0 %v2826
        %2904 = vmatprep.subr.mxu0 0.0
        %2905 = vmatpush1.msra.mxu0 %v2825
        %2906 = vmatprep.subr.mxu0 0.0
        %2907 = vmatpush1.msra.mxu0 %v2824
        %2908 = vmatprep.subr.mxu0 0.0
        %2909 = vmatpush1.msra.mxu0 %v2823
        %2910 = vmatprep.subr.mxu0 0.0
        %2911 = vmatpush1.msra.mxu0 %v2822
        %2912 = vmatprep.subr.mxu0 0.0
        %2913 = vmatpush1.msra.mxu0 %v2821
        %2914 = vmatprep.subr.mxu0 0.0
        %2915 = vmatpush1.msra.mxu0 %v2820
        %2916 = vmatprep.subr.mxu0 0.0
        %2917 = vmatpush2.msra.mxu0 %v2851
        %2918 = vmatprep.subr.mxu0 0.0
        %2919 = vmatpush2.msra.mxu0 %v2850
        %2920 = vmatprep.subr.mxu0 0.0
        %2921 = vmatpush2.msra.mxu0 %v2849
        %2922 = vmatprep.subr.mxu0 0.0
        %2923 = vmatpush2.msra.mxu0 %v2848
        %2924 = vmatprep.subr.mxu0 0.0
        %2925 = vmatpush2.msra.mxu0 %v2847
        %2926 = vmatprep.subr.mxu0 0.0
        %2927 = vmatpush2.msra.mxu0 %v2846
        %2928 = vmatprep.subr.mxu0 0.0
        %2929 = vmatpush2.msra.mxu0 %v2845
        %2930 = vmatprep.subr.mxu0 0.0
        %2931 = vmatpush2.msra.mxu0 %v2844
        %2932 = vmatprep.subr.mxu0 0.0
        %2933 = vmatpush2.msra.mxu0 %v2843
        %2934 = vmatprep.subr.mxu0 0.0
        %2935 = vmatpush2.msra.mxu0 %v2842
        %2936 = vmatprep.subr.mxu0 0.0
        %2937 = vmatpush2.msra.mxu0 %v2841
        %2938 = vmatprep.subr.mxu0 0.0
        %2939 = vmatpush2.msra.mxu0 %v2840
        %2940 = vmatprep.subr.mxu0 0.0
        %2941 = vmatpush2.msra.mxu0 %v2839
        %2942 = vmatprep.subr.mxu0 0.0
        %2943 = vmatpush2.msra.mxu0 %v2838
        %2944 = vmatprep.subr.mxu0 0.0
        %2945 = vmatpush2.msra.mxu0 %v2837
        %2946 = vmatprep.subr.mxu0 0.0
        %2947 = vmatpush2.msra.mxu0 %v2836
        %2948 = vmatprep.mubr.f32.mxu0 %v2813
        %2949 = vmatmul.mubr.f32.gmra.mxu0 %v2812
        %v2950 = vpop.f32.mrf.mxu0
        %v2951 = vadd.f32 0.0, %v2950
        %v2952 = vpop.f32.mrf.mxu0
        %2953 = vmatprep.mubr.f32.mxu0 %v2817
        %2954 = vmatmul.mubr.f32.gmra.mxu0 %v2816
        %v2955 = vpop.f32.mrf.mxu0
        %v2956 = vadd.f32 0.0, %v2955
        %v2957 = vpop.f32.mrf.mxu0
        %2958 = vdwg.mxu0
        %2959 = vmatprep.subr.mxu0 0.0
        %2960 = vmatpush1.msra.mxu0 %v2867
        %2961 = vmatprep.subr.mxu0 0.0
        %2962 = vmatpush1.msra.mxu0 %v2866
        %2963 = vmatprep.subr.mxu0 0.0
        %2964 = vmatpush1.msra.mxu0 %v2865
        %2965 = vmatprep.subr.mxu0 0.0
        %2966 = vmatpush1.msra.mxu0 %v2864
        %2967 = vmatprep.subr.mxu0 0.0
        %2968 = vmatpush1.msra.mxu0 %v2863
        %2969 = vmatprep.subr.mxu0 0.0
        %2970 = vmatpush1.msra.mxu0 %v2862
        %2971 = vmatprep.subr.mxu0 0.0
        %2972 = vmatpush1.msra.mxu0 %v2861
        %2973 = vmatprep.subr.mxu0 0.0
        %2974 = vmatpush1.msra.mxu0 %v2860
        %2975 = vmatprep.subr.mxu0 0.0
        %2976 = vmatpush1.msra.mxu0 %v2859
        %2977 = vmatprep.subr.mxu0 0.0
        %2978 = vmatpush1.msra.mxu0 %v2858
        %2979 = vmatprep.subr.mxu0 0.0
        %2980 = vmatpush1.msra.mxu0 %v2857
        %2981 = vmatprep.subr.mxu0 0.0
        %2982 = vmatpush1.msra.mxu0 %v2856
        %2983 = vmatprep.subr.mxu0 0.0
        %2984 = vmatpush1.msra.mxu0 %v2855
        %2985 = vmatprep.subr.mxu0 0.0
        %2986 = vmatpush1.msra.mxu0 %v2854
        %2987 = vmatprep.subr.mxu0 0.0
        %2988 = vmatpush1.msra.mxu0 %v2853
        %2989 = vmatprep.subr.mxu0 0.0
        %2990 = vmatpush1.msra.mxu0 %v2852
        %2991 = vmatprep.subr.mxu0 0.0
        %2992 = vmatpush2.msra.mxu0 %v2883
        %2993 = vmatprep.subr.mxu0 0.0
        %2994 = vmatpush2.msra.mxu0 %v2882
        %2995 = vmatprep.subr.mxu0 0.0
        %2996 = vmatpush2.msra.mxu0 %v2881
        %2997 = vmatprep.subr.mxu0 0.0
        %2998 = vmatpush2.msra.mxu0 %v2880
        %2999 = vmatprep.subr.mxu0 0.0
        %3000 = vmatpush2.msra.mxu0 %v2879
        %3001 = vmatprep.subr.mxu0 0.0
        %3002 = vmatpush2.msra.mxu0 %v2878
        %3003 = vmatprep.subr.mxu0 0.0
        %3004 = vmatpush2.msra.mxu0 %v2877
        %3005 = vmatprep.subr.mxu0 0.0
        %3006 = vmatpush2.msra.mxu0 %v2876
        %3007 = vmatprep.subr.mxu0 0.0
        %3008 = vmatpush2.msra.mxu0 %v2875
        %3009 = vmatprep.subr.mxu0 0.0
        %3010 = vmatpush2.msra.mxu0 %v2874
        %3011 = vmatprep.subr.mxu0 0.0
        %3012 = vmatpush2.msra.mxu0 %v2873
        %3013 = vmatprep.subr.mxu0 0.0
        %3014 = vmatpush2.msra.mxu0 %v2872
        %3015 = vmatprep.subr.mxu0 0.0
        %3016 = vmatpush2.msra.mxu0 %v2871
        %3017 = vmatprep.subr.mxu0 0.0
        %3018 = vmatpush2.msra.mxu0 %v2870
        %3019 = vmatprep.subr.mxu0 0.0
        %3020 = vmatpush2.msra.mxu0 %v2869
        %3021 = vmatprep.subr.mxu0 0.0
        %3022 = vmatpush2.msra.mxu0 %v2868
        %3023 = vmatprep.mubr.f32.mxu0 %v2815
        %3024 = vmatmul.mubr.f32.gmra.mxu0 %v2814
        %v3025 = vpop.f32.mrf.mxu0
        %v3026 = vadd.f32 %v2951, %v3025
        %v3027 = vpop.f32.mrf.mxu0
        %3028 = vmatprep.mubr.f32.mxu0 %v2819
        %3029 = vmatmul.mubr.f32.gmra.mxu0 %v2818
        %v3030 = vpop.f32.mrf.mxu0
        %v3031 = vadd.f32 %v2956, %v3030
        %v3032 = vpop.f32.mrf.mxu0
        %3033 = vdwg.mxu0
        %v3034 = vadd.f32 %v2466, %v3026
        %v3035 = vadd.f32 %v2467, %v3031
        %v3036 = vld [vmem:[%s949] sm:$0x1]
        %v3038 = vlaneseq
        %v3039 = vshrl.u32 %v3038, 7
        %v3040 = vsub.s32 0, %v3039
        %v3041 = vrot.slane %v3036, %v3040
        %v3043 = vadd.f32 %v3034, %v3041
        %v3044 = vadd.f32 %v3035, %v3041
        %3045 = vst [vmem:[%s930] sm:$0xff] %v3043
        %3046 = vst [vmem:[%s930 + $0x8] sm:$0xff] %v3044
        %p3047 = scmp.eq.s32.totalorder %s40, 1
        // Predicated region
        $region133: #{tpu_custom_call.1} parent=87 // pred_check
          %p3048 = pneg %p3047
        $region134: #{tpu_custom_call.1} parent=87 // pred_check_branch
          %3050 = sbr.rel (%p3048) target = $region136
        $region135: #{tpu_custom_call.1} parent=87 // pred_region
          %v3051 = vld [vmem:[%s15] sm:$0x1]
          %v3052 = vld [vmem:[%s16] sm:$0x1]
          %3053 = vadd.xlane.f32.xlu0 %v3043
          %v3054 = vpop.xlane.xlu0 %3053
          %3055 = vadd.xlane.f32.xlu0 %v3044
          %v3056 = vpop.xlane.xlu0 %3055
          %v3057 = vmul.f32 %v3054, %v1059
          %v3058 = vmul.f32 %v3056, %v1059
          %v3059 = vsub.f32 %v3043, %v3057
          %v3060 = vsub.f32 %v3044, %v3058
          %v3061 = vmul.f32 %v3059, %v3059
          %v3062 = vmul.f32 %v3060, %v3060
          %3063 = vadd.xlane.f32.xlu0 %v3061
          %v3064 = vpop.xlane.xlu0 %3063
          %3065 = vadd.xlane.f32.xlu0 %v3062
          %v3066 = vpop.xlane.xlu0 %3065
          %v3067 = vmul.f32 %v3064, %v1059
          %v3068 = vmul.f32 %v3066, %v1059
          %v3069 = vadd.f32 %v3067, 1e-05
          %v3070 = vadd.f32 %v3068, 1e-05
          %v3071 = vrsqrt.pop %v3069
          %v3072 = vrsqrt.pop %v3070
          %v3073 = vmul.f32 %v3059, %v3071
          %v3074 = vmul.f32 %v3060, %v3072
          %v3076 = vlaneseq
          %v3077 = vshrl.u32 %v3076, 7
          %v3078 = vsub.s32 0, %v3077
          %v3079 = vrot.slane %v3051, %v3078
          %v3081 = vmul.f32 %v3073, %v3079
          %v3082 = vmul.f32 %v3074, %v3079
          %v3084 = vlaneseq
          %v3085 = vshrl.u32 %v3084, 7
          %v3086 = vsub.s32 0, %v3085
          %v3087 = vrot.slane %v3052, %v3086
          %v3089 = vadd.f32 %v3081, %v3087
          %v3090 = vadd.f32 %v3082, %v3087
          %3091 = vst [vmem:[%s930] sm:$0xff] %v3089
          %3092 = vst [vmem:[%s930 + $0x8] sm:$0xff] %v3090
        $region136: #{tpu_custom_call.1} parent=87 // pred_fallthru
          _
        %s3093 = sand.u32 %s482, 1
        %s3094 = scalar_lea.sflag [#allocation4], %s3093
        %s3095 = sand.u32 %s482, 1
        %s3096 = smul.addr %s3095, 16
        %s3097 = scalar_lea.vmem [#allocation15], %s3096
        // Predicated region
        $region137: #{tpu_custom_call.1} parent=87 // pred_check
          %p3098 = pneg %p492
        $region138: #{tpu_custom_call.1} parent=87 // pred_check_branch
          %3100 = sbr.rel (%p3098) target = $region140
        $region139: #{tpu_custom_call.1} parent=87 // pred_region
          %s3101 = smul.u32 2, %s39
          %s3103 = ssub.s32 256, 256
          %3104 = vsyncadd %s3094, %s3103
          %s3105 = smul.addr %s3101, 128
          %s3106 = scalar_lea.hbm %s17, %s3105
          %s3107 = sshll.u32 %s3097, 4
          %s3108 = int_to_ptr.vmem [resolvable:$true] %s3107
          %3113 = dma.vmem_to_hbm [thread:$0]  %s3108, 256, %s3106, %s3094, 128, 128, 8
        $region140: #{tpu_custom_call.1} parent=87 // pred_fallthru
          _
      $region88: #{tpu_custom_call.1} parent=5 // pred_fallthru
        _
      %p3114 = scmp.le.s32.totalorder 2, %s30
      // Predicated region
      $region141: #{tpu_custom_call.1} parent=5 // pred_check
        %p3115 = pneg %p3114
      $region142: #{tpu_custom_call.1} parent=5 // pred_check_branch
        %3117 = sbr.rel (%p3115) target = $region144
      $region143: #{tpu_custom_call.1} parent=5 // pred_region
        %s3118 = ssub.s32 %s30, 2
        // Predicated region
        $region145: #{tpu_custom_call.1} parent=143 // pred_check
          %p3119 = pneg %p498
        $region146: #{tpu_custom_call.1} parent=143 // pred_check_branch
          %3121 = sbr.rel (%p3119) target = $region148
        $region147: #{tpu_custom_call.1} parent=143 // pred_region
          %s3122 = sand.u32 %s483, 1
          %s3123 = scalar_lea.sflag [#allocation4], %s3122
          %s3124 = sand.u32 %s483, 1
          %s3125 = smul.addr %s3124, 16
          %s3126 = scalar_lea.vmem [#allocation15], %s3125
          %3127 = dma.done %s3123, 256
        $region148: #{tpu_custom_call.1} parent=143 // pred_fallthru
          _
      $region144: #{tpu_custom_call.1} parent=5 // pred_fallthru
        _
    $region6: #{tpu_custom_call.1} parent=1 // loop_footer
      %s34 = sadd.s32 1, %s30
    $region7: #{tpu_custom_call.1} parent=1 // loop_footer_branch
      %29 = sbr.rel target = $region3
    $region8: #{tpu_custom_call.1} parent=1 // loop_exit
      _
    %3128 = vsyncpa [#allocation3], 1
    %s3129 = scalar_lea.sflag [#allocation3], 1
    %3130 = vsyncpa %s3129, 1
    %3131 = vsyncpa [#allocation6], 1
    %3132 = vsyncpa [#allocation4], 1
    %s3133 = scalar_lea.sflag [#allocation4], 1
    %3134 = vsyncpa %s3133, 1

</llo_original>
